<compile_context>
chip_gen: v5e
topology: v5e:2x2
jax: 0.10.0
libtpu: 0.0.40
codegen_flags: <defaults>
</compile_context>

<pallas_src>
import jax
import jax.numpy as jnp
from jax import lax
from jax.experimental import pallas as pl
from jax.experimental.pallas import tpu as pltpu


def _basic_block_kernel(xs_ref, xr_ref, w1_ref, w2_ref, s1_ref, b1_ref,
                        s2_ref, b2_ref, o_ref, mid_ref):
    # xs_ref : (1, TH+4, W+2, Cin)  bf16  padded input slab (2-row halo, 1-col pad)
    # xr_ref : (1, TH, W, Cin)      f32   unpadded input tile (residual path)
    # w1_ref : (9, Cin, Cout)       bf16  conv1 taps, index dy*3+dx
    # w2_ref : (9, Cout, Cout)      bf16  conv2 taps
    # s*/b*  : (1, Cout)            f32   folded BN scale / bias
    # o_ref  : (1, TH*W, Cout)      f32   output tile (rows flattened, channels on lanes)
    # mid_ref: (TH+2, W+2, Cout)    bf16  scratch: padded conv2 input tile
    TH = xr_ref.shape[1]
    W = xr_ref.shape[2]
    Cin = xr_ref.shape[3]
    Cout = s1_ref.shape[1]
    M1 = TH + 2                      # conv1 output rows (1-row halo for conv2)

    r = pl.program_id(1)
    R = pl.num_programs(1)

    # ---- conv1: 9 bf16 MXU taps over Ref windows, f32 accumulation ----
    acc1 = jnp.zeros((M1 * W, Cout), jnp.float32)
    for dy in range(3):
        for dx in range(3):
            win = xs_ref[0, dy:dy + M1, dx:dx + W, :]          # (M1, W, Cin) bf16
            acc1 = acc1 + jnp.dot(win.reshape(M1 * W, Cin),
                                  w1_ref[dy * 3 + dx],
                                  preferred_element_type=jnp.float32)
    y1 = jnp.maximum(acc1 * s1_ref[...] + b1_ref[...], 0.0)    # (M1*W, Cout) f32

    # ---- stage padded conv2 input tile into VMEM scratch (bf16) ----
    # Only the two 1-column W borders are zeroed (every step: cheap, and keeps
    # the kernel correct under megacore sharding of the parallel grid axes).
    mid_ref[:, 0:1, :] = jnp.zeros((M1, 1, Cout), mid_ref.dtype)
    mid_ref[:, W + 1:W + 2, :] = jnp.zeros((M1, 1, Cout), mid_ref.dtype)
    mid_ref[:, 1:W + 1, :] = y1.reshape(M1, W, Cout).astype(mid_ref.dtype)

    # Rows of the halo that fall outside the image are conv2 zero-padding,
    # not conv1 outputs: zero them on the boundary row tiles only.
    @pl.when(r == 0)
    def _():
        mid_ref[0:1, :, :] = jnp.zeros((1, W + 2, Cout), mid_ref.dtype)

    @pl.when(r == R - 1)
    def _():
        mid_ref[M1 - 1:M1, :, :] = jnp.zeros((1, W + 2, Cout), mid_ref.dtype)

    # ---- conv2: 9 bf16 MXU taps over the scratch Ref windows ----
    acc2 = jnp.zeros((TH * W, Cout), jnp.float32)
    for dy in range(3):
        for dx in range(3):
            win = mid_ref[dy:dy + TH, dx:dx + W, :]            # (TH, W, Cout) bf16
            acc2 = acc2 + jnp.dot(win.reshape(TH * W, Cout),
                                  w2_ref[dy * 3 + dx],
                                  preferred_element_type=jnp.float32)

    # ---- bn2 + residual (f32) + relu, store (no repack) ----
    identity = xr_ref[0].reshape(TH * W, Cin)                  # Cin == Cout
    out = jnp.maximum(acc2 * s2_ref[...] + b2_ref[...] + identity, 0.0)
    o_ref[0] = out.astype(o_ref.dtype)


def basic_block_forward(x_nchw, w1, w2, bn1, bn2, eps=1e-5, row_tile=8):
    """x_nchw: (N, C, H, W) f32. w1/w2: (Cout, Cin, 3, 3). bn*: dicts of
    gamma/beta/mean/var, each (Cout,). stride=1, downsample=None."""
    N, C, H, W = x_nchw.shape
    Cout = w1.shape[0]
    assert Cout == C, "BasicBlock with downsample=None requires planes == inplanes"
    # TODO(synk): stride=2 / downsample variants of BasicBlock are not implemented.

    TH = row_tile if (H % row_tile == 0) else H
    R = H // TH

    # NCHW -> NHWC (f32, residual path reads this directly).
    x = jnp.transpose(x_nchw, (0, 2, 3, 1))

    # Conv path: zero-pad (2 rows top/bottom for the row-tile halo, 1 col each
    # side for conv W-padding), cast to bf16, and carve into per-tile slabs so
    # halo'd windows are plain Blocked blocks (auto-pipelined by BlockSpec).
    xp = jnp.pad(x, ((0, 0), (2, 2), (1, 1), (0, 0))).astype(jnp.bfloat16)
    slabs = jnp.concatenate(
        [xp[:, r * TH:r * TH + TH + 4][:, None] for r in range(R)], axis=1)
    slabs = slabs.reshape(N * R, TH + 4, W + 2, C)             # (N*R, TH+4, W+2, C)

    # (Cout, Cin, 3, 3) -> (ky, kx, Cin, Cout) -> (9, Cin, Cout), bf16.
    def reorder(w):
        cin = w.shape[1]
        return jnp.transpose(w, (2, 3, 1, 0)).reshape(9, cin, w.shape[0]).astype(jnp.bfloat16)

    w1k = reorder(w1)
    w2k = reorder(w2)

    # Fold eval-mode BatchNorm into per-channel scale/bias (f32).
    def fold(bn):
        s = bn["gamma"] / jnp.sqrt(bn["var"] + eps)
        b = bn["beta"] - bn["mean"] * s
        return (s.reshape(1, -1).astype(jnp.float32),
                b.reshape(1, -1).astype(jnp.float32))

    s1, b1 = fold(bn1)
    s2, b2 = fold(bn2)

    grid_spec = pltpu.PrefetchScalarGridSpec(
        num_scalar_prefetch=0,
        grid=(N, R),
        in_specs=[
            pl.BlockSpec((1, TH + 4, W + 2, C), lambda n, r: (n * R + r, 0, 0, 0)),
            pl.BlockSpec((1, TH, W, C), lambda n, r: (n, r, 0, 0)),
            pl.BlockSpec((9, C, Cout), lambda n, r: (0, 0, 0)),
            pl.BlockSpec((9, Cout, Cout), lambda n, r: (0, 0, 0)),
            pl.BlockSpec((1, Cout), lambda n, r: (0, 0)),
            pl.BlockSpec((1, Cout), lambda n, r: (0, 0)),
            pl.BlockSpec((1, Cout), lambda n, r: (0, 0)),
            pl.BlockSpec((1, Cout), lambda n, r: (0, 0)),
        ],
        out_specs=pl.BlockSpec((1, TH * W, Cout), lambda n, r: (n, r, 0)),
        scratch_shapes=[pltpu.VMEM((TH + 2, W + 2, Cout), jnp.bfloat16)],
    )

    out_flat = pl.pallas_call(
        _basic_block_kernel,
        out_shape=jax.ShapeDtypeStruct((N, H * W, Cout), jnp.float32),
        grid_spec=grid_spec,
        compiler_params=pltpu.CompilerParams(
            dimension_semantics=("parallel", "parallel"),
            # <= v7x scoped cap; can be raised (64-96 MiB) on v5e/v6e for
            # larger row tiles / deeper buffering.
            vmem_limit_bytes=48 * 1024 * 1024),
    )(slabs, x, w1k, w2k, s1, b1, s2, b2)

    # (N, H*W, Cout) -> NHWC -> NCHW to match the PyTorch module's output.
    out_nhwc = out_flat.reshape(N, H, W, Cout)
    return jnp.transpose(out_nhwc, (0, 3, 1, 2))


def _reference(x_nchw, w1, w2, bn1, bn2, eps=1e-5):
    """Pure-JAX reference (NCHW, mirrors the PyTorch module in eval mode)."""
    dn = lax.conv_dimension_numbers(x_nchw.shape, w1.shape,
                                    ("NCHW", "OIHW", "NCHW"))

    def conv(x, w):
        return lax.conv_general_dilated(x, w, window_strides=(1, 1),
                                        padding=((1, 1), (1, 1)),
                                        dimension_numbers=dn)

    def bn(x, p):
        s = p["gamma"] / jnp.sqrt(p["var"] + eps)
        b = p["beta"] - p["mean"] * s
        return x * s[None, :, None, None] + b[None, :, None, None]

    out = jax.nn.relu(bn(conv(x_nchw, w1), bn1))
    out = bn(conv(out, w2), bn2)
    return jax.nn.relu(out + x_nchw)


if __name__ == "__main__":
    # Small shapes: BasicBlock(inplanes=4, planes=4, stride=1, downsample=None)
    # (validate here; profile/tune at real layer shapes, e.g. C=64, H=W=56).
    N, C, H, W = 2, 4, 16, 16
    key = jax.random.PRNGKey(0)
    k_x, k_w1, k_w2, k_g1, k_b1, k_g2, k_b2, k_m, k_v = jax.random.split(key, 9)

    x = jax.random.normal(k_x, (N, C, H, W), jnp.float32)
    w1 = jax.random.normal(k_w1, (C, C, 3, 3), jnp.float32) * 0.2
    w2 = jax.random.normal(k_w2, (C, C, 3, 3), jnp.float32) * 0.2
    bn1 = dict(gamma=jax.random.normal(k_g1, (C,)) * 0.1 + 1.0,
               beta=jax.random.normal(k_b1, (C,)) * 0.1,
               mean=jax.random.normal(k_m, (C,)) * 0.1,
               var=jnp.abs(jax.random.normal(k_v, (C,))) * 0.1 + 1.0)
    bn2 = dict(gamma=jax.random.normal(k_g2, (C,)) * 0.1 + 1.0,
               beta=jax.random.normal(k_b2, (C,)) * 0.1,
               mean=jax.random.normal(k_m, (C,)) * 0.05,
               var=jnp.abs(jax.random.normal(k_v, (C,))) * 0.05 + 1.0)

    out = basic_block_forward(x, w1, w2, bn1, bn2)
    out = jax.block_until_ready(out)

    ref = _reference(x, w1, w2, bn1, bn2)
    assert out.shape == (N, C, H, W)
    assert jnp.allclose(out, ref, atol=2e-2, rtol=2e-2), "mismatch vs reference"

    print("KERNEL_OK")
</pallas_src>

<mosaic_0001>
module attributes {stable_mosaic.version = 11 : i64} {
  func.func @_basic_block_kernel(%arg0: i32, %arg1: i32, %arg2: memref<1x12x18x4xbf16, #tpu.memory_space<vmem>>, %arg3: memref<1x8x16x4xf32, #tpu.memory_space<vmem>>, %arg4: memref<9x4x4xbf16, #tpu.memory_space<vmem>>, %arg5: memref<9x4x4xbf16, #tpu.memory_space<vmem>>, %arg6: memref<1x4xf32, #tpu.memory_space<vmem>>, %arg7: memref<1x4xf32, #tpu.memory_space<vmem>>, %arg8: memref<1x4xf32, #tpu.memory_space<vmem>>, %arg9: memref<1x4xf32, #tpu.memory_space<vmem>>, %arg10: memref<1x128x4xf32, #tpu.memory_space<vmem>>, %arg11: memref<10x18x4xbf16, #tpu.memory_space<vmem>>) attributes {dimension_semantics = [#tpu.dimension_semantics<parallel>, #tpu.dimension_semantics<parallel>], iteration_bounds = array<i64: 2, 2>, scalar_prefetch = 0 : i64, scratch_operands = 1 : i64, tpu.core_type = #tpu.core_type<tc>, window_params = [{transform_indices = @transform_0, window_bounds = array<i64: 1, 12, 18, 4>}, {transform_indices = @transform_1, window_bounds = array<i64: 1, 8, 16, 4>}, {pipeline_mode = #tpu.pipeline_mode<synchronous>, transform_indices = @transform_2, window_bounds = array<i64: 9, 4, 4>}, {pipeline_mode = #tpu.pipeline_mode<synchronous>, transform_indices = @transform_3, window_bounds = array<i64: 9, 4, 4>}, {pipeline_mode = #tpu.pipeline_mode<synchronous>, transform_indices = @transform_4, window_bounds = array<i64: 1, 4>}, {pipeline_mode = #tpu.pipeline_mode<synchronous>, transform_indices = @transform_5, window_bounds = array<i64: 1, 4>}, {pipeline_mode = #tpu.pipeline_mode<synchronous>, transform_indices = @transform_6, window_bounds = array<i64: 1, 4>}, {pipeline_mode = #tpu.pipeline_mode<synchronous>, transform_indices = @transform_7, window_bounds = array<i64: 1, 4>}, {transform_indices = @transform_8, window_bounds = array<i64: 1, 128, 4>}]} {
    %cst = arith.constant 0.000000e+00 : f32
    %0 = vector.broadcast %cst : f32 to vector<160x4xf32>
    %c0 = arith.constant 0 : index
    %c0_0 = arith.constant 0 : index
    %c0_1 = arith.constant 0 : index
    %c0_2 = arith.constant 0 : index
    %1 = vector.load %arg2[%c0, %c0_0, %c0_1, %c0_2] : memref<1x12x18x4xbf16, #tpu.memory_space<vmem>>, vector<1x10x16x4xbf16>
    %2 = vector.shape_cast %1 : vector<1x10x16x4xbf16> to vector<10x16x4xbf16>
    %3 = vector.shape_cast %2 : vector<10x16x4xbf16> to vector<160x4xbf16>
    %c0_3 = arith.constant 0 : index
    %c0_4 = arith.constant 0 : index
    %c0_5 = arith.constant 0 : index
    %4 = vector.load %arg4[%c0_3, %c0_4, %c0_5] : memref<9x4x4xbf16, #tpu.memory_space<vmem>>, vector<1x4x4xbf16>
    %5 = vector.shape_cast %4 : vector<1x4x4xbf16> to vector<4x4xbf16>
    %cst_6 = arith.constant dense<0.000000e+00> : vector<160x4xf32>
    %6 = tpu.matmul %3, %5, %cst_6 {dimension_numbers = #tpu.dot_dimension_numbers<[1], [0], [0], [1], [0, 0, 1, 1], [], []>} : vector<160x4xbf16>, vector<4x4xbf16>, vector<160x4xf32> -> vector<160x4xf32>
    %7 = arith.addf %0, %6 : vector<160x4xf32>
    %c0_7 = arith.constant 0 : index
    %c0_8 = arith.constant 0 : index
    %c1 = arith.constant 1 : index
    %c0_9 = arith.constant 0 : index
    %8 = vector.load %arg2[%c0_7, %c0_8, %c1, %c0_9] : memref<1x12x18x4xbf16, #tpu.memory_space<vmem>>, vector<1x10x16x4xbf16>
    %9 = vector.shape_cast %8 : vector<1x10x16x4xbf16> to vector<10x16x4xbf16>
    %10 = vector.shape_cast %9 : vector<10x16x4xbf16> to vector<160x4xbf16>
    %c1_10 = arith.constant 1 : index
    %c0_11 = arith.constant 0 : index
    %c0_12 = arith.constant 0 : index
    %11 = vector.load %arg4[%c1_10, %c0_11, %c0_12] : memref<9x4x4xbf16, #tpu.memory_space<vmem>>, vector<1x4x4xbf16>
    %12 = vector.shape_cast %11 : vector<1x4x4xbf16> to vector<4x4xbf16>
    %cst_13 = arith.constant dense<0.000000e+00> : vector<160x4xf32>
    %13 = tpu.matmul %10, %12, %cst_13 {dimension_numbers = #tpu.dot_dimension_numbers<[1], [0], [0], [1], [0, 0, 1, 1], [], []>} : vector<160x4xbf16>, vector<4x4xbf16>, vector<160x4xf32> -> vector<160x4xf32>
    %14 = arith.addf %7, %13 : vector<160x4xf32>
    %c0_14 = arith.constant 0 : index
    %c0_15 = arith.constant 0 : index
    %c2 = arith.constant 2 : index
    %c0_16 = arith.constant 0 : index
    %15 = vector.load %arg2[%c0_14, %c0_15, %c2, %c0_16] : memref<1x12x18x4xbf16, #tpu.memory_space<vmem>>, vector<1x10x16x4xbf16>
    %16 = vector.shape_cast %15 : vector<1x10x16x4xbf16> to vector<10x16x4xbf16>
    %17 = vector.shape_cast %16 : vector<10x16x4xbf16> to vector<160x4xbf16>
    %c2_17 = arith.constant 2 : index
    %c0_18 = arith.constant 0 : index
    %c0_19 = arith.constant 0 : index
    %18 = vector.load %arg4[%c2_17, %c0_18, %c0_19] : memref<9x4x4xbf16, #tpu.memory_space<vmem>>, vector<1x4x4xbf16>
    %19 = vector.shape_cast %18 : vector<1x4x4xbf16> to vector<4x4xbf16>
    %cst_20 = arith.constant dense<0.000000e+00> : vector<160x4xf32>
    %20 = tpu.matmul %17, %19, %cst_20 {dimension_numbers = #tpu.dot_dimension_numbers<[1], [0], [0], [1], [0, 0, 1, 1], [], []>} : vector<160x4xbf16>, vector<4x4xbf16>, vector<160x4xf32> -> vector<160x4xf32>
    %21 = arith.addf %14, %20 : vector<160x4xf32>
    %c0_21 = arith.constant 0 : index
    %c1_22 = arith.constant 1 : index
    %c0_23 = arith.constant 0 : index
    %c0_24 = arith.constant 0 : index
    %22 = vector.load %arg2[%c0_21, %c1_22, %c0_23, %c0_24] : memref<1x12x18x4xbf16, #tpu.memory_space<vmem>>, vector<1x10x16x4xbf16>
    %23 = vector.shape_cast %22 : vector<1x10x16x4xbf16> to vector<10x16x4xbf16>
    %24 = vector.shape_cast %23 : vector<10x16x4xbf16> to vector<160x4xbf16>
    %c3 = arith.constant 3 : index
    %c0_25 = arith.constant 0 : index
    %c0_26 = arith.constant 0 : index
    %25 = vector.load %arg4[%c3, %c0_25, %c0_26] : memref<9x4x4xbf16, #tpu.memory_space<vmem>>, vector<1x4x4xbf16>
    %26 = vector.shape_cast %25 : vector<1x4x4xbf16> to vector<4x4xbf16>
    %cst_27 = arith.constant dense<0.000000e+00> : vector<160x4xf32>
    %27 = tpu.matmul %24, %26, %cst_27 {dimension_numbers = #tpu.dot_dimension_numbers<[1], [0], [0], [1], [0, 0, 1, 1], [], []>} : vector<160x4xbf16>, vector<4x4xbf16>, vector<160x4xf32> -> vector<160x4xf32>
    %28 = arith.addf %21, %27 : vector<160x4xf32>
    %c0_28 = arith.constant 0 : index
    %c1_29 = arith.constant 1 : index
    %c1_30 = arith.constant 1 : index
    %c0_31 = arith.constant 0 : index
    %29 = vector.load %arg2[%c0_28, %c1_29, %c1_30, %c0_31] : memref<1x12x18x4xbf16, #tpu.memory_space<vmem>>, vector<1x10x16x4xbf16>
    %30 = vector.shape_cast %29 : vector<1x10x16x4xbf16> to vector<10x16x4xbf16>
    %31 = vector.shape_cast %30 : vector<10x16x4xbf16> to vector<160x4xbf16>
    %c4 = arith.constant 4 : index
    %c0_32 = arith.constant 0 : index
    %c0_33 = arith.constant 0 : index
    %32 = vector.load %arg4[%c4, %c0_32, %c0_33] : memref<9x4x4xbf16, #tpu.memory_space<vmem>>, vector<1x4x4xbf16>
    %33 = vector.shape_cast %32 : vector<1x4x4xbf16> to vector<4x4xbf16>
    %cst_34 = arith.constant dense<0.000000e+00> : vector<160x4xf32>
    %34 = tpu.matmul %31, %33, %cst_34 {dimension_numbers = #tpu.dot_dimension_numbers<[1], [0], [0], [1], [0, 0, 1, 1], [], []>} : vector<160x4xbf16>, vector<4x4xbf16>, vector<160x4xf32> -> vector<160x4xf32>
    %35 = arith.addf %28, %34 : vector<160x4xf32>
    %c0_35 = arith.constant 0 : index
    %c1_36 = arith.constant 1 : index
    %c2_37 = arith.constant 2 : index
    %c0_38 = arith.constant 0 : index
    %36 = vector.load %arg2[%c0_35, %c1_36, %c2_37, %c0_38] : memref<1x12x18x4xbf16, #tpu.memory_space<vmem>>, vector<1x10x16x4xbf16>
    %37 = vector.shape_cast %36 : vector<1x10x16x4xbf16> to vector<10x16x4xbf16>
    %38 = vector.shape_cast %37 : vector<10x16x4xbf16> to vector<160x4xbf16>
    %c5 = arith.constant 5 : index
    %c0_39 = arith.constant 0 : index
    %c0_40 = arith.constant 0 : index
    %39 = vector.load %arg4[%c5, %c0_39, %c0_40] : memref<9x4x4xbf16, #tpu.memory_space<vmem>>, vector<1x4x4xbf16>
    %40 = vector.shape_cast %39 : vector<1x4x4xbf16> to vector<4x4xbf16>
    %cst_41 = arith.constant dense<0.000000e+00> : vector<160x4xf32>
    %41 = tpu.matmul %38, %40, %cst_41 {dimension_numbers = #tpu.dot_dimension_numbers<[1], [0], [0], [1], [0, 0, 1, 1], [], []>} : vector<160x4xbf16>, vector<4x4xbf16>, vector<160x4xf32> -> vector<160x4xf32>
    %42 = arith.addf %35, %41 : vector<160x4xf32>
    %c0_42 = arith.constant 0 : index
    %c2_43 = arith.constant 2 : index
    %c0_44 = arith.constant 0 : index
    %c0_45 = arith.constant 0 : index
    %43 = vector.load %arg2[%c0_42, %c2_43, %c0_44, %c0_45] : memref<1x12x18x4xbf16, #tpu.memory_space<vmem>>, vector<1x10x16x4xbf16>
    %44 = vector.shape_cast %43 : vector<1x10x16x4xbf16> to vector<10x16x4xbf16>
    %45 = vector.shape_cast %44 : vector<10x16x4xbf16> to vector<160x4xbf16>
    %c6 = arith.constant 6 : index
    %c0_46 = arith.constant 0 : index
    %c0_47 = arith.constant 0 : index
    %46 = vector.load %arg4[%c6, %c0_46, %c0_47] : memref<9x4x4xbf16, #tpu.memory_space<vmem>>, vector<1x4x4xbf16>
    %47 = vector.shape_cast %46 : vector<1x4x4xbf16> to vector<4x4xbf16>
    %cst_48 = arith.constant dense<0.000000e+00> : vector<160x4xf32>
    %48 = tpu.matmul %45, %47, %cst_48 {dimension_numbers = #tpu.dot_dimension_numbers<[1], [0], [0], [1], [0, 0, 1, 1], [], []>} : vector<160x4xbf16>, vector<4x4xbf16>, vector<160x4xf32> -> vector<160x4xf32>
    %49 = arith.addf %42, %48 : vector<160x4xf32>
    %c0_49 = arith.constant 0 : index
    %c2_50 = arith.constant 2 : index
    %c1_51 = arith.constant 1 : index
    %c0_52 = arith.constant 0 : index
    %50 = vector.load %arg2[%c0_49, %c2_50, %c1_51, %c0_52] : memref<1x12x18x4xbf16, #tpu.memory_space<vmem>>, vector<1x10x16x4xbf16>
    %51 = vector.shape_cast %50 : vector<1x10x16x4xbf16> to vector<10x16x4xbf16>
    %52 = vector.shape_cast %51 : vector<10x16x4xbf16> to vector<160x4xbf16>
    %c7 = arith.constant 7 : index
    %c0_53 = arith.constant 0 : index
    %c0_54 = arith.constant 0 : index
    %53 = vector.load %arg4[%c7, %c0_53, %c0_54] : memref<9x4x4xbf16, #tpu.memory_space<vmem>>, vector<1x4x4xbf16>
    %54 = vector.shape_cast %53 : vector<1x4x4xbf16> to vector<4x4xbf16>
    %cst_55 = arith.constant dense<0.000000e+00> : vector<160x4xf32>
    %55 = tpu.matmul %52, %54, %cst_55 {dimension_numbers = #tpu.dot_dimension_numbers<[1], [0], [0], [1], [0, 0, 1, 1], [], []>} : vector<160x4xbf16>, vector<4x4xbf16>, vector<160x4xf32> -> vector<160x4xf32>
    %56 = arith.addf %49, %55 : vector<160x4xf32>
    %c0_56 = arith.constant 0 : index
    %c2_57 = arith.constant 2 : index
    %c2_58 = arith.constant 2 : index
    %c0_59 = arith.constant 0 : index
    %57 = vector.load %arg2[%c0_56, %c2_57, %c2_58, %c0_59] : memref<1x12x18x4xbf16, #tpu.memory_space<vmem>>, vector<1x10x16x4xbf16>
    %58 = vector.shape_cast %57 : vector<1x10x16x4xbf16> to vector<10x16x4xbf16>
    %59 = vector.shape_cast %58 : vector<10x16x4xbf16> to vector<160x4xbf16>
    %c8 = arith.constant 8 : index
    %c0_60 = arith.constant 0 : index
    %c0_61 = arith.constant 0 : index
    %60 = vector.load %arg4[%c8, %c0_60, %c0_61] : memref<9x4x4xbf16, #tpu.memory_space<vmem>>, vector<1x4x4xbf16>
    %61 = vector.shape_cast %60 : vector<1x4x4xbf16> to vector<4x4xbf16>
    %cst_62 = arith.constant dense<0.000000e+00> : vector<160x4xf32>
    %62 = tpu.matmul %59, %61, %cst_62 {dimension_numbers = #tpu.dot_dimension_numbers<[1], [0], [0], [1], [0, 0, 1, 1], [], []>} : vector<160x4xbf16>, vector<4x4xbf16>, vector<160x4xf32> -> vector<160x4xf32>
    %63 = arith.addf %56, %62 : vector<160x4xf32>
    %c0_63 = arith.constant 0 : index
    %c0_64 = arith.constant 0 : index
    %64 = vector.load %arg6[%c0_63, %c0_64] : memref<1x4xf32, #tpu.memory_space<vmem>>, vector<1x4xf32>
    %65 = vector.broadcast %64 : vector<1x4xf32> to vector<160x4xf32>
    %66 = arith.mulf %63, %65 : vector<160x4xf32>
    %c0_65 = arith.constant 0 : index
    %c0_66 = arith.constant 0 : index
    %67 = vector.load %arg7[%c0_65, %c0_66] : memref<1x4xf32, #tpu.memory_space<vmem>>, vector<1x4xf32>
    %68 = vector.broadcast %67 : vector<1x4xf32> to vector<160x4xf32>
    %69 = arith.addf %66, %68 : vector<160x4xf32>
    %cst_67 = arith.constant 0.000000e+00 : f32
    %70 = vector.broadcast %cst_67 : f32 to vector<160x4xf32>
    %71 = arith.maximumf %69, %70 : vector<160x4xf32>
    %cst_68 = arith.constant 0.000000e+00 : bf16
    %72 = vector.broadcast %cst_68 : bf16 to vector<10x1x4xbf16>
    %c0_69 = arith.constant 0 : index
    %c0_70 = arith.constant 0 : index
    %c0_71 = arith.constant 0 : index
    %73 = vector.load %arg11[%c0_69, %c0_70, %c0_71] : memref<10x18x4xbf16, #tpu.memory_space<vmem>>, vector<10x1x4xbf16>
    tpu.vector_store %arg11[%c0_69, %c0_70, %c0_71], %72 {strides = array<i32>} : memref<10x18x4xbf16, #tpu.memory_space<vmem>>, vector<10x1x4xbf16>,
    %cst_72 = arith.constant 0.000000e+00 : bf16
    %74 = vector.broadcast %cst_72 : bf16 to vector<10x1x4xbf16>
    %c0_73 = arith.constant 0 : index
    %c17 = arith.constant 17 : index
    %c0_74 = arith.constant 0 : index
    %75 = vector.load %arg11[%c0_73, %c17, %c0_74] : memref<10x18x4xbf16, #tpu.memory_space<vmem>>, vector<10x1x4xbf16>
    tpu.vector_store %arg11[%c0_73, %c17, %c0_74], %74 {strides = array<i32>} : memref<10x18x4xbf16, #tpu.memory_space<vmem>>, vector<10x1x4xbf16>,
    %76 = vector.shape_cast %71 : vector<160x4xf32> to vector<10x16x4xf32>
    %77 = arith.truncf %76 : vector<10x16x4xf32> to vector<10x16x4xbf16>
    %c0_75 = arith.constant 0 : index
    %c1_76 = arith.constant 1 : index
    %c0_77 = arith.constant 0 : index
    %78 = vector.load %arg11[%c0_75, %c1_76, %c0_77] : memref<10x18x4xbf16, #tpu.memory_space<vmem>>, vector<10x16x4xbf16>
    tpu.vector_store %arg11[%c0_75, %c1_76, %c0_77], %77 {strides = array<i32>} : memref<10x18x4xbf16, #tpu.memory_space<vmem>>, vector<10x16x4xbf16>,
    %c0_i32 = arith.constant 0 : i32
    %79 = arith.cmpi eq, %arg1, %c0_i32 : i32
    %80 = arith.extui %79 : i1 to i32
    %c0_i32_78 = arith.constant 0 : i32
    %81 = arith.cmpi ne, %80, %c0_i32_78 : i32
    scf.if %81 {
      %cst_156 = arith.constant 0.000000e+00 : bf16
      %155 = vector.broadcast %cst_156 : bf16 to vector<1x18x4xbf16>
      %c0_157 = arith.constant 0 : index
      %c0_158 = arith.constant 0 : index
      %c0_159 = arith.constant 0 : index
      %156 = vector.load %arg11[%c0_157, %c0_158, %c0_159] : memref<10x18x4xbf16, #tpu.memory_space<vmem>>, vector<1x18x4xbf16>
      tpu.vector_store %arg11[%c0_157, %c0_158, %c0_159], %155 {strides = array<i32>} : memref<10x18x4xbf16, #tpu.memory_space<vmem>>, vector<1x18x4xbf16>,
    } else {
    }
    %c1_i32 = arith.constant 1 : i32
    %82 = arith.cmpi eq, %arg1, %c1_i32 : i32
    %83 = arith.extui %82 : i1 to i32
    %c0_i32_79 = arith.constant 0 : i32
    %84 = arith.cmpi ne, %83, %c0_i32_79 : i32
    scf.if %84 {
      %cst_156 = arith.constant 0.000000e+00 : bf16
      %155 = vector.broadcast %cst_156 : bf16 to vector<1x18x4xbf16>
      %c9 = arith.constant 9 : index
      %c0_157 = arith.constant 0 : index
      %c0_158 = arith.constant 0 : index
      %156 = vector.load %arg11[%c9, %c0_157, %c0_158] : memref<10x18x4xbf16, #tpu.memory_space<vmem>>, vector<1x18x4xbf16>
      tpu.vector_store %arg11[%c9, %c0_157, %c0_158], %155 {strides = array<i32>} : memref<10x18x4xbf16, #tpu.memory_space<vmem>>, vector<1x18x4xbf16>,
    } else {
    }
    %cst_80 = arith.constant 0.000000e+00 : f32
    %85 = vector.broadcast %cst_80 : f32 to vector<128x4xf32>
    %c0_81 = arith.constant 0 : index
    %c0_82 = arith.constant 0 : index
    %c0_83 = arith.constant 0 : index
    %86 = vector.load %arg11[%c0_81, %c0_82, %c0_83] : memref<10x18x4xbf16, #tpu.memory_space<vmem>>, vector<8x16x4xbf16>
    %87 = vector.shape_cast %86 : vector<8x16x4xbf16> to vector<128x4xbf16>
    %c0_84 = arith.constant 0 : index
    %c0_85 = arith.constant 0 : index
    %c0_86 = arith.constant 0 : index
    %88 = vector.load %arg5[%c0_84, %c0_85, %c0_86] : memref<9x4x4xbf16, #tpu.memory_space<vmem>>, vector<1x4x4xbf16>
    %89 = vector.shape_cast %88 : vector<1x4x4xbf16> to vector<4x4xbf16>
    %cst_87 = arith.constant dense<0.000000e+00> : vector<128x4xf32>
    %90 = tpu.matmul %87, %89, %cst_87 {dimension_numbers = #tpu.dot_dimension_numbers<[1], [0], [0], [1], [0, 0, 1, 1], [], []>} : vector<128x4xbf16>, vector<4x4xbf16>, vector<128x4xf32> -> vector<128x4xf32>
    %91 = arith.addf %85, %90 : vector<128x4xf32>
    %c0_88 = arith.constant 0 : index
    %c1_89 = arith.constant 1 : index
    %c0_90 = arith.constant 0 : index
    %92 = vector.load %arg11[%c0_88, %c1_89, %c0_90] : memref<10x18x4xbf16, #tpu.memory_space<vmem>>, vector<8x16x4xbf16>
    %93 = vector.shape_cast %92 : vector<8x16x4xbf16> to vector<128x4xbf16>
    %c1_91 = arith.constant 1 : index
    %c0_92 = arith.constant 0 : index
    %c0_93 = arith.constant 0 : index
    %94 = vector.load %arg5[%c1_91, %c0_92, %c0_93] : memref<9x4x4xbf16, #tpu.memory_space<vmem>>, vector<1x4x4xbf16>
    %95 = vector.shape_cast %94 : vector<1x4x4xbf16> to vector<4x4xbf16>
    %cst_94 = arith.constant dense<0.000000e+00> : vector<128x4xf32>
    %96 = tpu.matmul %93, %95, %cst_94 {dimension_numbers = #tpu.dot_dimension_numbers<[1], [0], [0], [1], [0, 0, 1, 1], [], []>} : vector<128x4xbf16>, vector<4x4xbf16>, vector<128x4xf32> -> vector<128x4xf32>
    %97 = arith.addf %91, %96 : vector<128x4xf32>
    %c0_95 = arith.constant 0 : index
    %c2_96 = arith.constant 2 : index
    %c0_97 = arith.constant 0 : index
    %98 = vector.load %arg11[%c0_95, %c2_96, %c0_97] : memref<10x18x4xbf16, #tpu.memory_space<vmem>>, vector<8x16x4xbf16>
    %99 = vector.shape_cast %98 : vector<8x16x4xbf16> to vector<128x4xbf16>
    %c2_98 = arith.constant 2 : index
    %c0_99 = arith.constant 0 : index
    %c0_100 = arith.constant 0 : index
    %100 = vector.load %arg5[%c2_98, %c0_99, %c0_100] : memref<9x4x4xbf16, #tpu.memory_space<vmem>>, vector<1x4x4xbf16>
    %101 = vector.shape_cast %100 : vector<1x4x4xbf16> to vector<4x4xbf16>
    %cst_101 = arith.constant dense<0.000000e+00> : vector<128x4xf32>
    %102 = tpu.matmul %99, %101, %cst_101 {dimension_numbers = #tpu.dot_dimension_numbers<[1], [0], [0], [1], [0, 0, 1, 1], [], []>} : vector<128x4xbf16>, vector<4x4xbf16>, vector<128x4xf32> -> vector<128x4xf32>
    %103 = arith.addf %97, %102 : vector<128x4xf32>
    %c1_102 = arith.constant 1 : index
    %c0_103 = arith.constant 0 : index
    %c0_104 = arith.constant 0 : index
    %104 = vector.load %arg11[%c1_102, %c0_103, %c0_104] : memref<10x18x4xbf16, #tpu.memory_space<vmem>>, vector<8x16x4xbf16>
    %105 = vector.shape_cast %104 : vector<8x16x4xbf16> to vector<128x4xbf16>
    %c3_105 = arith.constant 3 : index
    %c0_106 = arith.constant 0 : index
    %c0_107 = arith.constant 0 : index
    %106 = vector.load %arg5[%c3_105, %c0_106, %c0_107] : memref<9x4x4xbf16, #tpu.memory_space<vmem>>, vector<1x4x4xbf16>
    %107 = vector.shape_cast %106 : vector<1x4x4xbf16> to vector<4x4xbf16>
    %cst_108 = arith.constant dense<0.000000e+00> : vector<128x4xf32>
    %108 = tpu.matmul %105, %107, %cst_108 {dimension_numbers = #tpu.dot_dimension_numbers<[1], [0], [0], [1], [0, 0, 1, 1], [], []>} : vector<128x4xbf16>, vector<4x4xbf16>, vector<128x4xf32> -> vector<128x4xf32>
    %109 = arith.addf %103, %108 : vector<128x4xf32>
    %c1_109 = arith.constant 1 : index
    %c1_110 = arith.constant 1 : index
    %c0_111 = arith.constant 0 : index
    %110 = vector.load %arg11[%c1_109, %c1_110, %c0_111] : memref<10x18x4xbf16, #tpu.memory_space<vmem>>, vector<8x16x4xbf16>
    %111 = vector.shape_cast %110 : vector<8x16x4xbf16> to vector<128x4xbf16>
    %c4_112 = arith.constant 4 : index
    %c0_113 = arith.constant 0 : index
    %c0_114 = arith.constant 0 : index
    %112 = vector.load %arg5[%c4_112, %c0_113, %c0_114] : memref<9x4x4xbf16, #tpu.memory_space<vmem>>, vector<1x4x4xbf16>
    %113 = vector.shape_cast %112 : vector<1x4x4xbf16> to vector<4x4xbf16>
    %cst_115 = arith.constant dense<0.000000e+00> : vector<128x4xf32>
    %114 = tpu.matmul %111, %113, %cst_115 {dimension_numbers = #tpu.dot_dimension_numbers<[1], [0], [0], [1], [0, 0, 1, 1], [], []>} : vector<128x4xbf16>, vector<4x4xbf16>, vector<128x4xf32> -> vector<128x4xf32>
    %115 = arith.addf %109, %114 : vector<128x4xf32>
    %c1_116 = arith.constant 1 : index
    %c2_117 = arith.constant 2 : index
    %c0_118 = arith.constant 0 : index
    %116 = vector.load %arg11[%c1_116, %c2_117, %c0_118] : memref<10x18x4xbf16, #tpu.memory_space<vmem>>, vector<8x16x4xbf16>
    %117 = vector.shape_cast %116 : vector<8x16x4xbf16> to vector<128x4xbf16>
    %c5_119 = arith.constant 5 : index
    %c0_120 = arith.constant 0 : index
    %c0_121 = arith.constant 0 : index
    %118 = vector.load %arg5[%c5_119, %c0_120, %c0_121] : memref<9x4x4xbf16, #tpu.memory_space<vmem>>, vector<1x4x4xbf16>
    %119 = vector.shape_cast %118 : vector<1x4x4xbf16> to vector<4x4xbf16>
    %cst_122 = arith.constant dense<0.000000e+00> : vector<128x4xf32>
    %120 = tpu.matmul %117, %119, %cst_122 {dimension_numbers = #tpu.dot_dimension_numbers<[1], [0], [0], [1], [0, 0, 1, 1], [], []>} : vector<128x4xbf16>, vector<4x4xbf16>, vector<128x4xf32> -> vector<128x4xf32>
    %121 = arith.addf %115, %120 : vector<128x4xf32>
    %c2_123 = arith.constant 2 : index
    %c0_124 = arith.constant 0 : index
    %c0_125 = arith.constant 0 : index
    %122 = vector.load %arg11[%c2_123, %c0_124, %c0_125] : memref<10x18x4xbf16, #tpu.memory_space<vmem>>, vector<8x16x4xbf16>
    %123 = vector.shape_cast %122 : vector<8x16x4xbf16> to vector<128x4xbf16>
    %c6_126 = arith.constant 6 : index
    %c0_127 = arith.constant 0 : index
    %c0_128 = arith.constant 0 : index
    %124 = vector.load %arg5[%c6_126, %c0_127, %c0_128] : memref<9x4x4xbf16, #tpu.memory_space<vmem>>, vector<1x4x4xbf16>
    %125 = vector.shape_cast %124 : vector<1x4x4xbf16> to vector<4x4xbf16>
    %cst_129 = arith.constant dense<0.000000e+00> : vector<128x4xf32>
    %126 = tpu.matmul %123, %125, %cst_129 {dimension_numbers = #tpu.dot_dimension_numbers<[1], [0], [0], [1], [0, 0, 1, 1], [], []>} : vector<128x4xbf16>, vector<4x4xbf16>, vector<128x4xf32> -> vector<128x4xf32>
    %127 = arith.addf %121, %126 : vector<128x4xf32>
    %c2_130 = arith.constant 2 : index
    %c1_131 = arith.constant 1 : index
    %c0_132 = arith.constant 0 : index
    %128 = vector.load %arg11[%c2_130, %c1_131, %c0_132] : memref<10x18x4xbf16, #tpu.memory_space<vmem>>, vector<8x16x4xbf16>
    %129 = vector.shape_cast %128 : vector<8x16x4xbf16> to vector<128x4xbf16>
    %c7_133 = arith.constant 7 : index
    %c0_134 = arith.constant 0 : index
    %c0_135 = arith.constant 0 : index
    %130 = vector.load %arg5[%c7_133, %c0_134, %c0_135] : memref<9x4x4xbf16, #tpu.memory_space<vmem>>, vector<1x4x4xbf16>
    %131 = vector.shape_cast %130 : vector<1x4x4xbf16> to vector<4x4xbf16>
    %cst_136 = arith.constant dense<0.000000e+00> : vector<128x4xf32>
    %132 = tpu.matmul %129, %131, %cst_136 {dimension_numbers = #tpu.dot_dimension_numbers<[1], [0], [0], [1], [0, 0, 1, 1], [], []>} : vector<128x4xbf16>, vector<4x4xbf16>, vector<128x4xf32> -> vector<128x4xf32>
    %133 = arith.addf %127, %132 : vector<128x4xf32>
    %c2_137 = arith.constant 2 : index
    %c2_138 = arith.constant 2 : index
    %c0_139 = arith.constant 0 : index
    %134 = vector.load %arg11[%c2_137, %c2_138, %c0_139] : memref<10x18x4xbf16, #tpu.memory_space<vmem>>, vector<8x16x4xbf16>
    %135 = vector.shape_cast %134 : vector<8x16x4xbf16> to vector<128x4xbf16>
    %c8_140 = arith.constant 8 : index
    %c0_141 = arith.constant 0 : index
    %c0_142 = arith.constant 0 : index
    %136 = vector.load %arg5[%c8_140, %c0_141, %c0_142] : memref<9x4x4xbf16, #tpu.memory_space<vmem>>, vector<1x4x4xbf16>
    %137 = vector.shape_cast %136 : vector<1x4x4xbf16> to vector<4x4xbf16>
    %cst_143 = arith.constant dense<0.000000e+00> : vector<128x4xf32>
    %138 = tpu.matmul %135, %137, %cst_143 {dimension_numbers = #tpu.dot_dimension_numbers<[1], [0], [0], [1], [0, 0, 1, 1], [], []>} : vector<128x4xbf16>, vector<4x4xbf16>, vector<128x4xf32> -> vector<128x4xf32>
    %139 = arith.addf %133, %138 : vector<128x4xf32>
    %c0_144 = arith.constant 0 : index
    %c0_145 = arith.constant 0 : index
    %c0_146 = arith.constant 0 : index
    %c0_147 = arith.constant 0 : index
    %140 = vector.load %arg3[%c0_144, %c0_145, %c0_146, %c0_147] : memref<1x8x16x4xf32, #tpu.memory_space<vmem>>, vector<1x8x16x4xf32>
    %141 = vector.shape_cast %140 : vector<1x8x16x4xf32> to vector<8x16x4xf32>
    %142 = vector.shape_cast %141 : vector<8x16x4xf32> to vector<128x4xf32>
    %c0_148 = arith.constant 0 : index
    %c0_149 = arith.constant 0 : index
    %143 = vector.load %arg8[%c0_148, %c0_149] : memref<1x4xf32, #tpu.memory_space<vmem>>, vector<1x4xf32>
    %144 = vector.broadcast %143 : vector<1x4xf32> to vector<128x4xf32>
    %145 = arith.mulf %139, %144 : vector<128x4xf32>
    %c0_150 = arith.constant 0 : index
    %c0_151 = arith.constant 0 : index
    %146 = vector.load %arg9[%c0_150, %c0_151] : memref<1x4xf32, #tpu.memory_space<vmem>>, vector<1x4xf32>
    %147 = vector.broadcast %146 : vector<1x4xf32> to vector<128x4xf32>
    %148 = arith.addf %145, %147 : vector<128x4xf32>
    %149 = arith.addf %148, %142 : vector<128x4xf32>
    %cst_152 = arith.constant 0.000000e+00 : f32
    %150 = vector.broadcast %cst_152 : f32 to vector<128x4xf32>
    %151 = arith.maximumf %149, %150 : vector<128x4xf32>
    %c0_153 = arith.constant 0 : index
    %c0_154 = arith.constant 0 : index
    %c0_155 = arith.constant 0 : index
    %152 = vector.load %arg10[%c0_153, %c0_154, %c0_155] : memref<1x128x4xf32, #tpu.memory_space<vmem>>, vector<1x128x4xf32>
    %153 = vector.shape_cast %152 : vector<1x128x4xf32> to vector<128x4xf32>
    %154 = vector.shape_cast %151 : vector<128x4xf32> to vector<1x128x4xf32>
    tpu.vector_store %arg10[%c0_153, %c0_154, %c0_155], %154 {strides = array<i32>} : memref<1x128x4xf32, #tpu.memory_space<vmem>>, vector<1x128x4xf32>,
    return
  }
  func.func @transform_0(%arg0: i32, %arg1: i32) -> (i32, i32, i32, i32) {
    %c2_i32 = arith.constant 2 : i32
    %0 = arith.muli %arg0, %c2_i32 : i32
    %1 = arith.addi %0, %arg1 : i32
    %c0_i32 = arith.constant 0 : i32
    %c0_i32_0 = arith.constant 0 : i32
    %c0_i32_1 = arith.constant 0 : i32
    %c0_i32_2 = arith.constant 0 : i32
    return %1, %c0_i32, %c0_i32_0, %c0_i32_1 : i32, i32, i32, i32
  }
  func.func @transform_1(%arg0: i32, %arg1: i32) -> (i32, i32, i32, i32) {
    %c0_i32 = arith.constant 0 : i32
    %c0_i32_0 = arith.constant 0 : i32
    %c0_i32_1 = arith.constant 0 : i32
    return %arg0, %arg1, %c0_i32, %c0_i32_0 : i32, i32, i32, i32
  }
  func.func @transform_2(%arg0: i32, %arg1: i32) -> (i32, i32, i32) {
    %c0_i32 = arith.constant 0 : i32
    %c0_i32_0 = arith.constant 0 : i32
    %c0_i32_1 = arith.constant 0 : i32
    %c0_i32_2 = arith.constant 0 : i32
    return %c0_i32, %c0_i32_0, %c0_i32_1 : i32, i32, i32
  }
  func.func @transform_3(%arg0: i32, %arg1: i32) -> (i32, i32, i32) {
    %c0_i32 = arith.constant 0 : i32
    %c0_i32_0 = arith.constant 0 : i32
    %c0_i32_1 = arith.constant 0 : i32
    %c0_i32_2 = arith.constant 0 : i32
    return %c0_i32, %c0_i32_0, %c0_i32_1 : i32, i32, i32
  }
  func.func @transform_4(%arg0: i32, %arg1: i32) -> (i32, i32) {
    %c0_i32 = arith.constant 0 : i32
    %c0_i32_0 = arith.constant 0 : i32
    %c0_i32_1 = arith.constant 0 : i32
    return %c0_i32, %c0_i32_0 : i32, i32
  }
  func.func @transform_5(%arg0: i32, %arg1: i32) -> (i32, i32) {
    %c0_i32 = arith.constant 0 : i32
    %c0_i32_0 = arith.constant 0 : i32
    %c0_i32_1 = arith.constant 0 : i32
    return %c0_i32, %c0_i32_0 : i32, i32
  }
  func.func @transform_6(%arg0: i32, %arg1: i32) -> (i32, i32) {
    %c0_i32 = arith.constant 0 : i32
    %c0_i32_0 = arith.constant 0 : i32
    %c0_i32_1 = arith.constant 0 : i32
    return %c0_i32, %c0_i32_0 : i32, i32
  }
  func.func @transform_7(%arg0: i32, %arg1: i32) -> (i32, i32) {
    %c0_i32 = arith.constant 0 : i32
    %c0_i32_0 = arith.constant 0 : i32
    %c0_i32_1 = arith.constant 0 : i32
    return %c0_i32, %c0_i32_0 : i32, i32
  }
  func.func @transform_8(%arg0: i32, %arg1: i32) -> (i32, i32, i32) {
    %c0_i32 = arith.constant 0 : i32
    %c0_i32_0 = arith.constant 0 : i32
    return %arg0, %arg1, %c0_i32 : i32, i32, i32
  }
}

</mosaic_0001>

<llo_original>
// kernel: tpu_custom_call.1
$region0: #{tpu_custom_call.1}
  #allocation0 [shape = 'u32[]', space=smem, size = 0x4, offset = 0x4, fixed_abs, tag = 'smem constant byte address 0x4 - core index']
  #allocation1 [shape = 'u32[72,128]{1,0:T(1,128)}', space=vmem, size = 0x9000, scoped, tag = 'internal scratch']
  #allocation2 [shape = 'bf16[10,18,4]{2,1,0:T(8,128)(2,1)}', space=vmem, size = 0xf000, scoped, tag = 'scratch operand']
  %s0 = inlined_call_operand.vmem [shape: bf16[4,12,18,4], index: 0, kind: input, shape index: {}]
  %s1 = inlined_call_operand.vmem [shape: f32[2,16,16,4], index: 1, kind: input, shape index: {}]
  %s2 = inlined_call_operand.vmem [shape: bf16[9,4,4], index: 2, kind: input, shape index: {}]
  %s3 = inlined_call_operand.vmem [shape: bf16[9,4,4], index: 3, kind: input, shape index: {}]
  %s4 = inlined_call_operand.vmem [shape: f32[1,4], index: 4, kind: input, shape index: {}]
  %s5 = inlined_call_operand.vmem [shape: f32[1,4], index: 5, kind: input, shape index: {}]
  %s6 = inlined_call_operand.vmem [shape: f32[1,4], index: 6, kind: input, shape index: {}]
  %s7 = inlined_call_operand.vmem [shape: f32[1,4], index: 7, kind: input, shape index: {}]
  %s8 = inlined_call_operand.vmem [shape: f32[2,256,4], index: 8, kind: output, shape index: {}]
  %s9 = sld [smem:[#allocation0]]
  $region73: #{tpu_custom_call.1} parent=0
    _
  %s11 = ssub.s32 1, %s9
  %s12 = scalar_select 0, %s11, %s9
  loop: start=0, step=1, limit=6
  $region2: #{tpu_custom_call.1} parent=0 // loop_pre_header
    _
  $region3: #{tpu_custom_call.1} parent=0 // loop_header
    %s14 = sphi 0, %s18
    %p15 = scmp.ge.s32.totalorder %s14, 6
    %s21 = sphi 0, %s33
    %s22 = sphi 0, %s29
    %s23 = sphi 0, %s21
    %s24 = sphi 0, %s22
    %s25 = sphi 0, %s23
    %s26 = sphi 0, %s24
    %s40 = sphi 0, %s42
    %s43 = sphi 0, %s40
    %s44 = sphi 0, %s43
    %s60 = sphi 0, %s44
    %s68 = sphi 0, %s70
    %s71 = sphi 0, %s68
    %s72 = sphi 0, %s71
    %s88 = sphi 0, %s72
    %s92 = sphi 0, %s92
    %s94 = sphi 0, %s92
    %s95 = sphi 0, %s94
    %s109 = sphi 0, %s95
    %s113 = sphi 0, %s113
    %s115 = sphi 0, %s113
    %s116 = sphi 0, %s115
    %s130 = sphi 0, %s116
    %s134 = sphi 0, %s134
    %s136 = sphi 0, %s134
    %s137 = sphi 0, %s136
    %s151 = sphi 0, %s137
    %s155 = sphi 0, %s155
    %s157 = sphi 0, %s155
    %s158 = sphi 0, %s157
    %s172 = sphi 0, %s158
    %s176 = sphi 0, %s176
    %s178 = sphi 0, %s176
    %s179 = sphi 0, %s178
    %s193 = sphi 0, %s179
    %s197 = sphi 0, %s197
    %s199 = sphi 0, %s197
    %s200 = sphi 0, %s199
    %s214 = sphi 0, %s200
    %s222 = sphi 0, %s224
    %s225 = sphi 0, %s222
    %s226 = sphi 0, %s225
    %s242 = sphi 0, %s226
  $region4: #{tpu_custom_call.1} parent=0 // loop_header_branch
    %17 = sbr.rel (%p15) target = $region8
  $region5: #{tpu_custom_call.1} parent=0 // loop_body
    %s19 = ssub.s32 %s14, 1
    %s20 = ssub.s32 %s14, 2
    %s27 = sadd.s32 1, %s22
    %p28 = scmp.ge.s32.totalorder %s27, 2
    %s29 = scalar_select %p28, 0, %s27
    %s30 = sadd.s32 1, %s21
    %s31 = scalar_select %p28, %s30, %s21
    %p32 = scmp.ge.s32.totalorder %s31, 2
    %s33 = scalar_select %p32, 0, %s31
    %s34 = smul.u32 %s21, 2
    %s35 = sadd.s32 %s34, %s22
    %s36 = smul.u32 %s33, 2
    %s37 = sadd.s32 %s36, %s29
    %s38 = ssub.s32 %s35, %s37
    %p39 = scmp.eq.s32.totalorder %s38, 0
    %s41 = sadd.s32 %s40, 1
    %s42 = scalar_select %p39, %s40, %s41
    %p45 = pneg %p39
    %p46 = scmp.eq.s32.totalorder %s14, 3
    %p47 = por %p45, %p46
    %p48 = scmp.ne.s32.totalorder %s40, %s43
    %p49 = scmp.eq.s32.totalorder %s14, 0
    %p50 = por %p48, %p49
    %p51 = scmp.ne.s32.totalorder %s40, %s43
    %p52 = scmp.eq.s32.totalorder %s19, 3
    %p53 = por %p51, %p52
    %p54 = scmp.ne.s32.totalorder %s43, %s44
    %p55 = scmp.eq.s32.totalorder %s19, 0
    %p56 = por %p54, %p55
    %p57 = scmp.ne.s32.totalorder %s43, %s44
    %p58 = scmp.eq.s32.totalorder %s20, 3
    %p59 = por %p57, %p58
    %p61 = scmp.ne.s32.totalorder %s44, %s60
    %p62 = scmp.eq.s32.totalorder %s20, 0
    %p63 = por %p61, %p62
    %s64 = ssub.s32 %s21, %s33
    %s65 = ssub.s32 %s22, %s29
    %s66 = sor.u32 %s64, %s65
    %p67 = scmp.eq.s32.totalorder %s66, 0
    %s69 = sadd.s32 %s68, 1
    %s70 = scalar_select %p67, %s68, %s69
    %p73 = pneg %p67
    %p74 = scmp.eq.s32.totalorder %s14, 3
    %p75 = por %p73, %p74
    %p76 = scmp.ne.s32.totalorder %s68, %s71
    %p77 = scmp.eq.s32.totalorder %s14, 0
    %p78 = por %p76, %p77
    %p79 = scmp.ne.s32.totalorder %s68, %s71
    %p80 = scmp.eq.s32.totalorder %s19, 3
    %p81 = por %p79, %p80
    %p82 = scmp.ne.s32.totalorder %s71, %s72
    %p83 = scmp.eq.s32.totalorder %s19, 0
    %p84 = por %p82, %p83
    %p85 = scmp.ne.s32.totalorder %s71, %s72
    %p86 = scmp.eq.s32.totalorder %s20, 3
    %p87 = por %p85, %p86
    %p89 = scmp.ne.s32.totalorder %s72, %s88
    %p90 = scmp.eq.s32.totalorder %s20, 0
    %p91 = por %p89, %p90
    %s93 = sadd.s32 %s92, 1
    %p96 = scmp.eq.s32.totalorder %s14, 3
    %p97 = scmp.ne.s32.totalorder %s92, %s94
    %p98 = scmp.eq.s32.totalorder %s14, 0
    %p99 = por %p97, %p98
    %p100 = scmp.ne.s32.totalorder %s92, %s94
    %p101 = scmp.eq.s32.totalorder %s19, 3
    %p102 = por %p100, %p101
    %p103 = scmp.ne.s32.totalorder %s94, %s95
    %p104 = scmp.eq.s32.totalorder %s19, 0
    %p105 = por %p103, %p104
    %p106 = scmp.ne.s32.totalorder %s94, %s95
    %p107 = scmp.eq.s32.totalorder %s20, 3
    %p108 = por %p106, %p107
    %p110 = scmp.ne.s32.totalorder %s95, %s109
    %p111 = scmp.eq.s32.totalorder %s20, 0
    %p112 = por %p110, %p111
    %s114 = sadd.s32 %s113, 1
    %p117 = scmp.eq.s32.totalorder %s14, 3
    %p118 = scmp.ne.s32.totalorder %s113, %s115
    %p119 = scmp.eq.s32.totalorder %s14, 0
    %p120 = por %p118, %p119
    %p121 = scmp.ne.s32.totalorder %s113, %s115
    %p122 = scmp.eq.s32.totalorder %s19, 3
    %p123 = por %p121, %p122
    %p124 = scmp.ne.s32.totalorder %s115, %s116
    %p125 = scmp.eq.s32.totalorder %s19, 0
    %p126 = por %p124, %p125
    %p127 = scmp.ne.s32.totalorder %s115, %s116
    %p128 = scmp.eq.s32.totalorder %s20, 3
    %p129 = por %p127, %p128
    %p131 = scmp.ne.s32.totalorder %s116, %s130
    %p132 = scmp.eq.s32.totalorder %s20, 0
    %p133 = por %p131, %p132
    %s135 = sadd.s32 %s134, 1
    %p138 = scmp.eq.s32.totalorder %s14, 3
    %p139 = scmp.ne.s32.totalorder %s134, %s136
    %p140 = scmp.eq.s32.totalorder %s14, 0
    %p141 = por %p139, %p140
    %p142 = scmp.ne.s32.totalorder %s134, %s136
    %p143 = scmp.eq.s32.totalorder %s19, 3
    %p144 = por %p142, %p143
    %p145 = scmp.ne.s32.totalorder %s136, %s137
    %p146 = scmp.eq.s32.totalorder %s19, 0
    %p147 = por %p145, %p146
    %p148 = scmp.ne.s32.totalorder %s136, %s137
    %p149 = scmp.eq.s32.totalorder %s20, 3
    %p150 = por %p148, %p149
    %p152 = scmp.ne.s32.totalorder %s137, %s151
    %p153 = scmp.eq.s32.totalorder %s20, 0
    %p154 = por %p152, %p153
    %s156 = sadd.s32 %s155, 1
    %p159 = scmp.eq.s32.totalorder %s14, 3
    %p160 = scmp.ne.s32.totalorder %s155, %s157
    %p161 = scmp.eq.s32.totalorder %s14, 0
    %p162 = por %p160, %p161
    %p163 = scmp.ne.s32.totalorder %s155, %s157
    %p164 = scmp.eq.s32.totalorder %s19, 3
    %p165 = por %p163, %p164
    %p166 = scmp.ne.s32.totalorder %s157, %s158
    %p167 = scmp.eq.s32.totalorder %s19, 0
    %p168 = por %p166, %p167
    %p169 = scmp.ne.s32.totalorder %s157, %s158
    %p170 = scmp.eq.s32.totalorder %s20, 3
    %p171 = por %p169, %p170
    %p173 = scmp.ne.s32.totalorder %s158, %s172
    %p174 = scmp.eq.s32.totalorder %s20, 0
    %p175 = por %p173, %p174
    %s177 = sadd.s32 %s176, 1
    %p180 = scmp.eq.s32.totalorder %s14, 3
    %p181 = scmp.ne.s32.totalorder %s176, %s178
    %p182 = scmp.eq.s32.totalorder %s14, 0
    %p183 = por %p181, %p182
    %p184 = scmp.ne.s32.totalorder %s176, %s178
    %p185 = scmp.eq.s32.totalorder %s19, 3
    %p186 = por %p184, %p185
    %p187 = scmp.ne.s32.totalorder %s178, %s179
    %p188 = scmp.eq.s32.totalorder %s19, 0
    %p189 = por %p187, %p188
    %p190 = scmp.ne.s32.totalorder %s178, %s179
    %p191 = scmp.eq.s32.totalorder %s20, 3
    %p192 = por %p190, %p191
    %p194 = scmp.ne.s32.totalorder %s179, %s193
    %p195 = scmp.eq.s32.totalorder %s20, 0
    %p196 = por %p194, %p195
    %s198 = sadd.s32 %s197, 1
    %p201 = scmp.eq.s32.totalorder %s14, 3
    %p202 = scmp.ne.s32.totalorder %s197, %s199
    %p203 = scmp.eq.s32.totalorder %s14, 0
    %p204 = por %p202, %p203
    %p205 = scmp.ne.s32.totalorder %s197, %s199
    %p206 = scmp.eq.s32.totalorder %s19, 3
    %p207 = por %p205, %p206
    %p208 = scmp.ne.s32.totalorder %s199, %s200
    %p209 = scmp.eq.s32.totalorder %s19, 0
    %p210 = por %p208, %p209
    %p211 = scmp.ne.s32.totalorder %s199, %s200
    %p212 = scmp.eq.s32.totalorder %s20, 3
    %p213 = por %p211, %p212
    %p215 = scmp.ne.s32.totalorder %s200, %s214
    %p216 = scmp.eq.s32.totalorder %s20, 0
    %p217 = por %p215, %p216
    %s218 = ssub.s32 %s21, %s33
    %s219 = ssub.s32 %s22, %s29
    %s220 = sor.u32 %s218, %s219
    %p221 = scmp.eq.s32.totalorder %s220, 0
    %s223 = sadd.s32 %s222, 1
    %s224 = scalar_select %p221, %s222, %s223
    %p227 = pneg %p221
    %p228 = scmp.eq.s32.totalorder %s14, 3
    %p229 = por %p227, %p228
    %p230 = scmp.ne.s32.totalorder %s222, %s225
    %p231 = scmp.eq.s32.totalorder %s14, 0
    %p232 = por %p230, %p231
    %p233 = scmp.ne.s32.totalorder %s222, %s225
    %p234 = scmp.eq.s32.totalorder %s19, 3
    %p235 = por %p233, %p234
    %p236 = scmp.ne.s32.totalorder %s225, %s226
    %p237 = scmp.eq.s32.totalorder %s19, 0
    %p238 = por %p236, %p237
    %p239 = scmp.ne.s32.totalorder %s225, %s226
    %p240 = scmp.eq.s32.totalorder %s20, 3
    %p241 = por %p239, %p240
    %p243 = scmp.ne.s32.totalorder %s226, %s242
    %p244 = scmp.eq.s32.totalorder %s20, 0
    %p245 = por %p243, %p244
    %p246 = scmp.le.s32.totalorder 1, %s14
    %p247 = scmp.lt.s32.totalorder %s14, 5
    %p248 = pnand %p246, %p247
    %p249 = pneg %p248
    // Predicated region
    $region9: #{tpu_custom_call.1} parent=5 // pred_check
      _
    $region10: #{tpu_custom_call.1} parent=5 // pred_check_branch
      %251 = sbr.rel (%p248) target = $region12
    $region11: #{tpu_custom_call.1} parent=5 // pred_region
      %s252 = ssub.s32 %s14, 1
      // Predicated region
      $region13: #{tpu_custom_call.1} parent=11 // pred_check
        %p253 = pneg %p105
      $region14: #{tpu_custom_call.1} parent=11 // pred_check_branch
        %255 = sbr.rel (%p253) target = $region16
      $region15: #{tpu_custom_call.1} parent=11 // pred_region
        _
      $region16: #{tpu_custom_call.1} parent=11 // pred_fallthru
        _
      // Predicated region
      $region17: #{tpu_custom_call.1} parent=11 // pred_check
        %p256 = pneg %p126
      $region18: #{tpu_custom_call.1} parent=11 // pred_check_branch
        %258 = sbr.rel (%p256) target = $region20
      $region19: #{tpu_custom_call.1} parent=11 // pred_region
        _
      $region20: #{tpu_custom_call.1} parent=11 // pred_fallthru
        _
      // Predicated region
      $region21: #{tpu_custom_call.1} parent=11 // pred_check
        %p259 = pneg %p147
      $region22: #{tpu_custom_call.1} parent=11 // pred_check_branch
        %261 = sbr.rel (%p259) target = $region24
      $region23: #{tpu_custom_call.1} parent=11 // pred_region
        _
      $region24: #{tpu_custom_call.1} parent=11 // pred_fallthru
        _
      // Predicated region
      $region25: #{tpu_custom_call.1} parent=11 // pred_check
        %p262 = pneg %p168
      $region26: #{tpu_custom_call.1} parent=11 // pred_check_branch
        %264 = sbr.rel (%p262) target = $region28
      $region27: #{tpu_custom_call.1} parent=11 // pred_region
        _
      $region28: #{tpu_custom_call.1} parent=11 // pred_fallthru
        _
      // Predicated region
      $region29: #{tpu_custom_call.1} parent=11 // pred_check
        %p265 = pneg %p189
      $region30: #{tpu_custom_call.1} parent=11 // pred_check_branch
        %267 = sbr.rel (%p265) target = $region32
      $region31: #{tpu_custom_call.1} parent=11 // pred_region
        _
      $region32: #{tpu_custom_call.1} parent=11 // pred_fallthru
        _
      // Predicated region
      $region33: #{tpu_custom_call.1} parent=11 // pred_check
        %p268 = pneg %p210
      $region34: #{tpu_custom_call.1} parent=11 // pred_check_branch
        %270 = sbr.rel (%p268) target = $region36
      $region35: #{tpu_custom_call.1} parent=11 // pred_region
        _
      $region36: #{tpu_custom_call.1} parent=11 // pred_fallthru
        _
    $region12: #{tpu_custom_call.1} parent=5 // pred_fallthru
      _
    %p271 = scmp.lt.s32.totalorder %s14, 4
    // Predicated region
    $region37: #{tpu_custom_call.1} parent=5 // pred_check
      %p272 = pneg %p271
    $region38: #{tpu_custom_call.1} parent=5 // pred_check_branch
      %274 = sbr.rel (%p272) target = $region40
    $region39: #{tpu_custom_call.1} parent=5 // pred_region
      // Predicated region
      $region41: #{tpu_custom_call.1} parent=39 // pred_check
        %p275 = pneg %p50
      $region42: #{tpu_custom_call.1} parent=39 // pred_check_branch
        %277 = sbr.rel (%p275) target = $region44
      $region43: #{tpu_custom_call.1} parent=39 // pred_region
        %s278 = smul.u32 %s21, 2
        %s279 = sadd.s32 %s278, %s22
        %p280 = scmp.lt.s32.totalorder %s279, 3
        %s281 = scalar_select %p280, %s279, 3
        %s282 = smul.addr %s281, 36
        %s283 = smul.addr %s282, 4
        %s284 = scalar_lea.vmem %s0, %s283
        %s285 = smul.u32 %s21, 2
        %s286 = sadd.s32 %s285, %s22
      $region44: #{tpu_custom_call.1} parent=39 // pred_fallthru
        _
      // Predicated region
      $region45: #{tpu_custom_call.1} parent=39 // pred_check
        %p287 = pneg %p78
      $region46: #{tpu_custom_call.1} parent=39 // pred_check_branch
        %289 = sbr.rel (%p287) target = $region48
      $region47: #{tpu_custom_call.1} parent=39 // pred_region
        %s290 = smul.u32 8, %s22
        %p291 = scmp.lt.s32.totalorder %s21, 1
        %s292 = scalar_select %p291, %s21, 1
        %p293 = scmp.lt.s32.totalorder %s290, 15
        %s294 = scalar_select %p293, %s290, 15
        %s295 = smul.addr %s294, 2
        %s296 = smul.addr %s292, 32
        %s297 = sadd.s32 %s295, %s296
        %s298 = smul.addr %s297, 8
        %s299 = scalar_lea.vmem %s1, %s298
        %s300 = smul.u32 8, %s22
      $region48: #{tpu_custom_call.1} parent=39 // pred_fallthru
        _
    $region40: #{tpu_custom_call.1} parent=5 // pred_fallthru
      _
    %p301 = scmp.le.s32.totalorder 1, %s14
    %p302 = scmp.lt.s32.totalorder %s14, 5
    %p303 = pnand %p301, %p302
    %p304 = pneg %p303
    // Predicated region
    $region49: #{tpu_custom_call.1} parent=5 // pred_check
      _
    $region50: #{tpu_custom_call.1} parent=5 // pred_check_branch
      %306 = sbr.rel (%p303) target = $region52
    $region51: #{tpu_custom_call.1} parent=5 // pred_region
      %s307 = ssub.s32 %s14, 1
      %s308 = smul.u32 %s23, 2
      %s309 = sadd.s32 %s308, %s24
      %p310 = scmp.lt.s32.totalorder %s309, 3
      %s311 = scalar_select %p310, %s309, 3
      %s312 = smul.addr %s311, 36
      %s313 = smul.addr %s312, 4
      %s314 = scalar_lea.vmem %s0, %s313
      %p315 = pneg %p56
      %p316 = pneg %p53
      %s317 = smul.u32 8, %s24
      %p318 = scmp.lt.s32.totalorder %s23, 1
      %s319 = scalar_select %p318, %s23, 1
      %p320 = scmp.lt.s32.totalorder %s317, 15
      %s321 = scalar_select %p320, %s317, 15
      %s322 = smul.addr %s321, 2
      %s323 = smul.addr %s319, 32
      %s324 = sadd.s32 %s322, %s323
      %s325 = smul.addr %s324, 8
      %s326 = scalar_lea.vmem %s1, %s325
      %p327 = pneg %p84
      %p328 = pneg %p81
      %p329 = pneg %p105
      %p330 = pneg %p102
      %p331 = pneg %p126
      %p332 = pneg %p123
      %p333 = pneg %p147
      %p334 = pneg %p144
      %p335 = pneg %p168
      %p336 = pneg %p165
      %p337 = pneg %p189
      %p338 = pneg %p186
      %p339 = pneg %p210
      %p340 = pneg %p207
      %p341 = pneg %p238
      %p342 = pneg %p235
      %s343 = smul.u32 16, %s24
      %p344 = scmp.lt.s32.totalorder %s23, 1
      %s345 = scalar_select %p344, %s23, 1
      %p346 = scmp.lt.s32.totalorder %s343, 31
      %s347 = scalar_select %p346, %s343, 31
      %s348 = smul.addr %s345, 32
      %s349 = sadd.s32 %s347, %s348
      %s350 = smul.addr %s349, 8
      %s351 = scalar_lea.vmem %s8, %s350
      %s352 = smul.u32 %s23, 2
      %s353 = sadd.s32 %s352, %s24
      %p354 = scmp.lt.s32.totalorder %s353, 3
      %s355 = scalar_select %p354, %s353, 3
      %s356 = smul.addr %s355, 36
      %s357 = smul.addr %s356, 4
      %s358 = scalar_lea.vmem %s0, %s357
      %s359 = smul.u32 %s23, 2
      %s360 = sadd.s32 %s359, %s24
      %s361 = smul.u32 8, %s24
      %p362 = scmp.lt.s32.totalorder %s23, 1
      %s363 = scalar_select %p362, %s23, 1
      %p364 = scmp.lt.s32.totalorder %s361, 15
      %s365 = scalar_select %p364, %s361, 15
      %s366 = smul.addr %s365, 2
      %s367 = smul.addr %s363, 32
      %s368 = sadd.s32 %s366, %s367
      %s369 = smul.addr %s368, 8
      %s370 = scalar_lea.vmem %s1, %s369
      %s371 = smul.u32 8, %s24
      %s372 = smul.u32 16, %s24
      %p373 = scmp.lt.s32.totalorder %s23, 1
      %s374 = scalar_select %p373, %s23, 1
      %p375 = scmp.lt.s32.totalorder %s372, 31
      %s376 = scalar_select %p375, %s372, 31
      %s377 = smul.addr %s374, 32
      %s378 = sadd.s32 %s376, %s377
      %s379 = smul.addr %s378, 8
      %s380 = scalar_lea.vmem %s8, %s379
      %s381 = smul.u32 16, %s24
      %v383 = vld [vmem:[%s358] sm:$0xf]
      %v384 = vld [vmem:[%s358 + $0x4] sm:$0xf]
      %v385 = vld [vmem:[%s358 + $0xc] sm:$0xf]
      %v386 = vld [vmem:[%s358 + $0x10] sm:$0xf]
      %v387 = vld [vmem:[%s358 + $0x18] sm:$0xf]
      %v388 = vld [vmem:[%s358 + $0x1c] sm:$0xf]
      %v389 = vld [vmem:[%s358 + $0x24] sm:$0xf]
      %v390 = vld [vmem:[%s358 + $0x28] sm:$0xf]
      %v391 = vld [vmem:[%s358 + $0x30] sm:$0xf]
      %v392 = vld [vmem:[%s358 + $0x34] sm:$0xf]
      %v393 = vld [vmem:[%s358 + $0x3c] sm:$0xf]
      %v394 = vld [vmem:[%s358 + $0x40] sm:$0xf]
      %v395 = vld [vmem:[%s358 + $0x48] sm:$0xf]
      %v396 = vld [vmem:[%s358 + $0x4c] sm:$0xf]
      %v397 = vld [vmem:[%s358 + $0x54] sm:$0xf]
      %v398 = vld [vmem:[%s358 + $0x58] sm:$0xf]
      %v399 = vld [vmem:[%s358 + $0x60] sm:$0xf]
      %v400 = vld [vmem:[%s358 + $0x64] sm:$0xf]
      %v401 = vld [vmem:[%s358 + $0x6c] sm:$0xf]
      %v402 = vld [vmem:[%s358 + $0x70] sm:$0xf]
      %v403 = vld [vmem:[%s2] sm:$0x3]
      %v404 = vld [vmem:[%s358 + $0x8] sm:$0x1]
      %v405 = vld [vmem:[%s358 + $0x14] sm:$0x1]
      %v406 = vld [vmem:[%s358 + $0x20] sm:$0x1]
      %v407 = vld [vmem:[%s358 + $0x2c] sm:$0x1]
      %v408 = vld [vmem:[%s358 + $0x38] sm:$0x1]
      %v409 = vld [vmem:[%s358 + $0x44] sm:$0x1]
      %v410 = vld [vmem:[%s358 + $0x50] sm:$0x1]
      %v411 = vld [vmem:[%s358 + $0x5c] sm:$0x1]
      %v412 = vld [vmem:[%s358 + $0x68] sm:$0x1]
      %v413 = vld [vmem:[%s358 + $0x74] sm:$0x1]
      %vm414 = vsmask.f32 3328
      %vm415 = vsmask.f32 7440
      %vm416 = vmor %vm414, %vm415
      %v418 = vshrl.u32 %v383, 16
      %v420 = vrot.slane %v418, 4
      %v421 = vshll.u32 %v383, 16
      %v423 = vrot.slane %v421, 5
      %v424 = vor.u32 %v420, %v423
      %v425 = vrot.slane %v424, 4
      %v427 = vshll.u32 %v384, 16
      %v429 = vrot.slane %v427, 5
      %v430 = vsel %vm416, %v425, %v429
      %v431 = vshrl.u32 %v384, 16
      %v433 = vrot.slane %v431, 4
      %v434 = vor.u32 %v433, %v429
      %v435 = vrot.slane %v434, 4
      %v437 = vshll.u32 %v404, 16
      %v439 = vrot.slane %v437, 5
      %v440 = vsel %vm416, %v435, %v439
      %v442 = vshrl.u32 %v385, 16
      %v444 = vrot.slane %v442, 4
      %v445 = vshll.u32 %v385, 16
      %v447 = vrot.slane %v445, 5
      %v448 = vor.u32 %v444, %v447
      %v449 = vrot.slane %v448, 4
      %v451 = vshll.u32 %v386, 16
      %v453 = vrot.slane %v451, 5
      %v454 = vsel %vm416, %v449, %v453
      %v455 = vshrl.u32 %v386, 16
      %v457 = vrot.slane %v455, 4
      %v458 = vor.u32 %v457, %v453
      %v459 = vrot.slane %v458, 4
      %v461 = vshll.u32 %v405, 16
      %v463 = vrot.slane %v461, 5
      %v464 = vsel %vm416, %v459, %v463
      %v466 = vshrl.u32 %v387, 16
      %v468 = vrot.slane %v466, 4
      %v469 = vshll.u32 %v387, 16
      %v471 = vrot.slane %v469, 5
      %v472 = vor.u32 %v468, %v471
      %v473 = vrot.slane %v472, 4
      %v475 = vshll.u32 %v388, 16
      %v477 = vrot.slane %v475, 5
      %v478 = vsel %vm416, %v473, %v477
      %v479 = vshrl.u32 %v388, 16
      %v481 = vrot.slane %v479, 4
      %v482 = vor.u32 %v481, %v477
      %v483 = vrot.slane %v482, 4
      %v485 = vshll.u32 %v406, 16
      %v487 = vrot.slane %v485, 5
      %v488 = vsel %vm416, %v483, %v487
      %v490 = vshrl.u32 %v389, 16
      %v492 = vrot.slane %v490, 4
      %v493 = vshll.u32 %v389, 16
      %v495 = vrot.slane %v493, 5
      %v496 = vor.u32 %v492, %v495
      %v497 = vrot.slane %v496, 4
      %v499 = vshll.u32 %v390, 16
      %v501 = vrot.slane %v499, 5
      %v502 = vsel %vm416, %v497, %v501
      %v503 = vshrl.u32 %v390, 16
      %v505 = vrot.slane %v503, 4
      %v506 = vor.u32 %v505, %v501
      %v507 = vrot.slane %v506, 4
      %v509 = vshll.u32 %v407, 16
      %v511 = vrot.slane %v509, 5
      %v512 = vsel %vm416, %v507, %v511
      %v514 = vshrl.u32 %v391, 16
      %v516 = vrot.slane %v514, 4
      %v517 = vshll.u32 %v391, 16
      %v519 = vrot.slane %v517, 5
      %v520 = vor.u32 %v516, %v519
      %v521 = vrot.slane %v520, 4
      %v523 = vshll.u32 %v392, 16
      %v525 = vrot.slane %v523, 5
      %v526 = vsel %vm416, %v521, %v525
      %v527 = vshrl.u32 %v392, 16
      %v529 = vrot.slane %v527, 4
      %v530 = vor.u32 %v529, %v525
      %v531 = vrot.slane %v530, 4
      %v533 = vshll.u32 %v408, 16
      %v535 = vrot.slane %v533, 5
      %v536 = vsel %vm416, %v531, %v535
      %v538 = vshrl.u32 %v393, 16
      %v540 = vrot.slane %v538, 4
      %v541 = vshll.u32 %v393, 16
      %v543 = vrot.slane %v541, 5
      %v544 = vor.u32 %v540, %v543
      %v545 = vrot.slane %v544, 4
      %v547 = vshll.u32 %v394, 16
      %v549 = vrot.slane %v547, 5
      %v550 = vsel %vm416, %v545, %v549
      %v551 = vshrl.u32 %v394, 16
      %v553 = vrot.slane %v551, 4
      %v554 = vor.u32 %v553, %v549
      %v555 = vrot.slane %v554, 4
      %v557 = vshll.u32 %v409, 16
      %v559 = vrot.slane %v557, 5
      %v560 = vsel %vm416, %v555, %v559
      %v562 = vshrl.u32 %v395, 16
      %v564 = vrot.slane %v562, 4
      %v565 = vshll.u32 %v395, 16
      %v567 = vrot.slane %v565, 5
      %v568 = vor.u32 %v564, %v567
      %v569 = vrot.slane %v568, 4
      %v571 = vshll.u32 %v396, 16
      %v573 = vrot.slane %v571, 5
      %v574 = vsel %vm416, %v569, %v573
      %v575 = vshrl.u32 %v396, 16
      %v577 = vrot.slane %v575, 4
      %v578 = vor.u32 %v577, %v573
      %v579 = vrot.slane %v578, 4
      %v581 = vshll.u32 %v410, 16
      %v583 = vrot.slane %v581, 5
      %v584 = vsel %vm416, %v579, %v583
      %v586 = vshrl.u32 %v397, 16
      %v588 = vrot.slane %v586, 4
      %v589 = vshll.u32 %v397, 16
      %v591 = vrot.slane %v589, 5
      %v592 = vor.u32 %v588, %v591
      %v593 = vrot.slane %v592, 4
      %v595 = vshll.u32 %v398, 16
      %v597 = vrot.slane %v595, 5
      %v598 = vsel %vm416, %v593, %v597
      %v599 = vshrl.u32 %v398, 16
      %v601 = vrot.slane %v599, 4
      %v602 = vor.u32 %v601, %v597
      %v603 = vrot.slane %v602, 4
      %v605 = vshll.u32 %v411, 16
      %v607 = vrot.slane %v605, 5
      %v608 = vsel %vm416, %v603, %v607
      %v610 = vshrl.u32 %v399, 16
      %v612 = vrot.slane %v610, 4
      %v613 = vshll.u32 %v399, 16
      %v615 = vrot.slane %v613, 5
      %v616 = vor.u32 %v612, %v615
      %v617 = vrot.slane %v616, 4
      %v619 = vshll.u32 %v400, 16
      %v621 = vrot.slane %v619, 5
      %v622 = vsel %vm416, %v617, %v621
      %v623 = vshrl.u32 %v400, 16
      %v625 = vrot.slane %v623, 4
      %v626 = vor.u32 %v625, %v621
      %v627 = vrot.slane %v626, 4
      %v629 = vshll.u32 %v412, 16
      %v631 = vrot.slane %v629, 5
      %v632 = vsel %vm416, %v627, %v631
      %v634 = vshrl.u32 %v401, 16
      %v636 = vrot.slane %v634, 4
      %v637 = vshll.u32 %v401, 16
      %v639 = vrot.slane %v637, 5
      %v640 = vor.u32 %v636, %v639
      %v641 = vrot.slane %v640, 4
      %v643 = vshll.u32 %v402, 16
      %v645 = vrot.slane %v643, 5
      %v646 = vsel %vm416, %v641, %v645
      %v647 = vshrl.u32 %v402, 16
      %v649 = vrot.slane %v647, 4
      %v650 = vor.u32 %v649, %v645
      %v651 = vrot.slane %v650, 4
      %v653 = vshll.u32 %v413, 16
      %v655 = vrot.slane %v653, 5
      %v656 = vsel %vm416, %v651, %v655
      %s657 = scalar_lea.vmem %s2, 2
      %v658 = vld [vmem:[%s657] sm:$0x3]
      %v659 = vunpack.c.l.b16 %v430
      %v660 = vunpack.c.l.b16 %v440
      %v661 = vunpack.c.l.b16 %v454
      %v662 = vunpack.c.l.b16 %v464
      %v663 = vunpack.c.l.b16 %v478
      %v664 = vunpack.c.l.b16 %v488
      %v665 = vunpack.c.l.b16 %v502
      %v666 = vunpack.c.l.b16 %v512
      %v667 = vunpack.c.l.b16 %v526
      %v668 = vunpack.c.l.b16 %v536
      %v669 = vunpack.c.l.b16 %v550
      %v670 = vunpack.c.l.b16 %v560
      %v671 = vunpack.c.l.b16 %v574
      %v672 = vunpack.c.l.b16 %v584
      %v673 = vunpack.c.l.b16 %v598
      %v674 = vunpack.c.l.b16 %v608
      %v675 = vunpack.c.l.b16 %v622
      %v676 = vunpack.c.l.b16 %v632
      %v677 = vunpack.c.l.b16 %v646
      %v678 = vunpack.c.l.b16 %v656
      %v679 = vpack.c.b16 %v660, %v659
      %v680 = vpack.c.b16 %v662, %v661
      %v681 = vpack.c.b16 %v664, %v663
      %v682 = vpack.c.b16 %v666, %v665
      %v683 = vpack.c.b16 %v668, %v667
      %v684 = vpack.c.b16 %v670, %v669
      %v685 = vpack.c.b16 %v672, %v671
      %v686 = vpack.c.b16 %v674, %v673
      %v687 = vpack.c.b16 %v676, %v675
      %v688 = vpack.c.b16 %v678, %v677
      %vm689 = vcmask 31744
      %v691 = vsel %vm689, %v679, 0
      %v694 = vsel %vm689, %v680, 0
      %v697 = vsel %vm689, %v681, 0
      %v700 = vsel %vm689, %v682, 0
      %v703 = vsel %vm689, %v683, 0
      %v706 = vsel %vm689, %v684, 0
      %v709 = vsel %vm689, %v685, 0
      %v712 = vsel %vm689, %v686, 0
      %v715 = vsel %vm689, %v687, 0
      %v718 = vsel %vm689, %v688, 0
      %vm720 = vcmask 1041408
      %v722 = vsel %vm720, %v658, 0
      %724 = vmatpush.bf16.msra.mxu0 0
      %725 = vmatpush.bf16.msra.mxu0 0
      %726 = vmatpush.bf16.msra.mxu0 0
      %727 = vmatpush.bf16.msra.mxu0 0
      %728 = vmatpush.bf16.msra.mxu0 0
      %729 = vmatpush.bf16.msra.mxu0 0
      %730 = vmatpush.bf16.msra.mxu0 0
      %731 = vmatpush.bf16.msra.mxu0 %v722
      %732 = vmatmul.bf16.gmra.mxu0 %v691
      %v733 = vpop.f32.mrf.mxu0
      %v734 = vadd.f32 0.0, %v733
      %v735 = vpop.f32.mrf.mxu0
      %v736 = vadd.f32 0.0, %v735
      %737 = vmatmul.bf16.gmra.mxu0 %v694
      %v738 = vpop.f32.mrf.mxu0
      %v739 = vadd.f32 0.0, %v738
      %v740 = vpop.f32.mrf.mxu0
      %v741 = vadd.f32 0.0, %v740
      %742 = vmatmul.bf16.gmra.mxu0 %v697
      %v743 = vpop.f32.mrf.mxu0
      %v744 = vadd.f32 0.0, %v743
      %v745 = vpop.f32.mrf.mxu0
      %v746 = vadd.f32 0.0, %v745
      %747 = vmatmul.bf16.gmra.mxu0 %v700
      %v748 = vpop.f32.mrf.mxu0
      %v749 = vadd.f32 0.0, %v748
      %v750 = vpop.f32.mrf.mxu0
      %v751 = vadd.f32 0.0, %v750
      %752 = vmatmul.bf16.gmra.mxu0 %v703
      %v753 = vpop.f32.mrf.mxu0
      %v754 = vadd.f32 0.0, %v753
      %v755 = vpop.f32.mrf.mxu0
      %v756 = vadd.f32 0.0, %v755
      %757 = vmatmul.bf16.gmra.mxu0 %v706
      %v758 = vpop.f32.mrf.mxu0
      %v759 = vadd.f32 0.0, %v758
      %v760 = vpop.f32.mrf.mxu0
      %v761 = vadd.f32 0.0, %v760
      %762 = vmatmul.bf16.gmra.mxu0 %v709
      %v763 = vpop.f32.mrf.mxu0
      %v764 = vadd.f32 0.0, %v763
      %v765 = vpop.f32.mrf.mxu0
      %v766 = vadd.f32 0.0, %v765
      %767 = vmatmul.bf16.gmra.mxu0 %v712
      %v768 = vpop.f32.mrf.mxu0
      %v769 = vadd.f32 0.0, %v768
      %v770 = vpop.f32.mrf.mxu0
      %v771 = vadd.f32 0.0, %v770
      %772 = vmatmul.bf16.gmra.mxu0 %v715
      %v773 = vpop.f32.mrf.mxu0
      %v774 = vadd.f32 0.0, %v773
      %v775 = vpop.f32.mrf.mxu0
      %v776 = vadd.f32 0.0, %v775
      %777 = vmatmul.bf16.gmra.mxu0 %v718
      %v778 = vpop.f32.mrf.mxu0
      %v779 = vadd.f32 0.0, %v778
      %v780 = vpop.f32.mrf.mxu0
      %v781 = vadd.f32 0.0, %v780
      %782 = vdwg.mxu0
      %v803 = vunpack.c.l.b16 %v383
      %v804 = vunpack.c.l.b16 %v384
      %v805 = vunpack.c.l.b16 %v385
      %v806 = vunpack.c.l.b16 %v386
      %v807 = vunpack.c.l.b16 %v387
      %v808 = vunpack.c.l.b16 %v388
      %v809 = vunpack.c.l.b16 %v389
      %v810 = vunpack.c.l.b16 %v390
      %v811 = vunpack.c.l.b16 %v391
      %v812 = vunpack.c.l.b16 %v392
      %v813 = vunpack.c.l.b16 %v393
      %v814 = vunpack.c.l.b16 %v394
      %v815 = vunpack.c.l.b16 %v395
      %v816 = vunpack.c.l.b16 %v396
      %v817 = vunpack.c.l.b16 %v397
      %v818 = vunpack.c.l.b16 %v398
      %v819 = vunpack.c.l.b16 %v399
      %v820 = vunpack.c.l.b16 %v400
      %v821 = vunpack.c.l.b16 %v401
      %v822 = vunpack.c.l.b16 %v402
      %v823 = vpack.c.b16 %v804, %v803
      %v824 = vpack.c.b16 %v806, %v805
      %v825 = vpack.c.b16 %v808, %v807
      %v826 = vpack.c.b16 %v810, %v809
      %v827 = vpack.c.b16 %v812, %v811
      %v828 = vpack.c.b16 %v814, %v813
      %v829 = vpack.c.b16 %v816, %v815
      %v830 = vpack.c.b16 %v818, %v817
      %v831 = vpack.c.b16 %v820, %v819
      %v832 = vpack.c.b16 %v822, %v821
      %v834 = vsel %vm689, %v823, 0
      %v837 = vsel %vm689, %v824, 0
      %v840 = vsel %vm689, %v825, 0
      %v843 = vsel %vm689, %v826, 0
      %v846 = vsel %vm689, %v827, 0
      %v849 = vsel %vm689, %v828, 0
      %v852 = vsel %vm689, %v829, 0
      %v855 = vsel %vm689, %v830, 0
      %v858 = vsel %vm689, %v831, 0
      %v861 = vsel %vm689, %v832, 0
      %v864 = vsel %vm720, %v403, 0
      %866 = vmatpush.bf16.msra.mxu0 0
      %867 = vmatpush.bf16.msra.mxu0 0
      %868 = vmatpush.bf16.msra.mxu0 0
      %869 = vmatpush.bf16.msra.mxu0 0
      %870 = vmatpush.bf16.msra.mxu0 0
      %871 = vmatpush.bf16.msra.mxu0 0
      %872 = vmatpush.bf16.msra.mxu0 0
      %873 = vmatpush.bf16.msra.mxu0 %v864
      %874 = vmatmul.bf16.gmra.mxu0 %v834
      %v875 = vpop.f32.mrf.mxu0
      %v876 = vadd.f32 %v734, %v875
      %v877 = vpop.f32.mrf.mxu0
      %v878 = vadd.f32 %v736, %v877
      %879 = vmatmul.bf16.gmra.mxu0 %v837
      %v880 = vpop.f32.mrf.mxu0
      %v881 = vadd.f32 %v739, %v880
      %v882 = vpop.f32.mrf.mxu0
      %v883 = vadd.f32 %v741, %v882
      %884 = vmatmul.bf16.gmra.mxu0 %v840
      %v885 = vpop.f32.mrf.mxu0
      %v886 = vadd.f32 %v744, %v885
      %v887 = vpop.f32.mrf.mxu0
      %v888 = vadd.f32 %v746, %v887
      %889 = vmatmul.bf16.gmra.mxu0 %v843
      %v890 = vpop.f32.mrf.mxu0
      %v891 = vadd.f32 %v749, %v890
      %v892 = vpop.f32.mrf.mxu0
      %v893 = vadd.f32 %v751, %v892
      %894 = vmatmul.bf16.gmra.mxu0 %v846
      %v895 = vpop.f32.mrf.mxu0
      %v896 = vadd.f32 %v754, %v895
      %v897 = vpop.f32.mrf.mxu0
      %v898 = vadd.f32 %v756, %v897
      %899 = vmatmul.bf16.gmra.mxu0 %v849
      %v900 = vpop.f32.mrf.mxu0
      %v901 = vadd.f32 %v759, %v900
      %v902 = vpop.f32.mrf.mxu0
      %v903 = vadd.f32 %v761, %v902
      %904 = vmatmul.bf16.gmra.mxu0 %v852
      %v905 = vpop.f32.mrf.mxu0
      %v906 = vadd.f32 %v764, %v905
      %v907 = vpop.f32.mrf.mxu0
      %v908 = vadd.f32 %v766, %v907
      %909 = vmatmul.bf16.gmra.mxu0 %v855
      %v910 = vpop.f32.mrf.mxu0
      %v911 = vadd.f32 %v769, %v910
      %v912 = vpop.f32.mrf.mxu0
      %v913 = vadd.f32 %v771, %v912
      %914 = vmatmul.bf16.gmra.mxu0 %v858
      %v915 = vpop.f32.mrf.mxu0
      %v916 = vadd.f32 %v774, %v915
      %v917 = vpop.f32.mrf.mxu0
      %v918 = vadd.f32 %v776, %v917
      %919 = vmatmul.bf16.gmra.mxu0 %v861
      %v920 = vpop.f32.mrf.mxu0
      %v921 = vadd.f32 %v779, %v920
      %v922 = vpop.f32.mrf.mxu0
      %v923 = vadd.f32 %v781, %v922
      %924 = vdwg.mxu0
      %v925 = vld [vmem:[%s358] sm:$0xe]
      %v926 = vld [vmem:[%s358 + $0xc] sm:$0xe]
      %v927 = vld [vmem:[%s358 + $0x18] sm:$0xe]
      %v928 = vld [vmem:[%s358 + $0x24] sm:$0xe]
      %v929 = vld [vmem:[%s358 + $0x30] sm:$0xe]
      %v930 = vld [vmem:[%s358 + $0x3c] sm:$0xe]
      %v931 = vld [vmem:[%s358 + $0x48] sm:$0xe]
      %v932 = vld [vmem:[%s358 + $0x54] sm:$0xe]
      %v933 = vld [vmem:[%s358 + $0x60] sm:$0xe]
      %v934 = vld [vmem:[%s358 + $0x6c] sm:$0xe]
      %vm955 = vcmask 1042432
      %vm956 = vcmask 1046532
      %vm957 = vmor %vm955, %vm956
      %v958 = vrot.slane %v925, 5
      %v959 = vrot.slane %v958, 4
      %v960 = vrot.slane %v384, 5
      %v961 = vsel %vm957, %v959, %v960
      %v962 = vrot.slane %v960, 4
      %v963 = vrot.slane %v404, 5
      %v964 = vsel %vm957, %v962, %v963
      %v965 = vrot.slane %v926, 5
      %v966 = vrot.slane %v965, 4
      %v967 = vrot.slane %v386, 5
      %v968 = vsel %vm957, %v966, %v967
      %v969 = vrot.slane %v967, 4
      %v970 = vrot.slane %v405, 5
      %v971 = vsel %vm957, %v969, %v970
      %v972 = vrot.slane %v927, 5
      %v973 = vrot.slane %v972, 4
      %v974 = vrot.slane %v388, 5
      %v975 = vsel %vm957, %v973, %v974
      %v976 = vrot.slane %v974, 4
      %v977 = vrot.slane %v406, 5
      %v978 = vsel %vm957, %v976, %v977
      %v979 = vrot.slane %v928, 5
      %v980 = vrot.slane %v979, 4
      %v981 = vrot.slane %v390, 5
      %v982 = vsel %vm957, %v980, %v981
      %v983 = vrot.slane %v981, 4
      %v984 = vrot.slane %v407, 5
      %v985 = vsel %vm957, %v983, %v984
      %v986 = vrot.slane %v929, 5
      %v987 = vrot.slane %v986, 4
      %v988 = vrot.slane %v392, 5
      %v989 = vsel %vm957, %v987, %v988
      %v990 = vrot.slane %v988, 4
      %v991 = vrot.slane %v408, 5
      %v992 = vsel %vm957, %v990, %v991
      %v993 = vrot.slane %v930, 5
      %v994 = vrot.slane %v993, 4
      %v995 = vrot.slane %v394, 5
      %v996 = vsel %vm957, %v994, %v995
      %v997 = vrot.slane %v995, 4
      %v998 = vrot.slane %v409, 5
      %v999 = vsel %vm957, %v997, %v998
      %v1000 = vrot.slane %v931, 5
      %v1001 = vrot.slane %v1000, 4
      %v1002 = vrot.slane %v396, 5
      %v1003 = vsel %vm957, %v1001, %v1002
      %v1004 = vrot.slane %v1002, 4
      %v1005 = vrot.slane %v410, 5
      %v1006 = vsel %vm957, %v1004, %v1005
      %v1007 = vrot.slane %v932, 5
      %v1008 = vrot.slane %v1007, 4
      %v1009 = vrot.slane %v398, 5
      %v1010 = vsel %vm957, %v1008, %v1009
      %v1011 = vrot.slane %v1009, 4
      %v1012 = vrot.slane %v411, 5
      %v1013 = vsel %vm957, %v1011, %v1012
      %v1014 = vrot.slane %v933, 5
      %v1015 = vrot.slane %v1014, 4
      %v1016 = vrot.slane %v400, 5
      %v1017 = vsel %vm957, %v1015, %v1016
      %v1018 = vrot.slane %v1016, 4
      %v1019 = vrot.slane %v412, 5
      %v1020 = vsel %vm957, %v1018, %v1019
      %v1021 = vrot.slane %v934, 5
      %v1022 = vrot.slane %v1021, 4
      %v1023 = vrot.slane %v402, 5
      %v1024 = vsel %vm957, %v1022, %v1023
      %v1025 = vrot.slane %v1023, 4
      %v1026 = vrot.slane %v413, 5
      %v1027 = vsel %vm957, %v1025, %v1026
      %s1028 = scalar_lea.vmem %s2, 4
      %v1029 = vld [vmem:[%s1028] sm:$0x3]
      %v1030 = vunpack.c.l.b16 %v961
      %v1031 = vunpack.c.l.b16 %v964
      %v1032 = vunpack.c.l.b16 %v968
      %v1033 = vunpack.c.l.b16 %v971
      %v1034 = vunpack.c.l.b16 %v975
      %v1035 = vunpack.c.l.b16 %v978
      %v1036 = vunpack.c.l.b16 %v982
      %v1037 = vunpack.c.l.b16 %v985
      %v1038 = vunpack.c.l.b16 %v989
      %v1039 = vunpack.c.l.b16 %v992
      %v1040 = vunpack.c.l.b16 %v996
      %v1041 = vunpack.c.l.b16 %v999
      %v1042 = vunpack.c.l.b16 %v1003
      %v1043 = vunpack.c.l.b16 %v1006
      %v1044 = vunpack.c.l.b16 %v1010
      %v1045 = vunpack.c.l.b16 %v1013
      %v1046 = vunpack.c.l.b16 %v1017
      %v1047 = vunpack.c.l.b16 %v1020
      %v1048 = vunpack.c.l.b16 %v1024
      %v1049 = vunpack.c.l.b16 %v1027
      %v1050 = vpack.c.b16 %v1031, %v1030
      %v1051 = vpack.c.b16 %v1033, %v1032
      %v1052 = vpack.c.b16 %v1035, %v1034
      %v1053 = vpack.c.b16 %v1037, %v1036
      %v1054 = vpack.c.b16 %v1039, %v1038
      %v1055 = vpack.c.b16 %v1041, %v1040
      %v1056 = vpack.c.b16 %v1043, %v1042
      %v1057 = vpack.c.b16 %v1045, %v1044
      %v1058 = vpack.c.b16 %v1047, %v1046
      %v1059 = vpack.c.b16 %v1049, %v1048
      %v1061 = vsel %vm689, %v1050, 0
      %v1064 = vsel %vm689, %v1051, 0
      %v1067 = vsel %vm689, %v1052, 0
      %v1070 = vsel %vm689, %v1053, 0
      %v1073 = vsel %vm689, %v1054, 0
      %v1076 = vsel %vm689, %v1055, 0
      %v1079 = vsel %vm689, %v1056, 0
      %v1082 = vsel %vm689, %v1057, 0
      %v1085 = vsel %vm689, %v1058, 0
      %v1088 = vsel %vm689, %v1059, 0
      %v1091 = vsel %vm720, %v1029, 0
      %1093 = vmatpush.bf16.msra.mxu0 0
      %1094 = vmatpush.bf16.msra.mxu0 0
      %1095 = vmatpush.bf16.msra.mxu0 0
      %1096 = vmatpush.bf16.msra.mxu0 0
      %1097 = vmatpush.bf16.msra.mxu0 0
      %1098 = vmatpush.bf16.msra.mxu0 0
      %1099 = vmatpush.bf16.msra.mxu0 0
      %1100 = vmatpush.bf16.msra.mxu0 %v1091
      %1101 = vmatmul.bf16.gmra.mxu0 %v1061
      %v1102 = vpop.f32.mrf.mxu0
      %v1103 = vadd.f32 0.0, %v1102
      %v1104 = vpop.f32.mrf.mxu0
      %v1105 = vadd.f32 0.0, %v1104
      %1106 = vmatmul.bf16.gmra.mxu0 %v1064
      %v1107 = vpop.f32.mrf.mxu0
      %v1108 = vadd.f32 0.0, %v1107
      %v1109 = vpop.f32.mrf.mxu0
      %v1110 = vadd.f32 0.0, %v1109
      %1111 = vmatmul.bf16.gmra.mxu0 %v1067
      %v1112 = vpop.f32.mrf.mxu0
      %v1113 = vadd.f32 0.0, %v1112
      %v1114 = vpop.f32.mrf.mxu0
      %v1115 = vadd.f32 0.0, %v1114
      %1116 = vmatmul.bf16.gmra.mxu0 %v1070
      %v1117 = vpop.f32.mrf.mxu0
      %v1118 = vadd.f32 0.0, %v1117
      %v1119 = vpop.f32.mrf.mxu0
      %v1120 = vadd.f32 0.0, %v1119
      %1121 = vmatmul.bf16.gmra.mxu0 %v1073
      %v1122 = vpop.f32.mrf.mxu0
      %v1123 = vadd.f32 0.0, %v1122
      %v1124 = vpop.f32.mrf.mxu0
      %v1125 = vadd.f32 0.0, %v1124
      %1126 = vmatmul.bf16.gmra.mxu0 %v1076
      %v1127 = vpop.f32.mrf.mxu0
      %v1128 = vadd.f32 0.0, %v1127
      %v1129 = vpop.f32.mrf.mxu0
      %v1130 = vadd.f32 0.0, %v1129
      %1131 = vmatmul.bf16.gmra.mxu0 %v1079
      %v1132 = vpop.f32.mrf.mxu0
      %v1133 = vadd.f32 0.0, %v1132
      %v1134 = vpop.f32.mrf.mxu0
      %v1135 = vadd.f32 0.0, %v1134
      %1136 = vmatmul.bf16.gmra.mxu0 %v1082
      %v1137 = vpop.f32.mrf.mxu0
      %v1138 = vadd.f32 0.0, %v1137
      %v1139 = vpop.f32.mrf.mxu0
      %v1140 = vadd.f32 0.0, %v1139
      %1141 = vmatmul.bf16.gmra.mxu0 %v1085
      %v1142 = vpop.f32.mrf.mxu0
      %v1143 = vadd.f32 0.0, %v1142
      %v1144 = vpop.f32.mrf.mxu0
      %v1145 = vadd.f32 0.0, %v1144
      %1146 = vmatmul.bf16.gmra.mxu0 %v1088
      %v1147 = vpop.f32.mrf.mxu0
      %v1148 = vadd.f32 0.0, %v1147
      %v1149 = vpop.f32.mrf.mxu0
      %v1150 = vadd.f32 0.0, %v1149
      %1151 = vdwg.mxu0
      %v1152 = vadd.f32 %v876, %v1103
      %v1153 = vadd.f32 %v878, %v1105
      %v1154 = vadd.f32 %v881, %v1108
      %v1155 = vadd.f32 %v883, %v1110
      %v1156 = vadd.f32 %v886, %v1113
      %v1157 = vadd.f32 %v888, %v1115
      %v1158 = vadd.f32 %v891, %v1118
      %v1159 = vadd.f32 %v893, %v1120
      %v1160 = vadd.f32 %v896, %v1123
      %v1161 = vadd.f32 %v898, %v1125
      %v1162 = vadd.f32 %v901, %v1128
      %v1163 = vadd.f32 %v903, %v1130
      %v1164 = vadd.f32 %v906, %v1133
      %v1165 = vadd.f32 %v908, %v1135
      %v1166 = vadd.f32 %v911, %v1138
      %v1167 = vadd.f32 %v913, %v1140
      %v1168 = vadd.f32 %v916, %v1143
      %v1169 = vadd.f32 %v918, %v1145
      %v1170 = vadd.f32 %v921, %v1148
      %v1171 = vadd.f32 %v923, %v1150
      %s1172 = scalar_lea.vmem %s358, 12
      %v1173 = vld [vmem:[%s1172] sm:$0xf]
      %v1174 = vld [vmem:[%s1172 + $0x4] sm:$0xf]
      %v1175 = vld [vmem:[%s1172 + $0xc] sm:$0xf]
      %v1176 = vld [vmem:[%s1172 + $0x10] sm:$0xf]
      %v1177 = vld [vmem:[%s1172 + $0x18] sm:$0xf]
      %v1178 = vld [vmem:[%s1172 + $0x1c] sm:$0xf]
      %v1179 = vld [vmem:[%s1172 + $0x24] sm:$0xf]
      %v1180 = vld [vmem:[%s1172 + $0x28] sm:$0xf]
      %v1181 = vld [vmem:[%s1172 + $0x30] sm:$0xf]
      %v1182 = vld [vmem:[%s1172 + $0x34] sm:$0xf]
      %v1183 = vld [vmem:[%s1172 + $0x3c] sm:$0xf]
      %v1184 = vld [vmem:[%s1172 + $0x40] sm:$0xf]
      %v1185 = vld [vmem:[%s1172 + $0x48] sm:$0xf]
      %v1186 = vld [vmem:[%s1172 + $0x4c] sm:$0xf]
      %v1187 = vld [vmem:[%s1172 + $0x54] sm:$0xf]
      %v1188 = vld [vmem:[%s1172 + $0x58] sm:$0xf]
      %v1189 = vld [vmem:[%s1172 + $0x60] sm:$0xf]
      %v1190 = vld [vmem:[%s1172 + $0x64] sm:$0xf]
      %v1191 = vld [vmem:[%s1172 + $0x6c] sm:$0xf]
      %v1192 = vld [vmem:[%s1172 + $0x70] sm:$0xf]
      %s1193 = scalar_lea.vmem %s2, 6
      %v1194 = vld [vmem:[%s1193] sm:$0x3]
      %v1215 = vunpack.c.l.b16 %v1173
      %v1216 = vunpack.c.l.b16 %v1174
      %v1217 = vunpack.c.l.b16 %v1175
      %v1218 = vunpack.c.l.b16 %v1176
      %v1219 = vunpack.c.l.b16 %v1177
      %v1220 = vunpack.c.l.b16 %v1178
      %v1221 = vunpack.c.l.b16 %v1179
      %v1222 = vunpack.c.l.b16 %v1180
      %v1223 = vunpack.c.l.b16 %v1181
      %v1224 = vunpack.c.l.b16 %v1182
      %v1225 = vunpack.c.l.b16 %v1183
      %v1226 = vunpack.c.l.b16 %v1184
      %v1227 = vunpack.c.l.b16 %v1185
      %v1228 = vunpack.c.l.b16 %v1186
      %v1229 = vunpack.c.l.b16 %v1187
      %v1230 = vunpack.c.l.b16 %v1188
      %v1231 = vunpack.c.l.b16 %v1189
      %v1232 = vunpack.c.l.b16 %v1190
      %v1233 = vunpack.c.l.b16 %v1191
      %v1234 = vunpack.c.l.b16 %v1192
      %v1235 = vpack.c.b16 %v1216, %v1215
      %v1236 = vpack.c.b16 %v1218, %v1217
      %v1237 = vpack.c.b16 %v1220, %v1219
      %v1238 = vpack.c.b16 %v1222, %v1221
      %v1239 = vpack.c.b16 %v1224, %v1223
      %v1240 = vpack.c.b16 %v1226, %v1225
      %v1241 = vpack.c.b16 %v1228, %v1227
      %v1242 = vpack.c.b16 %v1230, %v1229
      %v1243 = vpack.c.b16 %v1232, %v1231
      %v1244 = vpack.c.b16 %v1234, %v1233
      %v1246 = vsel %vm689, %v1235, 0
      %v1249 = vsel %vm689, %v1236, 0
      %v1252 = vsel %vm689, %v1237, 0
      %v1255 = vsel %vm689, %v1238, 0
      %v1258 = vsel %vm689, %v1239, 0
      %v1261 = vsel %vm689, %v1240, 0
      %v1264 = vsel %vm689, %v1241, 0
      %v1267 = vsel %vm689, %v1242, 0
      %v1270 = vsel %vm689, %v1243, 0
      %v1273 = vsel %vm689, %v1244, 0
      %v1276 = vsel %vm720, %v1194, 0
      %1278 = vmatpush.bf16.msra.mxu0 0
      %1279 = vmatpush.bf16.msra.mxu0 0
      %1280 = vmatpush.bf16.msra.mxu0 0
      %1281 = vmatpush.bf16.msra.mxu0 0
      %1282 = vmatpush.bf16.msra.mxu0 0
      %1283 = vmatpush.bf16.msra.mxu0 0
      %1284 = vmatpush.bf16.msra.mxu0 0
      %1285 = vmatpush.bf16.msra.mxu0 %v1276
      %1286 = vmatmul.bf16.gmra.mxu0 %v1246
      %v1287 = vpop.f32.mrf.mxu0
      %v1288 = vadd.f32 0.0, %v1287
      %v1289 = vpop.f32.mrf.mxu0
      %v1290 = vadd.f32 0.0, %v1289
      %1291 = vmatmul.bf16.gmra.mxu0 %v1249
      %v1292 = vpop.f32.mrf.mxu0
      %v1293 = vadd.f32 0.0, %v1292
      %v1294 = vpop.f32.mrf.mxu0
      %v1295 = vadd.f32 0.0, %v1294
      %1296 = vmatmul.bf16.gmra.mxu0 %v1252
      %v1297 = vpop.f32.mrf.mxu0
      %v1298 = vadd.f32 0.0, %v1297
      %v1299 = vpop.f32.mrf.mxu0
      %v1300 = vadd.f32 0.0, %v1299
      %1301 = vmatmul.bf16.gmra.mxu0 %v1255
      %v1302 = vpop.f32.mrf.mxu0
      %v1303 = vadd.f32 0.0, %v1302
      %v1304 = vpop.f32.mrf.mxu0
      %v1305 = vadd.f32 0.0, %v1304
      %1306 = vmatmul.bf16.gmra.mxu0 %v1258
      %v1307 = vpop.f32.mrf.mxu0
      %v1308 = vadd.f32 0.0, %v1307
      %v1309 = vpop.f32.mrf.mxu0
      %v1310 = vadd.f32 0.0, %v1309
      %1311 = vmatmul.bf16.gmra.mxu0 %v1261
      %v1312 = vpop.f32.mrf.mxu0
      %v1313 = vadd.f32 0.0, %v1312
      %v1314 = vpop.f32.mrf.mxu0
      %v1315 = vadd.f32 0.0, %v1314
      %1316 = vmatmul.bf16.gmra.mxu0 %v1264
      %v1317 = vpop.f32.mrf.mxu0
      %v1318 = vadd.f32 0.0, %v1317
      %v1319 = vpop.f32.mrf.mxu0
      %v1320 = vadd.f32 0.0, %v1319
      %1321 = vmatmul.bf16.gmra.mxu0 %v1267
      %v1322 = vpop.f32.mrf.mxu0
      %v1323 = vadd.f32 0.0, %v1322
      %v1324 = vpop.f32.mrf.mxu0
      %v1325 = vadd.f32 0.0, %v1324
      %1326 = vmatmul.bf16.gmra.mxu0 %v1270
      %v1327 = vpop.f32.mrf.mxu0
      %v1328 = vadd.f32 0.0, %v1327
      %v1329 = vpop.f32.mrf.mxu0
      %v1330 = vadd.f32 0.0, %v1329
      %1331 = vmatmul.bf16.gmra.mxu0 %v1273
      %v1332 = vpop.f32.mrf.mxu0
      %v1333 = vadd.f32 0.0, %v1332
      %v1334 = vpop.f32.mrf.mxu0
      %v1335 = vadd.f32 0.0, %v1334
      %1336 = vdwg.mxu0
      %v1337 = vadd.f32 %v1152, %v1288
      %v1338 = vadd.f32 %v1153, %v1290
      %v1339 = vadd.f32 %v1154, %v1293
      %v1340 = vadd.f32 %v1155, %v1295
      %v1341 = vadd.f32 %v1156, %v1298
      %v1342 = vadd.f32 %v1157, %v1300
      %v1343 = vadd.f32 %v1158, %v1303
      %v1344 = vadd.f32 %v1159, %v1305
      %v1345 = vadd.f32 %v1160, %v1308
      %v1346 = vadd.f32 %v1161, %v1310
      %v1347 = vadd.f32 %v1162, %v1313
      %v1348 = vadd.f32 %v1163, %v1315
      %v1349 = vadd.f32 %v1164, %v1318
      %v1350 = vadd.f32 %v1165, %v1320
      %v1351 = vadd.f32 %v1166, %v1323
      %v1352 = vadd.f32 %v1167, %v1325
      %v1353 = vadd.f32 %v1168, %v1328
      %v1354 = vadd.f32 %v1169, %v1330
      %v1355 = vadd.f32 %v1170, %v1333
      %v1356 = vadd.f32 %v1171, %v1335
      %v1357 = vld [vmem:[%s1172] sm:$0xf]
      %v1358 = vld [vmem:[%s1172 + $0x4] sm:$0xf]
      %v1359 = vld [vmem:[%s1172 + $0x8] sm:$0x1]
      %v1360 = vld [vmem:[%s1172 + $0xc] sm:$0xf]
      %v1361 = vld [vmem:[%s1172 + $0x10] sm:$0xf]
      %v1362 = vld [vmem:[%s1172 + $0x14] sm:$0x1]
      %v1363 = vld [vmem:[%s1172 + $0x18] sm:$0xf]
      %v1364 = vld [vmem:[%s1172 + $0x1c] sm:$0xf]
      %v1365 = vld [vmem:[%s1172 + $0x20] sm:$0x1]
      %v1366 = vld [vmem:[%s1172 + $0x24] sm:$0xf]
      %v1367 = vld [vmem:[%s1172 + $0x28] sm:$0xf]
      %v1368 = vld [vmem:[%s1172 + $0x2c] sm:$0x1]
      %v1369 = vld [vmem:[%s1172 + $0x30] sm:$0xf]
      %v1370 = vld [vmem:[%s1172 + $0x34] sm:$0xf]
      %v1371 = vld [vmem:[%s1172 + $0x38] sm:$0x1]
      %v1372 = vld [vmem:[%s1172 + $0x3c] sm:$0xf]
      %v1373 = vld [vmem:[%s1172 + $0x40] sm:$0xf]
      %v1374 = vld [vmem:[%s1172 + $0x44] sm:$0x1]
      %v1375 = vld [vmem:[%s1172 + $0x48] sm:$0xf]
      %v1376 = vld [vmem:[%s1172 + $0x4c] sm:$0xf]
      %v1377 = vld [vmem:[%s1172 + $0x50] sm:$0x1]
      %v1378 = vld [vmem:[%s1172 + $0x54] sm:$0xf]
      %v1379 = vld [vmem:[%s1172 + $0x58] sm:$0xf]
      %v1380 = vld [vmem:[%s1172 + $0x5c] sm:$0x1]
      %v1381 = vld [vmem:[%s1172 + $0x60] sm:$0xf]
      %v1382 = vld [vmem:[%s1172 + $0x64] sm:$0xf]
      %v1383 = vld [vmem:[%s1172 + $0x68] sm:$0x1]
      %v1384 = vld [vmem:[%s1172 + $0x6c] sm:$0xf]
      %v1385 = vld [vmem:[%s1172 + $0x70] sm:$0xf]
      %v1386 = vld [vmem:[%s1172 + $0x74] sm:$0x1]
      %v1388 = vshrl.u32 %v1357, 16
      %v1390 = vrot.slane %v1388, 4
      %v1391 = vshll.u32 %v1357, 16
      %v1393 = vrot.slane %v1391, 5
      %v1394 = vor.u32 %v1390, %v1393
      %v1395 = vrot.slane %v1394, 4
      %v1397 = vshll.u32 %v1358, 16
      %v1399 = vrot.slane %v1397, 5
      %v1400 = vsel %vm416, %v1395, %v1399
      %v1401 = vshrl.u32 %v1358, 16
      %v1403 = vrot.slane %v1401, 4
      %v1404 = vor.u32 %v1403, %v1399
      %v1405 = vrot.slane %v1404, 4
      %v1407 = vshll.u32 %v1359, 16
      %v1409 = vrot.slane %v1407, 5
      %v1410 = vsel %vm416, %v1405, %v1409
      %v1412 = vshrl.u32 %v1360, 16
      %v1414 = vrot.slane %v1412, 4
      %v1415 = vshll.u32 %v1360, 16
      %v1417 = vrot.slane %v1415, 5
      %v1418 = vor.u32 %v1414, %v1417
      %v1419 = vrot.slane %v1418, 4
      %v1421 = vshll.u32 %v1361, 16
      %v1423 = vrot.slane %v1421, 5
      %v1424 = vsel %vm416, %v1419, %v1423
      %v1425 = vshrl.u32 %v1361, 16
      %v1427 = vrot.slane %v1425, 4
      %v1428 = vor.u32 %v1427, %v1423
      %v1429 = vrot.slane %v1428, 4
      %v1431 = vshll.u32 %v1362, 16
      %v1433 = vrot.slane %v1431, 5
      %v1434 = vsel %vm416, %v1429, %v1433
      %v1436 = vshrl.u32 %v1363, 16
      %v1438 = vrot.slane %v1436, 4
      %v1439 = vshll.u32 %v1363, 16
      %v1441 = vrot.slane %v1439, 5
      %v1442 = vor.u32 %v1438, %v1441
      %v1443 = vrot.slane %v1442, 4
      %v1445 = vshll.u32 %v1364, 16
      %v1447 = vrot.slane %v1445, 5
      %v1448 = vsel %vm416, %v1443, %v1447
      %v1449 = vshrl.u32 %v1364, 16
      %v1451 = vrot.slane %v1449, 4
      %v1452 = vor.u32 %v1451, %v1447
      %v1453 = vrot.slane %v1452, 4
      %v1455 = vshll.u32 %v1365, 16
      %v1457 = vrot.slane %v1455, 5
      %v1458 = vsel %vm416, %v1453, %v1457
      %v1460 = vshrl.u32 %v1366, 16
      %v1462 = vrot.slane %v1460, 4
      %v1463 = vshll.u32 %v1366, 16
      %v1465 = vrot.slane %v1463, 5
      %v1466 = vor.u32 %v1462, %v1465
      %v1467 = vrot.slane %v1466, 4
      %v1469 = vshll.u32 %v1367, 16
      %v1471 = vrot.slane %v1469, 5
      %v1472 = vsel %vm416, %v1467, %v1471
      %v1473 = vshrl.u32 %v1367, 16
      %v1475 = vrot.slane %v1473, 4
      %v1476 = vor.u32 %v1475, %v1471
      %v1477 = vrot.slane %v1476, 4
      %v1479 = vshll.u32 %v1368, 16
      %v1481 = vrot.slane %v1479, 5
      %v1482 = vsel %vm416, %v1477, %v1481
      %v1484 = vshrl.u32 %v1369, 16
      %v1486 = vrot.slane %v1484, 4
      %v1487 = vshll.u32 %v1369, 16
      %v1489 = vrot.slane %v1487, 5
      %v1490 = vor.u32 %v1486, %v1489
      %v1491 = vrot.slane %v1490, 4
      %v1493 = vshll.u32 %v1370, 16
      %v1495 = vrot.slane %v1493, 5
      %v1496 = vsel %vm416, %v1491, %v1495
      %v1497 = vshrl.u32 %v1370, 16
      %v1499 = vrot.slane %v1497, 4
      %v1500 = vor.u32 %v1499, %v1495
      %v1501 = vrot.slane %v1500, 4
      %v1503 = vshll.u32 %v1371, 16
      %v1505 = vrot.slane %v1503, 5
      %v1506 = vsel %vm416, %v1501, %v1505
      %v1508 = vshrl.u32 %v1372, 16
      %v1510 = vrot.slane %v1508, 4
      %v1511 = vshll.u32 %v1372, 16
      %v1513 = vrot.slane %v1511, 5
      %v1514 = vor.u32 %v1510, %v1513
      %v1515 = vrot.slane %v1514, 4
      %v1517 = vshll.u32 %v1373, 16
      %v1519 = vrot.slane %v1517, 5
      %v1520 = vsel %vm416, %v1515, %v1519
      %v1521 = vshrl.u32 %v1373, 16
      %v1523 = vrot.slane %v1521, 4
      %v1524 = vor.u32 %v1523, %v1519
      %v1525 = vrot.slane %v1524, 4
      %v1527 = vshll.u32 %v1374, 16
      %v1529 = vrot.slane %v1527, 5
      %v1530 = vsel %vm416, %v1525, %v1529
      %v1532 = vshrl.u32 %v1375, 16
      %v1534 = vrot.slane %v1532, 4
      %v1535 = vshll.u32 %v1375, 16
      %v1537 = vrot.slane %v1535, 5
      %v1538 = vor.u32 %v1534, %v1537
      %v1539 = vrot.slane %v1538, 4
      %v1541 = vshll.u32 %v1376, 16
      %v1543 = vrot.slane %v1541, 5
      %v1544 = vsel %vm416, %v1539, %v1543
      %v1545 = vshrl.u32 %v1376, 16
      %v1547 = vrot.slane %v1545, 4
      %v1548 = vor.u32 %v1547, %v1543
      %v1549 = vrot.slane %v1548, 4
      %v1551 = vshll.u32 %v1377, 16
      %v1553 = vrot.slane %v1551, 5
      %v1554 = vsel %vm416, %v1549, %v1553
      %v1556 = vshrl.u32 %v1378, 16
      %v1558 = vrot.slane %v1556, 4
      %v1559 = vshll.u32 %v1378, 16
      %v1561 = vrot.slane %v1559, 5
      %v1562 = vor.u32 %v1558, %v1561
      %v1563 = vrot.slane %v1562, 4
      %v1565 = vshll.u32 %v1379, 16
      %v1567 = vrot.slane %v1565, 5
      %v1568 = vsel %vm416, %v1563, %v1567
      %v1569 = vshrl.u32 %v1379, 16
      %v1571 = vrot.slane %v1569, 4
      %v1572 = vor.u32 %v1571, %v1567
      %v1573 = vrot.slane %v1572, 4
      %v1575 = vshll.u32 %v1380, 16
      %v1577 = vrot.slane %v1575, 5
      %v1578 = vsel %vm416, %v1573, %v1577
      %v1580 = vshrl.u32 %v1381, 16
      %v1582 = vrot.slane %v1580, 4
      %v1583 = vshll.u32 %v1381, 16
      %v1585 = vrot.slane %v1583, 5
      %v1586 = vor.u32 %v1582, %v1585
      %v1587 = vrot.slane %v1586, 4
      %v1589 = vshll.u32 %v1382, 16
      %v1591 = vrot.slane %v1589, 5
      %v1592 = vsel %vm416, %v1587, %v1591
      %v1593 = vshrl.u32 %v1382, 16
      %v1595 = vrot.slane %v1593, 4
      %v1596 = vor.u32 %v1595, %v1591
      %v1597 = vrot.slane %v1596, 4
      %v1599 = vshll.u32 %v1383, 16
      %v1601 = vrot.slane %v1599, 5
      %v1602 = vsel %vm416, %v1597, %v1601
      %v1604 = vshrl.u32 %v1384, 16
      %v1606 = vrot.slane %v1604, 4
      %v1607 = vshll.u32 %v1384, 16
      %v1609 = vrot.slane %v1607, 5
      %v1610 = vor.u32 %v1606, %v1609
      %v1611 = vrot.slane %v1610, 4
      %v1613 = vshll.u32 %v1385, 16
      %v1615 = vrot.slane %v1613, 5
      %v1616 = vsel %vm416, %v1611, %v1615
      %v1617 = vshrl.u32 %v1385, 16
      %v1619 = vrot.slane %v1617, 4
      %v1620 = vor.u32 %v1619, %v1615
      %v1621 = vrot.slane %v1620, 4
      %v1623 = vshll.u32 %v1386, 16
      %v1625 = vrot.slane %v1623, 5
      %v1626 = vsel %vm416, %v1621, %v1625
      %s1627 = scalar_lea.vmem %s2, 8
      %v1628 = vld [vmem:[%s1627] sm:$0x3]
      %v1629 = vunpack.c.l.b16 %v1400
      %v1630 = vunpack.c.l.b16 %v1410
      %v1631 = vunpack.c.l.b16 %v1424
      %v1632 = vunpack.c.l.b16 %v1434
      %v1633 = vunpack.c.l.b16 %v1448
      %v1634 = vunpack.c.l.b16 %v1458
      %v1635 = vunpack.c.l.b16 %v1472
      %v1636 = vunpack.c.l.b16 %v1482
      %v1637 = vunpack.c.l.b16 %v1496
      %v1638 = vunpack.c.l.b16 %v1506
      %v1639 = vunpack.c.l.b16 %v1520
      %v1640 = vunpack.c.l.b16 %v1530
      %v1641 = vunpack.c.l.b16 %v1544
      %v1642 = vunpack.c.l.b16 %v1554
      %v1643 = vunpack.c.l.b16 %v1568
      %v1644 = vunpack.c.l.b16 %v1578
      %v1645 = vunpack.c.l.b16 %v1592
      %v1646 = vunpack.c.l.b16 %v1602
      %v1647 = vunpack.c.l.b16 %v1616
      %v1648 = vunpack.c.l.b16 %v1626
      %v1649 = vpack.c.b16 %v1630, %v1629
      %v1650 = vpack.c.b16 %v1632, %v1631
      %v1651 = vpack.c.b16 %v1634, %v1633
      %v1652 = vpack.c.b16 %v1636, %v1635
      %v1653 = vpack.c.b16 %v1638, %v1637
      %v1654 = vpack.c.b16 %v1640, %v1639
      %v1655 = vpack.c.b16 %v1642, %v1641
      %v1656 = vpack.c.b16 %v1644, %v1643
      %v1657 = vpack.c.b16 %v1646, %v1645
      %v1658 = vpack.c.b16 %v1648, %v1647
      %v1660 = vsel %vm689, %v1649, 0
      %v1663 = vsel %vm689, %v1650, 0
      %v1666 = vsel %vm689, %v1651, 0
      %v1669 = vsel %vm689, %v1652, 0
      %v1672 = vsel %vm689, %v1653, 0
      %v1675 = vsel %vm689, %v1654, 0
      %v1678 = vsel %vm689, %v1655, 0
      %v1681 = vsel %vm689, %v1656, 0
      %v1684 = vsel %vm689, %v1657, 0
      %v1687 = vsel %vm689, %v1658, 0
      %v1690 = vsel %vm720, %v1628, 0
      %1692 = vmatpush.bf16.msra.mxu0 0
      %1693 = vmatpush.bf16.msra.mxu0 0
      %1694 = vmatpush.bf16.msra.mxu0 0
      %1695 = vmatpush.bf16.msra.mxu0 0
      %1696 = vmatpush.bf16.msra.mxu0 0
      %1697 = vmatpush.bf16.msra.mxu0 0
      %1698 = vmatpush.bf16.msra.mxu0 0
      %1699 = vmatpush.bf16.msra.mxu0 %v1690
      %1700 = vmatmul.bf16.gmra.mxu0 %v1660
      %v1701 = vpop.f32.mrf.mxu0
      %v1702 = vadd.f32 0.0, %v1701
      %v1703 = vpop.f32.mrf.mxu0
      %v1704 = vadd.f32 0.0, %v1703
      %1705 = vmatmul.bf16.gmra.mxu0 %v1663
      %v1706 = vpop.f32.mrf.mxu0
      %v1707 = vadd.f32 0.0, %v1706
      %v1708 = vpop.f32.mrf.mxu0
      %v1709 = vadd.f32 0.0, %v1708
      %1710 = vmatmul.bf16.gmra.mxu0 %v1666
      %v1711 = vpop.f32.mrf.mxu0
      %v1712 = vadd.f32 0.0, %v1711
      %v1713 = vpop.f32.mrf.mxu0
      %v1714 = vadd.f32 0.0, %v1713
      %1715 = vmatmul.bf16.gmra.mxu0 %v1669
      %v1716 = vpop.f32.mrf.mxu0
      %v1717 = vadd.f32 0.0, %v1716
      %v1718 = vpop.f32.mrf.mxu0
      %v1719 = vadd.f32 0.0, %v1718
      %1720 = vmatmul.bf16.gmra.mxu0 %v1672
      %v1721 = vpop.f32.mrf.mxu0
      %v1722 = vadd.f32 0.0, %v1721
      %v1723 = vpop.f32.mrf.mxu0
      %v1724 = vadd.f32 0.0, %v1723
      %1725 = vmatmul.bf16.gmra.mxu0 %v1675
      %v1726 = vpop.f32.mrf.mxu0
      %v1727 = vadd.f32 0.0, %v1726
      %v1728 = vpop.f32.mrf.mxu0
      %v1729 = vadd.f32 0.0, %v1728
      %1730 = vmatmul.bf16.gmra.mxu0 %v1678
      %v1731 = vpop.f32.mrf.mxu0
      %v1732 = vadd.f32 0.0, %v1731
      %v1733 = vpop.f32.mrf.mxu0
      %v1734 = vadd.f32 0.0, %v1733
      %1735 = vmatmul.bf16.gmra.mxu0 %v1681
      %v1736 = vpop.f32.mrf.mxu0
      %v1737 = vadd.f32 0.0, %v1736
      %v1738 = vpop.f32.mrf.mxu0
      %v1739 = vadd.f32 0.0, %v1738
      %1740 = vmatmul.bf16.gmra.mxu0 %v1684
      %v1741 = vpop.f32.mrf.mxu0
      %v1742 = vadd.f32 0.0, %v1741
      %v1743 = vpop.f32.mrf.mxu0
      %v1744 = vadd.f32 0.0, %v1743
      %1745 = vmatmul.bf16.gmra.mxu0 %v1687
      %v1746 = vpop.f32.mrf.mxu0
      %v1747 = vadd.f32 0.0, %v1746
      %v1748 = vpop.f32.mrf.mxu0
      %v1749 = vadd.f32 0.0, %v1748
      %1750 = vdwg.mxu0
      %v1751 = vadd.f32 %v1337, %v1702
      %v1752 = vadd.f32 %v1338, %v1704
      %v1753 = vadd.f32 %v1339, %v1707
      %v1754 = vadd.f32 %v1340, %v1709
      %v1755 = vadd.f32 %v1341, %v1712
      %v1756 = vadd.f32 %v1342, %v1714
      %v1757 = vadd.f32 %v1343, %v1717
      %v1758 = vadd.f32 %v1344, %v1719
      %v1759 = vadd.f32 %v1345, %v1722
      %v1760 = vadd.f32 %v1346, %v1724
      %v1761 = vadd.f32 %v1347, %v1727
      %v1762 = vadd.f32 %v1348, %v1729
      %v1763 = vadd.f32 %v1349, %v1732
      %v1764 = vadd.f32 %v1350, %v1734
      %v1765 = vadd.f32 %v1351, %v1737
      %v1766 = vadd.f32 %v1352, %v1739
      %v1767 = vadd.f32 %v1353, %v1742
      %v1768 = vadd.f32 %v1354, %v1744
      %v1769 = vadd.f32 %v1355, %v1747
      %v1770 = vadd.f32 %v1356, %v1749
      %v1771 = vld [vmem:[%s1172] sm:$0xe]
      %v1772 = vld [vmem:[%s1172 + $0xc] sm:$0xe]
      %v1773 = vld [vmem:[%s1172 + $0x18] sm:$0xe]
      %v1774 = vld [vmem:[%s1172 + $0x24] sm:$0xe]
      %v1775 = vld [vmem:[%s1172 + $0x30] sm:$0xe]
      %v1776 = vld [vmem:[%s1172 + $0x3c] sm:$0xe]
      %v1777 = vld [vmem:[%s1172 + $0x48] sm:$0xe]
      %v1778 = vld [vmem:[%s1172 + $0x54] sm:$0xe]
      %v1779 = vld [vmem:[%s1172 + $0x60] sm:$0xe]
      %v1780 = vld [vmem:[%s1172 + $0x6c] sm:$0xe]
      %v1811 = vrot.slane %v1771, 5
      %v1812 = vrot.slane %v1811, 4
      %v1813 = vrot.slane %v1358, 5
      %v1814 = vsel %vm957, %v1812, %v1813
      %v1815 = vrot.slane %v1813, 4
      %v1816 = vrot.slane %v1359, 5
      %v1817 = vsel %vm957, %v1815, %v1816
      %v1818 = vrot.slane %v1772, 5
      %v1819 = vrot.slane %v1818, 4
      %v1820 = vrot.slane %v1361, 5
      %v1821 = vsel %vm957, %v1819, %v1820
      %v1822 = vrot.slane %v1820, 4
      %v1823 = vrot.slane %v1362, 5
      %v1824 = vsel %vm957, %v1822, %v1823
      %v1825 = vrot.slane %v1773, 5
      %v1826 = vrot.slane %v1825, 4
      %v1827 = vrot.slane %v1364, 5
      %v1828 = vsel %vm957, %v1826, %v1827
      %v1829 = vrot.slane %v1827, 4
      %v1830 = vrot.slane %v1365, 5
      %v1831 = vsel %vm957, %v1829, %v1830
      %v1832 = vrot.slane %v1774, 5
      %v1833 = vrot.slane %v1832, 4
      %v1834 = vrot.slane %v1367, 5
      %v1835 = vsel %vm957, %v1833, %v1834
      %v1836 = vrot.slane %v1834, 4
      %v1837 = vrot.slane %v1368, 5
      %v1838 = vsel %vm957, %v1836, %v1837
      %v1839 = vrot.slane %v1775, 5
      %v1840 = vrot.slane %v1839, 4
      %v1841 = vrot.slane %v1370, 5
      %v1842 = vsel %vm957, %v1840, %v1841
      %v1843 = vrot.slane %v1841, 4
      %v1844 = vrot.slane %v1371, 5
      %v1845 = vsel %vm957, %v1843, %v1844
      %v1846 = vrot.slane %v1776, 5
      %v1847 = vrot.slane %v1846, 4
      %v1848 = vrot.slane %v1373, 5
      %v1849 = vsel %vm957, %v1847, %v1848
      %v1850 = vrot.slane %v1848, 4
      %v1851 = vrot.slane %v1374, 5
      %v1852 = vsel %vm957, %v1850, %v1851
      %v1853 = vrot.slane %v1777, 5
      %v1854 = vrot.slane %v1853, 4
      %v1855 = vrot.slane %v1376, 5
      %v1856 = vsel %vm957, %v1854, %v1855
      %v1857 = vrot.slane %v1855, 4
      %v1858 = vrot.slane %v1377, 5
      %v1859 = vsel %vm957, %v1857, %v1858
      %v1860 = vrot.slane %v1778, 5
      %v1861 = vrot.slane %v1860, 4
      %v1862 = vrot.slane %v1379, 5
      %v1863 = vsel %vm957, %v1861, %v1862
      %v1864 = vrot.slane %v1862, 4
      %v1865 = vrot.slane %v1380, 5
      %v1866 = vsel %vm957, %v1864, %v1865
      %v1867 = vrot.slane %v1779, 5
      %v1868 = vrot.slane %v1867, 4
      %v1869 = vrot.slane %v1382, 5
      %v1870 = vsel %vm957, %v1868, %v1869
      %v1871 = vrot.slane %v1869, 4
      %v1872 = vrot.slane %v1383, 5
      %v1873 = vsel %vm957, %v1871, %v1872
      %v1874 = vrot.slane %v1780, 5
      %v1875 = vrot.slane %v1874, 4
      %v1876 = vrot.slane %v1385, 5
      %v1877 = vsel %vm957, %v1875, %v1876
      %v1878 = vrot.slane %v1876, 4
      %v1879 = vrot.slane %v1386, 5
      %v1880 = vsel %vm957, %v1878, %v1879
      %s1881 = scalar_lea.vmem %s2, 10
      %v1882 = vld [vmem:[%s1881] sm:$0x3]
      %v1883 = vunpack.c.l.b16 %v1814
      %v1884 = vunpack.c.l.b16 %v1817
      %v1885 = vunpack.c.l.b16 %v1821
      %v1886 = vunpack.c.l.b16 %v1824
      %v1887 = vunpack.c.l.b16 %v1828
      %v1888 = vunpack.c.l.b16 %v1831
      %v1889 = vunpack.c.l.b16 %v1835
      %v1890 = vunpack.c.l.b16 %v1838
      %v1891 = vunpack.c.l.b16 %v1842
      %v1892 = vunpack.c.l.b16 %v1845
      %v1893 = vunpack.c.l.b16 %v1849
      %v1894 = vunpack.c.l.b16 %v1852
      %v1895 = vunpack.c.l.b16 %v1856
      %v1896 = vunpack.c.l.b16 %v1859
      %v1897 = vunpack.c.l.b16 %v1863
      %v1898 = vunpack.c.l.b16 %v1866
      %v1899 = vunpack.c.l.b16 %v1870
      %v1900 = vunpack.c.l.b16 %v1873
      %v1901 = vunpack.c.l.b16 %v1877
      %v1902 = vunpack.c.l.b16 %v1880
      %v1903 = vpack.c.b16 %v1884, %v1883
      %v1904 = vpack.c.b16 %v1886, %v1885
      %v1905 = vpack.c.b16 %v1888, %v1887
      %v1906 = vpack.c.b16 %v1890, %v1889
      %v1907 = vpack.c.b16 %v1892, %v1891
      %v1908 = vpack.c.b16 %v1894, %v1893
      %v1909 = vpack.c.b16 %v1896, %v1895
      %v1910 = vpack.c.b16 %v1898, %v1897
      %v1911 = vpack.c.b16 %v1900, %v1899
      %v1912 = vpack.c.b16 %v1902, %v1901
      %v1914 = vsel %vm689, %v1903, 0
      %v1917 = vsel %vm689, %v1904, 0
      %v1920 = vsel %vm689, %v1905, 0
      %v1923 = vsel %vm689, %v1906, 0
      %v1926 = vsel %vm689, %v1907, 0
      %v1929 = vsel %vm689, %v1908, 0
      %v1932 = vsel %vm689, %v1909, 0
      %v1935 = vsel %vm689, %v1910, 0
      %v1938 = vsel %vm689, %v1911, 0
      %v1941 = vsel %vm689, %v1912, 0
      %v1944 = vsel %vm720, %v1882, 0
      %1946 = vmatpush.bf16.msra.mxu0 0
      %1947 = vmatpush.bf16.msra.mxu0 0
      %1948 = vmatpush.bf16.msra.mxu0 0
      %1949 = vmatpush.bf16.msra.mxu0 0
      %1950 = vmatpush.bf16.msra.mxu0 0
      %1951 = vmatpush.bf16.msra.mxu0 0
      %1952 = vmatpush.bf16.msra.mxu0 0
      %1953 = vmatpush.bf16.msra.mxu0 %v1944
      %1954 = vmatmul.bf16.gmra.mxu0 %v1914
      %v1955 = vpop.f32.mrf.mxu0
      %v1956 = vadd.f32 0.0, %v1955
      %v1957 = vpop.f32.mrf.mxu0
      %v1958 = vadd.f32 0.0, %v1957
      %1959 = vmatmul.bf16.gmra.mxu0 %v1917
      %v1960 = vpop.f32.mrf.mxu0
      %v1961 = vadd.f32 0.0, %v1960
      %v1962 = vpop.f32.mrf.mxu0
      %v1963 = vadd.f32 0.0, %v1962
      %1964 = vmatmul.bf16.gmra.mxu0 %v1920
      %v1965 = vpop.f32.mrf.mxu0
      %v1966 = vadd.f32 0.0, %v1965
      %v1967 = vpop.f32.mrf.mxu0
      %v1968 = vadd.f32 0.0, %v1967
      %1969 = vmatmul.bf16.gmra.mxu0 %v1923
      %v1970 = vpop.f32.mrf.mxu0
      %v1971 = vadd.f32 0.0, %v1970
      %v1972 = vpop.f32.mrf.mxu0
      %v1973 = vadd.f32 0.0, %v1972
      %1974 = vmatmul.bf16.gmra.mxu0 %v1926
      %v1975 = vpop.f32.mrf.mxu0
      %v1976 = vadd.f32 0.0, %v1975
      %v1977 = vpop.f32.mrf.mxu0
      %v1978 = vadd.f32 0.0, %v1977
      %1979 = vmatmul.bf16.gmra.mxu0 %v1929
      %v1980 = vpop.f32.mrf.mxu0
      %v1981 = vadd.f32 0.0, %v1980
      %v1982 = vpop.f32.mrf.mxu0
      %v1983 = vadd.f32 0.0, %v1982
      %1984 = vmatmul.bf16.gmra.mxu0 %v1932
      %v1985 = vpop.f32.mrf.mxu0
      %v1986 = vadd.f32 0.0, %v1985
      %v1987 = vpop.f32.mrf.mxu0
      %v1988 = vadd.f32 0.0, %v1987
      %1989 = vmatmul.bf16.gmra.mxu0 %v1935
      %v1990 = vpop.f32.mrf.mxu0
      %v1991 = vadd.f32 0.0, %v1990
      %v1992 = vpop.f32.mrf.mxu0
      %v1993 = vadd.f32 0.0, %v1992
      %1994 = vmatmul.bf16.gmra.mxu0 %v1938
      %v1995 = vpop.f32.mrf.mxu0
      %v1996 = vadd.f32 0.0, %v1995
      %v1997 = vpop.f32.mrf.mxu0
      %v1998 = vadd.f32 0.0, %v1997
      %1999 = vmatmul.bf16.gmra.mxu0 %v1941
      %v2000 = vpop.f32.mrf.mxu0
      %v2001 = vadd.f32 0.0, %v2000
      %v2002 = vpop.f32.mrf.mxu0
      %v2003 = vadd.f32 0.0, %v2002
      %2004 = vdwg.mxu0
      %v2005 = vadd.f32 %v1751, %v1956
      %v2006 = vadd.f32 %v1752, %v1958
      %v2007 = vadd.f32 %v1753, %v1961
      %v2008 = vadd.f32 %v1754, %v1963
      %v2009 = vadd.f32 %v1755, %v1966
      %v2010 = vadd.f32 %v1756, %v1968
      %v2011 = vadd.f32 %v1757, %v1971
      %v2012 = vadd.f32 %v1758, %v1973
      %v2013 = vadd.f32 %v1759, %v1976
      %v2014 = vadd.f32 %v1760, %v1978
      %v2015 = vadd.f32 %v1761, %v1981
      %v2016 = vadd.f32 %v1762, %v1983
      %v2017 = vadd.f32 %v1763, %v1986
      %v2018 = vadd.f32 %v1764, %v1988
      %v2019 = vadd.f32 %v1765, %v1991
      %v2020 = vadd.f32 %v1766, %v1993
      %v2021 = vadd.f32 %v1767, %v1996
      %v2022 = vadd.f32 %v1768, %v1998
      %v2023 = vadd.f32 %v1769, %v2001
      %v2024 = vadd.f32 %v1770, %v2003
      %s2025 = scalar_lea.vmem %s358, 24
      %v2026 = vld [vmem:[%s2025] sm:$0xf]
      %v2027 = vld [vmem:[%s2025 + $0x4] sm:$0xf]
      %v2028 = vld [vmem:[%s2025 + $0xc] sm:$0xf]
      %v2029 = vld [vmem:[%s2025 + $0x10] sm:$0xf]
      %v2030 = vld [vmem:[%s2025 + $0x18] sm:$0xf]
      %v2031 = vld [vmem:[%s2025 + $0x1c] sm:$0xf]
      %v2032 = vld [vmem:[%s2025 + $0x24] sm:$0xf]
      %v2033 = vld [vmem:[%s2025 + $0x28] sm:$0xf]
      %v2034 = vld [vmem:[%s2025 + $0x30] sm:$0xf]
      %v2035 = vld [vmem:[%s2025 + $0x34] sm:$0xf]
      %v2036 = vld [vmem:[%s2025 + $0x3c] sm:$0xf]
      %v2037 = vld [vmem:[%s2025 + $0x40] sm:$0xf]
      %v2038 = vld [vmem:[%s2025 + $0x48] sm:$0xf]
      %v2039 = vld [vmem:[%s2025 + $0x4c] sm:$0xf]
      %v2040 = vld [vmem:[%s2025 + $0x54] sm:$0xf]
      %v2041 = vld [vmem:[%s2025 + $0x58] sm:$0xf]
      %v2042 = vld [vmem:[%s2025 + $0x60] sm:$0xf]
      %v2043 = vld [vmem:[%s2025 + $0x64] sm:$0xf]
      %v2044 = vld [vmem:[%s2025 + $0x6c] sm:$0xf]
      %v2045 = vld [vmem:[%s2025 + $0x70] sm:$0xf]
      %s2046 = scalar_lea.vmem %s2, 12
      %v2047 = vld [vmem:[%s2046] sm:$0x3]
      %v2068 = vunpack.c.l.b16 %v2026
      %v2069 = vunpack.c.l.b16 %v2027
      %v2070 = vunpack.c.l.b16 %v2028
      %v2071 = vunpack.c.l.b16 %v2029
      %v2072 = vunpack.c.l.b16 %v2030
      %v2073 = vunpack.c.l.b16 %v2031
      %v2074 = vunpack.c.l.b16 %v2032
      %v2075 = vunpack.c.l.b16 %v2033
      %v2076 = vunpack.c.l.b16 %v2034
      %v2077 = vunpack.c.l.b16 %v2035
      %v2078 = vunpack.c.l.b16 %v2036
      %v2079 = vunpack.c.l.b16 %v2037
      %v2080 = vunpack.c.l.b16 %v2038
      %v2081 = vunpack.c.l.b16 %v2039
      %v2082 = vunpack.c.l.b16 %v2040
      %v2083 = vunpack.c.l.b16 %v2041
      %v2084 = vunpack.c.l.b16 %v2042
      %v2085 = vunpack.c.l.b16 %v2043
      %v2086 = vunpack.c.l.b16 %v2044
      %v2087 = vunpack.c.l.b16 %v2045
      %v2088 = vpack.c.b16 %v2069, %v2068
      %v2089 = vpack.c.b16 %v2071, %v2070
      %v2090 = vpack.c.b16 %v2073, %v2072
      %v2091 = vpack.c.b16 %v2075, %v2074
      %v2092 = vpack.c.b16 %v2077, %v2076
      %v2093 = vpack.c.b16 %v2079, %v2078
      %v2094 = vpack.c.b16 %v2081, %v2080
      %v2095 = vpack.c.b16 %v2083, %v2082
      %v2096 = vpack.c.b16 %v2085, %v2084
      %v2097 = vpack.c.b16 %v2087, %v2086
      %v2099 = vsel %vm689, %v2088, 0
      %v2102 = vsel %vm689, %v2089, 0
      %v2105 = vsel %vm689, %v2090, 0
      %v2108 = vsel %vm689, %v2091, 0
      %v2111 = vsel %vm689, %v2092, 0
      %v2114 = vsel %vm689, %v2093, 0
      %v2117 = vsel %vm689, %v2094, 0
      %v2120 = vsel %vm689, %v2095, 0
      %v2123 = vsel %vm689, %v2096, 0
      %v2126 = vsel %vm689, %v2097, 0
      %v2129 = vsel %vm720, %v2047, 0
      %2131 = vmatpush.bf16.msra.mxu0 0
      %2132 = vmatpush.bf16.msra.mxu0 0
      %2133 = vmatpush.bf16.msra.mxu0 0
      %2134 = vmatpush.bf16.msra.mxu0 0
      %2135 = vmatpush.bf16.msra.mxu0 0
      %2136 = vmatpush.bf16.msra.mxu0 0
      %2137 = vmatpush.bf16.msra.mxu0 0
      %2138 = vmatpush.bf16.msra.mxu0 %v2129
      %2139 = vmatmul.bf16.gmra.mxu0 %v2099
      %v2140 = vpop.f32.mrf.mxu0
      %v2141 = vadd.f32 0.0, %v2140
      %v2142 = vpop.f32.mrf.mxu0
      %v2143 = vadd.f32 0.0, %v2142
      %2144 = vmatmul.bf16.gmra.mxu0 %v2102
      %v2145 = vpop.f32.mrf.mxu0
      %v2146 = vadd.f32 0.0, %v2145
      %v2147 = vpop.f32.mrf.mxu0
      %v2148 = vadd.f32 0.0, %v2147
      %2149 = vmatmul.bf16.gmra.mxu0 %v2105
      %v2150 = vpop.f32.mrf.mxu0
      %v2151 = vadd.f32 0.0, %v2150
      %v2152 = vpop.f32.mrf.mxu0
      %v2153 = vadd.f32 0.0, %v2152
      %2154 = vmatmul.bf16.gmra.mxu0 %v2108
      %v2155 = vpop.f32.mrf.mxu0
      %v2156 = vadd.f32 0.0, %v2155
      %v2157 = vpop.f32.mrf.mxu0
      %v2158 = vadd.f32 0.0, %v2157
      %2159 = vmatmul.bf16.gmra.mxu0 %v2111
      %v2160 = vpop.f32.mrf.mxu0
      %v2161 = vadd.f32 0.0, %v2160
      %v2162 = vpop.f32.mrf.mxu0
      %v2163 = vadd.f32 0.0, %v2162
      %2164 = vmatmul.bf16.gmra.mxu0 %v2114
      %v2165 = vpop.f32.mrf.mxu0
      %v2166 = vadd.f32 0.0, %v2165
      %v2167 = vpop.f32.mrf.mxu0
      %v2168 = vadd.f32 0.0, %v2167
      %2169 = vmatmul.bf16.gmra.mxu0 %v2117
      %v2170 = vpop.f32.mrf.mxu0
      %v2171 = vadd.f32 0.0, %v2170
      %v2172 = vpop.f32.mrf.mxu0
      %v2173 = vadd.f32 0.0, %v2172
      %2174 = vmatmul.bf16.gmra.mxu0 %v2120
      %v2175 = vpop.f32.mrf.mxu0
      %v2176 = vadd.f32 0.0, %v2175
      %v2177 = vpop.f32.mrf.mxu0
      %v2178 = vadd.f32 0.0, %v2177
      %2179 = vmatmul.bf16.gmra.mxu0 %v2123
      %v2180 = vpop.f32.mrf.mxu0
      %v2181 = vadd.f32 0.0, %v2180
      %v2182 = vpop.f32.mrf.mxu0
      %v2183 = vadd.f32 0.0, %v2182
      %2184 = vmatmul.bf16.gmra.mxu0 %v2126
      %v2185 = vpop.f32.mrf.mxu0
      %v2186 = vadd.f32 0.0, %v2185
      %v2187 = vpop.f32.mrf.mxu0
      %v2188 = vadd.f32 0.0, %v2187
      %2189 = vdwg.mxu0
      %v2190 = vadd.f32 %v2005, %v2141
      %v2191 = vadd.f32 %v2006, %v2143
      %v2192 = vadd.f32 %v2007, %v2146
      %v2193 = vadd.f32 %v2008, %v2148
      %v2194 = vadd.f32 %v2009, %v2151
      %v2195 = vadd.f32 %v2010, %v2153
      %v2196 = vadd.f32 %v2011, %v2156
      %v2197 = vadd.f32 %v2012, %v2158
      %v2198 = vadd.f32 %v2013, %v2161
      %v2199 = vadd.f32 %v2014, %v2163
      %v2200 = vadd.f32 %v2015, %v2166
      %v2201 = vadd.f32 %v2016, %v2168
      %v2202 = vadd.f32 %v2017, %v2171
      %v2203 = vadd.f32 %v2018, %v2173
      %v2204 = vadd.f32 %v2019, %v2176
      %v2205 = vadd.f32 %v2020, %v2178
      %v2206 = vadd.f32 %v2021, %v2181
      %v2207 = vadd.f32 %v2022, %v2183
      %v2208 = vadd.f32 %v2023, %v2186
      %v2209 = vadd.f32 %v2024, %v2188
      %v2210 = vld [vmem:[%s2025] sm:$0xf]
      %v2211 = vld [vmem:[%s2025 + $0x4] sm:$0xf]
      %v2212 = vld [vmem:[%s2025 + $0x8] sm:$0x1]
      %v2213 = vld [vmem:[%s2025 + $0xc] sm:$0xf]
      %v2214 = vld [vmem:[%s2025 + $0x10] sm:$0xf]
      %v2215 = vld [vmem:[%s2025 + $0x14] sm:$0x1]
      %v2216 = vld [vmem:[%s2025 + $0x18] sm:$0xf]
      %v2217 = vld [vmem:[%s2025 + $0x1c] sm:$0xf]
      %v2218 = vld [vmem:[%s2025 + $0x20] sm:$0x1]
      %v2219 = vld [vmem:[%s2025 + $0x24] sm:$0xf]
      %v2220 = vld [vmem:[%s2025 + $0x28] sm:$0xf]
      %v2221 = vld [vmem:[%s2025 + $0x2c] sm:$0x1]
      %v2222 = vld [vmem:[%s2025 + $0x30] sm:$0xf]
      %v2223 = vld [vmem:[%s2025 + $0x34] sm:$0xf]
      %v2224 = vld [vmem:[%s2025 + $0x38] sm:$0x1]
      %v2225 = vld [vmem:[%s2025 + $0x3c] sm:$0xf]
      %v2226 = vld [vmem:[%s2025 + $0x40] sm:$0xf]
      %v2227 = vld [vmem:[%s2025 + $0x44] sm:$0x1]
      %v2228 = vld [vmem:[%s2025 + $0x48] sm:$0xf]
      %v2229 = vld [vmem:[%s2025 + $0x4c] sm:$0xf]
      %v2230 = vld [vmem:[%s2025 + $0x50] sm:$0x1]
      %v2231 = vld [vmem:[%s2025 + $0x54] sm:$0xf]
      %v2232 = vld [vmem:[%s2025 + $0x58] sm:$0xf]
      %v2233 = vld [vmem:[%s2025 + $0x5c] sm:$0x1]
      %v2234 = vld [vmem:[%s2025 + $0x60] sm:$0xf]
      %v2235 = vld [vmem:[%s2025 + $0x64] sm:$0xf]
      %v2236 = vld [vmem:[%s2025 + $0x68] sm:$0x1]
      %v2237 = vld [vmem:[%s2025 + $0x6c] sm:$0xf]
      %v2238 = vld [vmem:[%s2025 + $0x70] sm:$0xf]
      %v2239 = vld [vmem:[%s2025 + $0x74] sm:$0x1]
      %v2241 = vshrl.u32 %v2210, 16
      %v2243 = vrot.slane %v2241, 4
      %v2244 = vshll.u32 %v2210, 16
      %v2246 = vrot.slane %v2244, 5
      %v2247 = vor.u32 %v2243, %v2246
      %v2248 = vrot.slane %v2247, 4
      %v2250 = vshll.u32 %v2211, 16
      %v2252 = vrot.slane %v2250, 5
      %v2253 = vsel %vm416, %v2248, %v2252
      %v2254 = vshrl.u32 %v2211, 16
      %v2256 = vrot.slane %v2254, 4
      %v2257 = vor.u32 %v2256, %v2252
      %v2258 = vrot.slane %v2257, 4
      %v2260 = vshll.u32 %v2212, 16
      %v2262 = vrot.slane %v2260, 5
      %v2263 = vsel %vm416, %v2258, %v2262
      %v2265 = vshrl.u32 %v2213, 16
      %v2267 = vrot.slane %v2265, 4
      %v2268 = vshll.u32 %v2213, 16
      %v2270 = vrot.slane %v2268, 5
      %v2271 = vor.u32 %v2267, %v2270
      %v2272 = vrot.slane %v2271, 4
      %v2274 = vshll.u32 %v2214, 16
      %v2276 = vrot.slane %v2274, 5
      %v2277 = vsel %vm416, %v2272, %v2276
      %v2278 = vshrl.u32 %v2214, 16
      %v2280 = vrot.slane %v2278, 4
      %v2281 = vor.u32 %v2280, %v2276
      %v2282 = vrot.slane %v2281, 4
      %v2284 = vshll.u32 %v2215, 16
      %v2286 = vrot.slane %v2284, 5
      %v2287 = vsel %vm416, %v2282, %v2286
      %v2289 = vshrl.u32 %v2216, 16
      %v2291 = vrot.slane %v2289, 4
      %v2292 = vshll.u32 %v2216, 16
      %v2294 = vrot.slane %v2292, 5
      %v2295 = vor.u32 %v2291, %v2294
      %v2296 = vrot.slane %v2295, 4
      %v2298 = vshll.u32 %v2217, 16
      %v2300 = vrot.slane %v2298, 5
      %v2301 = vsel %vm416, %v2296, %v2300
      %v2302 = vshrl.u32 %v2217, 16
      %v2304 = vrot.slane %v2302, 4
      %v2305 = vor.u32 %v2304, %v2300
      %v2306 = vrot.slane %v2305, 4
      %v2308 = vshll.u32 %v2218, 16
      %v2310 = vrot.slane %v2308, 5
      %v2311 = vsel %vm416, %v2306, %v2310
      %v2313 = vshrl.u32 %v2219, 16
      %v2315 = vrot.slane %v2313, 4
      %v2316 = vshll.u32 %v2219, 16
      %v2318 = vrot.slane %v2316, 5
      %v2319 = vor.u32 %v2315, %v2318
      %v2320 = vrot.slane %v2319, 4
      %v2322 = vshll.u32 %v2220, 16
      %v2324 = vrot.slane %v2322, 5
      %v2325 = vsel %vm416, %v2320, %v2324
      %v2326 = vshrl.u32 %v2220, 16
      %v2328 = vrot.slane %v2326, 4
      %v2329 = vor.u32 %v2328, %v2324
      %v2330 = vrot.slane %v2329, 4
      %v2332 = vshll.u32 %v2221, 16
      %v2334 = vrot.slane %v2332, 5
      %v2335 = vsel %vm416, %v2330, %v2334
      %v2337 = vshrl.u32 %v2222, 16
      %v2339 = vrot.slane %v2337, 4
      %v2340 = vshll.u32 %v2222, 16
      %v2342 = vrot.slane %v2340, 5
      %v2343 = vor.u32 %v2339, %v2342
      %v2344 = vrot.slane %v2343, 4
      %v2346 = vshll.u32 %v2223, 16
      %v2348 = vrot.slane %v2346, 5
      %v2349 = vsel %vm416, %v2344, %v2348
      %v2350 = vshrl.u32 %v2223, 16
      %v2352 = vrot.slane %v2350, 4
      %v2353 = vor.u32 %v2352, %v2348
      %v2354 = vrot.slane %v2353, 4
      %v2356 = vshll.u32 %v2224, 16
      %v2358 = vrot.slane %v2356, 5
      %v2359 = vsel %vm416, %v2354, %v2358
      %v2361 = vshrl.u32 %v2225, 16
      %v2363 = vrot.slane %v2361, 4
      %v2364 = vshll.u32 %v2225, 16
      %v2366 = vrot.slane %v2364, 5
      %v2367 = vor.u32 %v2363, %v2366
      %v2368 = vrot.slane %v2367, 4
      %v2370 = vshll.u32 %v2226, 16
      %v2372 = vrot.slane %v2370, 5
      %v2373 = vsel %vm416, %v2368, %v2372
      %v2374 = vshrl.u32 %v2226, 16
      %v2376 = vrot.slane %v2374, 4
      %v2377 = vor.u32 %v2376, %v2372
      %v2378 = vrot.slane %v2377, 4
      %v2380 = vshll.u32 %v2227, 16
      %v2382 = vrot.slane %v2380, 5
      %v2383 = vsel %vm416, %v2378, %v2382
      %v2385 = vshrl.u32 %v2228, 16
      %v2387 = vrot.slane %v2385, 4
      %v2388 = vshll.u32 %v2228, 16
      %v2390 = vrot.slane %v2388, 5
      %v2391 = vor.u32 %v2387, %v2390
      %v2392 = vrot.slane %v2391, 4
      %v2394 = vshll.u32 %v2229, 16
      %v2396 = vrot.slane %v2394, 5
      %v2397 = vsel %vm416, %v2392, %v2396
      %v2398 = vshrl.u32 %v2229, 16
      %v2400 = vrot.slane %v2398, 4
      %v2401 = vor.u32 %v2400, %v2396
      %v2402 = vrot.slane %v2401, 4
      %v2404 = vshll.u32 %v2230, 16
      %v2406 = vrot.slane %v2404, 5
      %v2407 = vsel %vm416, %v2402, %v2406
      %v2409 = vshrl.u32 %v2231, 16
      %v2411 = vrot.slane %v2409, 4
      %v2412 = vshll.u32 %v2231, 16
      %v2414 = vrot.slane %v2412, 5
      %v2415 = vor.u32 %v2411, %v2414
      %v2416 = vrot.slane %v2415, 4
      %v2418 = vshll.u32 %v2232, 16
      %v2420 = vrot.slane %v2418, 5
      %v2421 = vsel %vm416, %v2416, %v2420
      %v2422 = vshrl.u32 %v2232, 16
      %v2424 = vrot.slane %v2422, 4
      %v2425 = vor.u32 %v2424, %v2420
      %v2426 = vrot.slane %v2425, 4
      %v2428 = vshll.u32 %v2233, 16
      %v2430 = vrot.slane %v2428, 5
      %v2431 = vsel %vm416, %v2426, %v2430
      %v2433 = vshrl.u32 %v2234, 16
      %v2435 = vrot.slane %v2433, 4
      %v2436 = vshll.u32 %v2234, 16
      %v2438 = vrot.slane %v2436, 5
      %v2439 = vor.u32 %v2435, %v2438
      %v2440 = vrot.slane %v2439, 4
      %v2442 = vshll.u32 %v2235, 16
      %v2444 = vrot.slane %v2442, 5
      %v2445 = vsel %vm416, %v2440, %v2444
      %v2446 = vshrl.u32 %v2235, 16
      %v2448 = vrot.slane %v2446, 4
      %v2449 = vor.u32 %v2448, %v2444
      %v2450 = vrot.slane %v2449, 4
      %v2452 = vshll.u32 %v2236, 16
      %v2454 = vrot.slane %v2452, 5
      %v2455 = vsel %vm416, %v2450, %v2454
      %v2457 = vshrl.u32 %v2237, 16
      %v2459 = vrot.slane %v2457, 4
      %v2460 = vshll.u32 %v2237, 16
      %v2462 = vrot.slane %v2460, 5
      %v2463 = vor.u32 %v2459, %v2462
      %v2464 = vrot.slane %v2463, 4
      %v2466 = vshll.u32 %v2238, 16
      %v2468 = vrot.slane %v2466, 5
      %v2469 = vsel %vm416, %v2464, %v2468
      %v2470 = vshrl.u32 %v2238, 16
      %v2472 = vrot.slane %v2470, 4
      %v2473 = vor.u32 %v2472, %v2468
      %v2474 = vrot.slane %v2473, 4
      %v2476 = vshll.u32 %v2239, 16
      %v2478 = vrot.slane %v2476, 5
      %v2479 = vsel %vm416, %v2474, %v2478
      %s2480 = scalar_lea.vmem %s2, 14
      %v2481 = vld [vmem:[%s2480] sm:$0x3]
      %v2482 = vunpack.c.l.b16 %v2253
      %v2483 = vunpack.c.l.b16 %v2263
      %v2484 = vunpack.c.l.b16 %v2277
      %v2485 = vunpack.c.l.b16 %v2287
      %v2486 = vunpack.c.l.b16 %v2301
      %v2487 = vunpack.c.l.b16 %v2311
      %v2488 = vunpack.c.l.b16 %v2325
      %v2489 = vunpack.c.l.b16 %v2335
      %v2490 = vunpack.c.l.b16 %v2349
      %v2491 = vunpack.c.l.b16 %v2359
      %v2492 = vunpack.c.l.b16 %v2373
      %v2493 = vunpack.c.l.b16 %v2383
      %v2494 = vunpack.c.l.b16 %v2397
      %v2495 = vunpack.c.l.b16 %v2407
      %v2496 = vunpack.c.l.b16 %v2421
      %v2497 = vunpack.c.l.b16 %v2431
      %v2498 = vunpack.c.l.b16 %v2445
      %v2499 = vunpack.c.l.b16 %v2455
      %v2500 = vunpack.c.l.b16 %v2469
      %v2501 = vunpack.c.l.b16 %v2479
      %v2502 = vpack.c.b16 %v2483, %v2482
      %v2503 = vpack.c.b16 %v2485, %v2484
      %v2504 = vpack.c.b16 %v2487, %v2486
      %v2505 = vpack.c.b16 %v2489, %v2488
      %v2506 = vpack.c.b16 %v2491, %v2490
      %v2507 = vpack.c.b16 %v2493, %v2492
      %v2508 = vpack.c.b16 %v2495, %v2494
      %v2509 = vpack.c.b16 %v2497, %v2496
      %v2510 = vpack.c.b16 %v2499, %v2498
      %v2511 = vpack.c.b16 %v2501, %v2500
      %v2513 = vsel %vm689, %v2502, 0
      %v2516 = vsel %vm689, %v2503, 0
      %v2519 = vsel %vm689, %v2504, 0
      %v2522 = vsel %vm689, %v2505, 0
      %v2525 = vsel %vm689, %v2506, 0
      %v2528 = vsel %vm689, %v2507, 0
      %v2531 = vsel %vm689, %v2508, 0
      %v2534 = vsel %vm689, %v2509, 0
      %v2537 = vsel %vm689, %v2510, 0
      %v2540 = vsel %vm689, %v2511, 0
      %v2543 = vsel %vm720, %v2481, 0
      %2545 = vmatpush.bf16.msra.mxu0 0
      %2546 = vmatpush.bf16.msra.mxu0 0
      %2547 = vmatpush.bf16.msra.mxu0 0
      %2548 = vmatpush.bf16.msra.mxu0 0
      %2549 = vmatpush.bf16.msra.mxu0 0
      %2550 = vmatpush.bf16.msra.mxu0 0
      %2551 = vmatpush.bf16.msra.mxu0 0
      %2552 = vmatpush.bf16.msra.mxu0 %v2543
      %2553 = vmatmul.bf16.gmra.mxu0 %v2513
      %v2554 = vpop.f32.mrf.mxu0
      %v2555 = vadd.f32 0.0, %v2554
      %v2556 = vpop.f32.mrf.mxu0
      %v2557 = vadd.f32 0.0, %v2556
      %2558 = vmatmul.bf16.gmra.mxu0 %v2516
      %v2559 = vpop.f32.mrf.mxu0
      %v2560 = vadd.f32 0.0, %v2559
      %v2561 = vpop.f32.mrf.mxu0
      %v2562 = vadd.f32 0.0, %v2561
      %2563 = vmatmul.bf16.gmra.mxu0 %v2519
      %v2564 = vpop.f32.mrf.mxu0
      %v2565 = vadd.f32 0.0, %v2564
      %v2566 = vpop.f32.mrf.mxu0
      %v2567 = vadd.f32 0.0, %v2566
      %2568 = vmatmul.bf16.gmra.mxu0 %v2522
      %v2569 = vpop.f32.mrf.mxu0
      %v2570 = vadd.f32 0.0, %v2569
      %v2571 = vpop.f32.mrf.mxu0
      %v2572 = vadd.f32 0.0, %v2571
      %2573 = vmatmul.bf16.gmra.mxu0 %v2525
      %v2574 = vpop.f32.mrf.mxu0
      %v2575 = vadd.f32 0.0, %v2574
      %v2576 = vpop.f32.mrf.mxu0
      %v2577 = vadd.f32 0.0, %v2576
      %2578 = vmatmul.bf16.gmra.mxu0 %v2528
      %v2579 = vpop.f32.mrf.mxu0
      %v2580 = vadd.f32 0.0, %v2579
      %v2581 = vpop.f32.mrf.mxu0
      %v2582 = vadd.f32 0.0, %v2581
      %2583 = vmatmul.bf16.gmra.mxu0 %v2531
      %v2584 = vpop.f32.mrf.mxu0
      %v2585 = vadd.f32 0.0, %v2584
      %v2586 = vpop.f32.mrf.mxu0
      %v2587 = vadd.f32 0.0, %v2586
      %2588 = vmatmul.bf16.gmra.mxu0 %v2534
      %v2589 = vpop.f32.mrf.mxu0
      %v2590 = vadd.f32 0.0, %v2589
      %v2591 = vpop.f32.mrf.mxu0
      %v2592 = vadd.f32 0.0, %v2591
      %2593 = vmatmul.bf16.gmra.mxu0 %v2537
      %v2594 = vpop.f32.mrf.mxu0
      %v2595 = vadd.f32 0.0, %v2594
      %v2596 = vpop.f32.mrf.mxu0
      %v2597 = vadd.f32 0.0, %v2596
      %2598 = vmatmul.bf16.gmra.mxu0 %v2540
      %v2599 = vpop.f32.mrf.mxu0
      %v2600 = vadd.f32 0.0, %v2599
      %v2601 = vpop.f32.mrf.mxu0
      %v2602 = vadd.f32 0.0, %v2601
      %2603 = vdwg.mxu0
      %v2604 = vadd.f32 %v2190, %v2555
      %v2605 = vadd.f32 %v2191, %v2557
      %v2606 = vadd.f32 %v2192, %v2560
      %v2607 = vadd.f32 %v2193, %v2562
      %v2608 = vadd.f32 %v2194, %v2565
      %v2609 = vadd.f32 %v2195, %v2567
      %v2610 = vadd.f32 %v2196, %v2570
      %v2611 = vadd.f32 %v2197, %v2572
      %v2612 = vadd.f32 %v2198, %v2575
      %v2613 = vadd.f32 %v2199, %v2577
      %v2614 = vadd.f32 %v2200, %v2580
      %v2615 = vadd.f32 %v2201, %v2582
      %v2616 = vadd.f32 %v2202, %v2585
      %v2617 = vadd.f32 %v2203, %v2587
      %v2618 = vadd.f32 %v2204, %v2590
      %v2619 = vadd.f32 %v2205, %v2592
      %v2620 = vadd.f32 %v2206, %v2595
      %v2621 = vadd.f32 %v2207, %v2597
      %v2622 = vadd.f32 %v2208, %v2600
      %v2623 = vadd.f32 %v2209, %v2602
      %v2624 = vld [vmem:[%s2025] sm:$0xe]
      %v2625 = vld [vmem:[%s2025 + $0xc] sm:$0xe]
      %v2626 = vld [vmem:[%s2025 + $0x18] sm:$0xe]
      %v2627 = vld [vmem:[%s2025 + $0x24] sm:$0xe]
      %v2628 = vld [vmem:[%s2025 + $0x30] sm:$0xe]
      %v2629 = vld [vmem:[%s2025 + $0x3c] sm:$0xe]
      %v2630 = vld [vmem:[%s2025 + $0x48] sm:$0xe]
      %v2631 = vld [vmem:[%s2025 + $0x54] sm:$0xe]
      %v2632 = vld [vmem:[%s2025 + $0x60] sm:$0xe]
      %v2633 = vld [vmem:[%s2025 + $0x6c] sm:$0xe]
      %v2664 = vrot.slane %v2624, 5
      %v2665 = vrot.slane %v2664, 4
      %v2666 = vrot.slane %v2211, 5
      %v2667 = vsel %vm957, %v2665, %v2666
      %v2668 = vrot.slane %v2666, 4
      %v2669 = vrot.slane %v2212, 5
      %v2670 = vsel %vm957, %v2668, %v2669
      %v2671 = vrot.slane %v2625, 5
      %v2672 = vrot.slane %v2671, 4
      %v2673 = vrot.slane %v2214, 5
      %v2674 = vsel %vm957, %v2672, %v2673
      %v2675 = vrot.slane %v2673, 4
      %v2676 = vrot.slane %v2215, 5
      %v2677 = vsel %vm957, %v2675, %v2676
      %v2678 = vrot.slane %v2626, 5
      %v2679 = vrot.slane %v2678, 4
      %v2680 = vrot.slane %v2217, 5
      %v2681 = vsel %vm957, %v2679, %v2680
      %v2682 = vrot.slane %v2680, 4
      %v2683 = vrot.slane %v2218, 5
      %v2684 = vsel %vm957, %v2682, %v2683
      %v2685 = vrot.slane %v2627, 5
      %v2686 = vrot.slane %v2685, 4
      %v2687 = vrot.slane %v2220, 5
      %v2688 = vsel %vm957, %v2686, %v2687
      %v2689 = vrot.slane %v2687, 4
      %v2690 = vrot.slane %v2221, 5
      %v2691 = vsel %vm957, %v2689, %v2690
      %v2692 = vrot.slane %v2628, 5
      %v2693 = vrot.slane %v2692, 4
      %v2694 = vrot.slane %v2223, 5
      %v2695 = vsel %vm957, %v2693, %v2694
      %v2696 = vrot.slane %v2694, 4
      %v2697 = vrot.slane %v2224, 5
      %v2698 = vsel %vm957, %v2696, %v2697
      %v2699 = vrot.slane %v2629, 5
      %v2700 = vrot.slane %v2699, 4
      %v2701 = vrot.slane %v2226, 5
      %v2702 = vsel %vm957, %v2700, %v2701
      %v2703 = vrot.slane %v2701, 4
      %v2704 = vrot.slane %v2227, 5
      %v2705 = vsel %vm957, %v2703, %v2704
      %v2706 = vrot.slane %v2630, 5
      %v2707 = vrot.slane %v2706, 4
      %v2708 = vrot.slane %v2229, 5
      %v2709 = vsel %vm957, %v2707, %v2708
      %v2710 = vrot.slane %v2708, 4
      %v2711 = vrot.slane %v2230, 5
      %v2712 = vsel %vm957, %v2710, %v2711
      %v2713 = vrot.slane %v2631, 5
      %v2714 = vrot.slane %v2713, 4
      %v2715 = vrot.slane %v2232, 5
      %v2716 = vsel %vm957, %v2714, %v2715
      %v2717 = vrot.slane %v2715, 4
      %v2718 = vrot.slane %v2233, 5
      %v2719 = vsel %vm957, %v2717, %v2718
      %v2720 = vrot.slane %v2632, 5
      %v2721 = vrot.slane %v2720, 4
      %v2722 = vrot.slane %v2235, 5
      %v2723 = vsel %vm957, %v2721, %v2722
      %v2724 = vrot.slane %v2722, 4
      %v2725 = vrot.slane %v2236, 5
      %v2726 = vsel %vm957, %v2724, %v2725
      %v2727 = vrot.slane %v2633, 5
      %v2728 = vrot.slane %v2727, 4
      %v2729 = vrot.slane %v2238, 5
      %v2730 = vsel %vm957, %v2728, %v2729
      %v2731 = vrot.slane %v2729, 4
      %v2732 = vrot.slane %v2239, 5
      %v2733 = vsel %vm957, %v2731, %v2732
      %s2734 = scalar_lea.vmem %s2, 16
      %v2735 = vld [vmem:[%s2734] sm:$0x3]
      %v2736 = vunpack.c.l.b16 %v2667
      %v2737 = vunpack.c.l.b16 %v2670
      %v2738 = vunpack.c.l.b16 %v2674
      %v2739 = vunpack.c.l.b16 %v2677
      %v2740 = vunpack.c.l.b16 %v2681
      %v2741 = vunpack.c.l.b16 %v2684
      %v2742 = vunpack.c.l.b16 %v2688
      %v2743 = vunpack.c.l.b16 %v2691
      %v2744 = vunpack.c.l.b16 %v2695
      %v2745 = vunpack.c.l.b16 %v2698
      %v2746 = vunpack.c.l.b16 %v2702
      %v2747 = vunpack.c.l.b16 %v2705
      %v2748 = vunpack.c.l.b16 %v2709
      %v2749 = vunpack.c.l.b16 %v2712
      %v2750 = vunpack.c.l.b16 %v2716
      %v2751 = vunpack.c.l.b16 %v2719
      %v2752 = vunpack.c.l.b16 %v2723
      %v2753 = vunpack.c.l.b16 %v2726
      %v2754 = vunpack.c.l.b16 %v2730
      %v2755 = vunpack.c.l.b16 %v2733
      %v2756 = vpack.c.b16 %v2737, %v2736
      %v2757 = vpack.c.b16 %v2739, %v2738
      %v2758 = vpack.c.b16 %v2741, %v2740
      %v2759 = vpack.c.b16 %v2743, %v2742
      %v2760 = vpack.c.b16 %v2745, %v2744
      %v2761 = vpack.c.b16 %v2747, %v2746
      %v2762 = vpack.c.b16 %v2749, %v2748
      %v2763 = vpack.c.b16 %v2751, %v2750
      %v2764 = vpack.c.b16 %v2753, %v2752
      %v2765 = vpack.c.b16 %v2755, %v2754
      %v2767 = vsel %vm689, %v2756, 0
      %v2770 = vsel %vm689, %v2757, 0
      %v2773 = vsel %vm689, %v2758, 0
      %v2776 = vsel %vm689, %v2759, 0
      %v2779 = vsel %vm689, %v2760, 0
      %v2782 = vsel %vm689, %v2761, 0
      %v2785 = vsel %vm689, %v2762, 0
      %v2788 = vsel %vm689, %v2763, 0
      %v2791 = vsel %vm689, %v2764, 0
      %v2794 = vsel %vm689, %v2765, 0
      %v2797 = vsel %vm720, %v2735, 0
      %2799 = vmatpush.bf16.msra.mxu0 0
      %2800 = vmatpush.bf16.msra.mxu0 0
      %2801 = vmatpush.bf16.msra.mxu0 0
      %2802 = vmatpush.bf16.msra.mxu0 0
      %2803 = vmatpush.bf16.msra.mxu0 0
      %2804 = vmatpush.bf16.msra.mxu0 0
      %2805 = vmatpush.bf16.msra.mxu0 0
      %2806 = vmatpush.bf16.msra.mxu0 %v2797
      %2807 = vmatmul.bf16.gmra.mxu0 %v2767
      %v2808 = vpop.f32.mrf.mxu0
      %v2809 = vadd.f32 0.0, %v2808
      %v2810 = vpop.f32.mrf.mxu0
      %v2811 = vadd.f32 0.0, %v2810
      %2812 = vmatmul.bf16.gmra.mxu0 %v2770
      %v2813 = vpop.f32.mrf.mxu0
      %v2814 = vadd.f32 0.0, %v2813
      %v2815 = vpop.f32.mrf.mxu0
      %v2816 = vadd.f32 0.0, %v2815
      %2817 = vmatmul.bf16.gmra.mxu0 %v2773
      %v2818 = vpop.f32.mrf.mxu0
      %v2819 = vadd.f32 0.0, %v2818
      %v2820 = vpop.f32.mrf.mxu0
      %v2821 = vadd.f32 0.0, %v2820
      %2822 = vmatmul.bf16.gmra.mxu0 %v2776
      %v2823 = vpop.f32.mrf.mxu0
      %v2824 = vadd.f32 0.0, %v2823
      %v2825 = vpop.f32.mrf.mxu0
      %v2826 = vadd.f32 0.0, %v2825
      %2827 = vmatmul.bf16.gmra.mxu0 %v2779
      %v2828 = vpop.f32.mrf.mxu0
      %v2829 = vadd.f32 0.0, %v2828
      %v2830 = vpop.f32.mrf.mxu0
      %v2831 = vadd.f32 0.0, %v2830
      %2832 = vmatmul.bf16.gmra.mxu0 %v2782
      %v2833 = vpop.f32.mrf.mxu0
      %v2834 = vadd.f32 0.0, %v2833
      %v2835 = vpop.f32.mrf.mxu0
      %v2836 = vadd.f32 0.0, %v2835
      %2837 = vmatmul.bf16.gmra.mxu0 %v2785
      %v2838 = vpop.f32.mrf.mxu0
      %v2839 = vadd.f32 0.0, %v2838
      %v2840 = vpop.f32.mrf.mxu0
      %v2841 = vadd.f32 0.0, %v2840
      %2842 = vmatmul.bf16.gmra.mxu0 %v2788
      %v2843 = vpop.f32.mrf.mxu0
      %v2844 = vadd.f32 0.0, %v2843
      %v2845 = vpop.f32.mrf.mxu0
      %v2846 = vadd.f32 0.0, %v2845
      %2847 = vmatmul.bf16.gmra.mxu0 %v2791
      %v2848 = vpop.f32.mrf.mxu0
      %v2849 = vadd.f32 0.0, %v2848
      %v2850 = vpop.f32.mrf.mxu0
      %v2851 = vadd.f32 0.0, %v2850
      %2852 = vmatmul.bf16.gmra.mxu0 %v2794
      %v2853 = vpop.f32.mrf.mxu0
      %v2854 = vadd.f32 0.0, %v2853
      %v2855 = vpop.f32.mrf.mxu0
      %v2856 = vadd.f32 0.0, %v2855
      %2857 = vdwg.mxu0
      %v2858 = vadd.f32 %v2604, %v2809
      %v2859 = vadd.f32 %v2605, %v2811
      %v2860 = vadd.f32 %v2606, %v2814
      %v2861 = vadd.f32 %v2607, %v2816
      %v2862 = vadd.f32 %v2608, %v2819
      %v2863 = vadd.f32 %v2609, %v2821
      %v2864 = vadd.f32 %v2610, %v2824
      %v2865 = vadd.f32 %v2611, %v2826
      %v2866 = vadd.f32 %v2612, %v2829
      %v2867 = vadd.f32 %v2613, %v2831
      %v2868 = vadd.f32 %v2614, %v2834
      %v2869 = vadd.f32 %v2615, %v2836
      %v2870 = vadd.f32 %v2616, %v2839
      %v2871 = vadd.f32 %v2617, %v2841
      %v2872 = vadd.f32 %v2618, %v2844
      %v2873 = vadd.f32 %v2619, %v2846
      %v2874 = vadd.f32 %v2620, %v2849
      %v2875 = vadd.f32 %v2621, %v2851
      %v2876 = vadd.f32 %v2622, %v2854
      %v2877 = vadd.f32 %v2623, %v2856
      %v2878 = vld [vmem:[%s4] sm:$0x1]
      %v2880 = vperm.slane %v2878, 0
      %v2882 = vmul.f32 %v2858, %v2880
      %v2883 = vmul.f32 %v2859, %v2880
      %v2884 = vmul.f32 %v2860, %v2880
      %v2885 = vmul.f32 %v2861, %v2880
      %v2886 = vmul.f32 %v2862, %v2880
      %v2887 = vmul.f32 %v2863, %v2880
      %v2888 = vmul.f32 %v2864, %v2880
      %v2889 = vmul.f32 %v2865, %v2880
      %v2890 = vmul.f32 %v2866, %v2880
      %v2891 = vmul.f32 %v2867, %v2880
      %v2892 = vmul.f32 %v2868, %v2880
      %v2893 = vmul.f32 %v2869, %v2880
      %v2894 = vmul.f32 %v2870, %v2880
      %v2895 = vmul.f32 %v2871, %v2880
      %v2896 = vmul.f32 %v2872, %v2880
      %v2897 = vmul.f32 %v2873, %v2880
      %v2898 = vmul.f32 %v2874, %v2880
      %v2899 = vmul.f32 %v2875, %v2880
      %v2900 = vmul.f32 %v2876, %v2880
      %v2901 = vmul.f32 %v2877, %v2880
      %v2902 = vld [vmem:[%s5] sm:$0x1]
      %v2904 = vperm.slane %v2902, 0
      %v2906 = vadd.f32 %v2882, %v2904
      %v2907 = vadd.f32 %v2883, %v2904
      %v2908 = vadd.f32 %v2884, %v2904
      %v2909 = vadd.f32 %v2885, %v2904
      %v2910 = vadd.f32 %v2886, %v2904
      %v2911 = vadd.f32 %v2887, %v2904
      %v2912 = vadd.f32 %v2888, %v2904
      %v2913 = vadd.f32 %v2889, %v2904
      %v2914 = vadd.f32 %v2890, %v2904
      %v2915 = vadd.f32 %v2891, %v2904
      %v2916 = vadd.f32 %v2892, %v2904
      %v2917 = vadd.f32 %v2893, %v2904
      %v2918 = vadd.f32 %v2894, %v2904
      %v2919 = vadd.f32 %v2895, %v2904
      %v2920 = vadd.f32 %v2896, %v2904
      %v2921 = vadd.f32 %v2897, %v2904
      %v2922 = vadd.f32 %v2898, %v2904
      %v2923 = vadd.f32 %v2899, %v2904
      %v2924 = vadd.f32 %v2900, %v2904
      %v2925 = vadd.f32 %v2901, %v2904
      %v2926 = vmax.f32 %v2906, 0.0
      %v2927 = vmax.f32 %v2907, 0.0
      %v2928 = vmax.f32 %v2908, 0.0
      %v2929 = vmax.f32 %v2909, 0.0
      %v2930 = vmax.f32 %v2910, 0.0
      %v2931 = vmax.f32 %v2911, 0.0
      %v2932 = vmax.f32 %v2912, 0.0
      %v2933 = vmax.f32 %v2913, 0.0
      %v2934 = vmax.f32 %v2914, 0.0
      %v2935 = vmax.f32 %v2915, 0.0
      %v2936 = vmax.f32 %v2916, 0.0
      %v2937 = vmax.f32 %v2917, 0.0
      %v2938 = vmax.f32 %v2918, 0.0
      %v2939 = vmax.f32 %v2919, 0.0
      %v2940 = vmax.f32 %v2920, 0.0
      %v2941 = vmax.f32 %v2921, 0.0
      %v2942 = vmax.f32 %v2922, 0.0
      %v2943 = vmax.f32 %v2923, 0.0
      %v2944 = vmax.f32 %v2924, 0.0
      %v2945 = vmax.f32 %v2925, 0.0
      %vm2946 = vcmask 24576
      %vm2947 = vsmask.f32 256
      %vm2948 = vmand %vm2946, %vm2947
      %v2949 = vld [vmem:[#allocation2] sm:$0x1]
      %v2950 = vsel %vm2948, 0, %v2949
      %2951 = vst [vmem:[#allocation2] sm:$0x1] %v2950
      %v2952 = vld [vmem:[#allocation2 + $0xc] sm:$0x1]
      %v2953 = vsel %vm2948, 0, %v2952
      %2954 = vst [vmem:[#allocation2 + $0xc] sm:$0x1] %v2953
      %v2955 = vld [vmem:[#allocation2 + $0x18] sm:$0x1]
      %v2956 = vsel %vm2948, 0, %v2955
      %2957 = vst [vmem:[#allocation2 + $0x18] sm:$0x1] %v2956
      %v2958 = vld [vmem:[#allocation2 + $0x24] sm:$0x1]
      %v2959 = vsel %vm2948, 0, %v2958
      %2960 = vst [vmem:[#allocation2 + $0x24] sm:$0x1] %v2959
      %v2961 = vld [vmem:[#allocation2 + $0x30] sm:$0x1]
      %v2962 = vsel %vm2948, 0, %v2961
      %2963 = vst [vmem:[#allocation2 + $0x30] sm:$0x1] %v2962
      %v2964 = vld [vmem:[#allocation2 + $0x3c] sm:$0x1]
      %v2965 = vsel %vm2948, 0, %v2964
      %2966 = vst [vmem:[#allocation2 + $0x3c] sm:$0x1] %v2965
      %v2967 = vld [vmem:[#allocation2 + $0x48] sm:$0x1]
      %v2968 = vsel %vm2948, 0, %v2967
      %2969 = vst [vmem:[#allocation2 + $0x48] sm:$0x1] %v2968
      %v2970 = vld [vmem:[#allocation2 + $0x54] sm:$0x1]
      %v2971 = vsel %vm2948, 0, %v2970
      %2972 = vst [vmem:[#allocation2 + $0x54] sm:$0x1] %v2971
      %v2973 = vld [vmem:[#allocation2 + $0x60] sm:$0x1]
      %v2974 = vsel %vm2948, 0, %v2973
      %2975 = vst [vmem:[#allocation2 + $0x60] sm:$0x1] %v2974
      %v2976 = vld [vmem:[#allocation2 + $0x6c] sm:$0x1]
      %v2977 = vsel %vm2948, 0, %v2976
      %2978 = vst [vmem:[#allocation2 + $0x6c] sm:$0x1] %v2977
      %vm2979 = vsmask.f32 7938
      %vm2980 = vmand %vm2946, %vm2979
      %v2981 = vld [vmem:[#allocation2 + $0x8] sm:$0x1]
      %v2982 = vsel %vm2980, 0, %v2981
      %2983 = vst [vmem:[#allocation2 + $0x8] sm:$0x1] %v2982
      %v2984 = vld [vmem:[#allocation2 + $0x14] sm:$0x1]
      %v2985 = vsel %vm2980, 0, %v2984
      %2986 = vst [vmem:[#allocation2 + $0x14] sm:$0x1] %v2985
      %v2987 = vld [vmem:[#allocation2 + $0x20] sm:$0x1]
      %v2988 = vsel %vm2980, 0, %v2987
      %2989 = vst [vmem:[#allocation2 + $0x20] sm:$0x1] %v2988
      %v2990 = vld [vmem:[#allocation2 + $0x2c] sm:$0x1]
      %v2991 = vsel %vm2980, 0, %v2990
      %2992 = vst [vmem:[#allocation2 + $0x2c] sm:$0x1] %v2991
      %v2993 = vld [vmem:[#allocation2 + $0x38] sm:$0x1]
      %v2994 = vsel %vm2980, 0, %v2993
      %2995 = vst [vmem:[#allocation2 + $0x38] sm:$0x1] %v2994
      %v2996 = vld [vmem:[#allocation2 + $0x44] sm:$0x1]
      %v2997 = vsel %vm2980, 0, %v2996
      %2998 = vst [vmem:[#allocation2 + $0x44] sm:$0x1] %v2997
      %v2999 = vld [vmem:[#allocation2 + $0x50] sm:$0x1]
      %v3000 = vsel %vm2980, 0, %v2999
      %3001 = vst [vmem:[#allocation2 + $0x50] sm:$0x1] %v3000
      %v3002 = vld [vmem:[#allocation2 + $0x5c] sm:$0x1]
      %v3003 = vsel %vm2980, 0, %v3002
      %3004 = vst [vmem:[#allocation2 + $0x5c] sm:$0x1] %v3003
      %v3005 = vld [vmem:[#allocation2 + $0x68] sm:$0x1]
      %v3006 = vsel %vm2980, 0, %v3005
      %3007 = vst [vmem:[#allocation2 + $0x68] sm:$0x1] %v3006
      %v3008 = vld [vmem:[#allocation2 + $0x74] sm:$0x1]
      %v3009 = vsel %vm2980, 0, %v3008
      %3010 = vst [vmem:[#allocation2 + $0x74] sm:$0x1] %v3009
      %v3011 = vpack.c.bf16 %v2926, %v2926
      %v3012 = vpack.c.bf16 %v2927, %v2927
      %v3013 = vpack.c.bf16 %v2928, %v2928
      %v3014 = vpack.c.bf16 %v2929, %v2929
      %v3015 = vpack.c.bf16 %v2930, %v2930
      %v3016 = vpack.c.bf16 %v2931, %v2931
      %v3017 = vpack.c.bf16 %v2932, %v2932
      %v3018 = vpack.c.bf16 %v2933, %v2933
      %v3019 = vpack.c.bf16 %v2934, %v2934
      %v3020 = vpack.c.bf16 %v2935, %v2935
      %v3021 = vpack.c.bf16 %v2936, %v2936
      %v3022 = vpack.c.bf16 %v2937, %v2937
      %v3023 = vpack.c.bf16 %v2938, %v2938
      %v3024 = vpack.c.bf16 %v2939, %v2939
      %v3025 = vpack.c.bf16 %v2940, %v2940
      %v3026 = vpack.c.bf16 %v2941, %v2941
      %v3027 = vpack.c.bf16 %v2942, %v2942
      %v3028 = vpack.c.bf16 %v2943, %v2943
      %v3029 = vpack.c.bf16 %v2944, %v2944
      %v3030 = vpack.c.bf16 %v2945, %v2945
      %vm3031 = vsmask.f32 4368
      %vm3032 = vmor %vm2947, %vm3031
      %v3034 = vshrl.u32 %v3011, 16
      %v3036 = vrot.slane %v3034, 7
      %v3037 = vshll.u32 %v3011, 16
      %v3039 = vor.u32 %v3036, %v3037
      %v3040 = vrot.slane %v3036, 4
      %v3042 = vshrl.u32 %v3012, 16
      %v3044 = vrot.slane %v3042, 7
      %v3045 = vshll.u32 %v3012, 16
      %v3047 = vor.u32 %v3044, %v3045
      %v3048 = vsel %vm3032, %v3040, %v3047
      %v3049 = vrot.slane %v3044, 4
      %v3051 = vshrl.u32 %v3013, 16
      %v3053 = vrot.slane %v3051, 7
      %v3054 = vshll.u32 %v3013, 16
      %v3056 = vor.u32 %v3053, %v3054
      %v3057 = vrot.slane %v3053, 4
      %v3059 = vshrl.u32 %v3014, 16
      %v3061 = vrot.slane %v3059, 7
      %v3062 = vshll.u32 %v3014, 16
      %v3064 = vor.u32 %v3061, %v3062
      %v3065 = vsel %vm3032, %v3057, %v3064
      %v3066 = vrot.slane %v3061, 4
      %v3068 = vshrl.u32 %v3015, 16
      %v3070 = vrot.slane %v3068, 7
      %v3071 = vshll.u32 %v3015, 16
      %v3073 = vor.u32 %v3070, %v3071
      %v3074 = vrot.slane %v3070, 4
      %v3076 = vshrl.u32 %v3016, 16
      %v3078 = vrot.slane %v3076, 7
      %v3079 = vshll.u32 %v3016, 16
      %v3081 = vor.u32 %v3078, %v3079
      %v3082 = vsel %vm3032, %v3074, %v3081
      %v3083 = vrot.slane %v3078, 4
      %v3085 = vshrl.u32 %v3017, 16
      %v3087 = vrot.slane %v3085, 7
      %v3088 = vshll.u32 %v3017, 16
      %v3090 = vor.u32 %v3087, %v3088
      %v3091 = vrot.slane %v3087, 4
      %v3093 = vshrl.u32 %v3018, 16
      %v3095 = vrot.slane %v3093, 7
      %v3096 = vshll.u32 %v3018, 16
      %v3098 = vor.u32 %v3095, %v3096
      %v3099 = vsel %vm3032, %v3091, %v3098
      %v3100 = vrot.slane %v3095, 4
      %v3102 = vshrl.u32 %v3019, 16
      %v3104 = vrot.slane %v3102, 7
      %v3105 = vshll.u32 %v3019, 16
      %v3107 = vor.u32 %v3104, %v3105
      %v3108 = vrot.slane %v3104, 4
      %v3110 = vshrl.u32 %v3020, 16
      %v3112 = vrot.slane %v3110, 7
      %v3113 = vshll.u32 %v3020, 16
      %v3115 = vor.u32 %v3112, %v3113
      %v3116 = vsel %vm3032, %v3108, %v3115
      %v3117 = vrot.slane %v3112, 4
      %v3119 = vshrl.u32 %v3021, 16
      %v3121 = vrot.slane %v3119, 7
      %v3122 = vshll.u32 %v3021, 16
      %v3124 = vor.u32 %v3121, %v3122
      %v3125 = vrot.slane %v3121, 4
      %v3127 = vshrl.u32 %v3022, 16
      %v3129 = vrot.slane %v3127, 7
      %v3130 = vshll.u32 %v3022, 16
      %v3132 = vor.u32 %v3129, %v3130
      %v3133 = vsel %vm3032, %v3125, %v3132
      %v3134 = vrot.slane %v3129, 4
      %v3136 = vshrl.u32 %v3023, 16
      %v3138 = vrot.slane %v3136, 7
      %v3139 = vshll.u32 %v3023, 16
      %v3141 = vor.u32 %v3138, %v3139
      %v3142 = vrot.slane %v3138, 4
      %v3144 = vshrl.u32 %v3024, 16
      %v3146 = vrot.slane %v3144, 7
      %v3147 = vshll.u32 %v3024, 16
      %v3149 = vor.u32 %v3146, %v3147
      %v3150 = vsel %vm3032, %v3142, %v3149
      %v3151 = vrot.slane %v3146, 4
      %v3153 = vshrl.u32 %v3025, 16
      %v3155 = vrot.slane %v3153, 7
      %v3156 = vshll.u32 %v3025, 16
      %v3158 = vor.u32 %v3155, %v3156
      %v3159 = vrot.slane %v3155, 4
      %v3161 = vshrl.u32 %v3026, 16
      %v3163 = vrot.slane %v3161, 7
      %v3164 = vshll.u32 %v3026, 16
      %v3166 = vor.u32 %v3163, %v3164
      %v3167 = vsel %vm3032, %v3159, %v3166
      %v3168 = vrot.slane %v3163, 4
      %v3170 = vshrl.u32 %v3027, 16
      %v3172 = vrot.slane %v3170, 7
      %v3173 = vshll.u32 %v3027, 16
      %v3175 = vor.u32 %v3172, %v3173
      %v3176 = vrot.slane %v3172, 4
      %v3178 = vshrl.u32 %v3028, 16
      %v3180 = vrot.slane %v3178, 7
      %v3181 = vshll.u32 %v3028, 16
      %v3183 = vor.u32 %v3180, %v3181
      %v3184 = vsel %vm3032, %v3176, %v3183
      %v3185 = vrot.slane %v3180, 4
      %v3187 = vshrl.u32 %v3029, 16
      %v3189 = vrot.slane %v3187, 7
      %v3190 = vshll.u32 %v3029, 16
      %v3192 = vor.u32 %v3189, %v3190
      %v3193 = vrot.slane %v3189, 4
      %v3195 = vshrl.u32 %v3030, 16
      %v3197 = vrot.slane %v3195, 7
      %v3198 = vshll.u32 %v3030, 16
      %v3200 = vor.u32 %v3197, %v3198
      %v3201 = vsel %vm3032, %v3193, %v3200
      %v3202 = vrot.slane %v3197, 4
      %vm3233 = vcmask 27648
      %vm3234 = vmand %vm3233, %vm2979
      %v3235 = vld [vmem:[#allocation2] sm:$0xf]
      %v3236 = vsel %vm3234, %v3039, %v3235
      %3237 = vst [vmem:[#allocation2] sm:$0xf] %v3236
      %vm3238 = vcmask 27648
      %3239 = vst.msk [vmem:[#allocation2 + $0x4] sm:$0xf] %vm3238, %v3048
      %v3240 = vld [vmem:[#allocation2 + $0x8] sm:$0x1]
      %v3241 = vsel %vm2948, %v3049, %v3240
      %3242 = vst [vmem:[#allocation2 + $0x8] sm:$0x1] %v3241
      %v3243 = vld [vmem:[#allocation2 + $0xc] sm:$0xf]
      %v3244 = vsel %vm3234, %v3056, %v3243
      %3245 = vst [vmem:[#allocation2 + $0xc] sm:$0xf] %v3244
      %3246 = vst.msk [vmem:[#allocation2 + $0x10] sm:$0xf] %vm3238, %v3065
      %v3247 = vld [vmem:[#allocation2 + $0x14] sm:$0x1]
      %v3248 = vsel %vm2948, %v3066, %v3247
      %3249 = vst [vmem:[#allocation2 + $0x14] sm:$0x1] %v3248
      %v3250 = vld [vmem:[#allocation2 + $0x18] sm:$0xf]
      %v3251 = vsel %vm3234, %v3073, %v3250
      %3252 = vst [vmem:[#allocation2 + $0x18] sm:$0xf] %v3251
      %3253 = vst.msk [vmem:[#allocation2 + $0x1c] sm:$0xf] %vm3238, %v3082
      %v3254 = vld [vmem:[#allocation2 + $0x20] sm:$0x1]
      %v3255 = vsel %vm2948, %v3083, %v3254
      %3256 = vst [vmem:[#allocation2 + $0x20] sm:$0x1] %v3255
      %v3257 = vld [vmem:[#allocation2 + $0x24] sm:$0xf]
      %v3258 = vsel %vm3234, %v3090, %v3257
      %3259 = vst [vmem:[#allocation2 + $0x24] sm:$0xf] %v3258
      %3260 = vst.msk [vmem:[#allocation2 + $0x28] sm:$0xf] %vm3238, %v3099
      %v3261 = vld [vmem:[#allocation2 + $0x2c] sm:$0x1]
      %v3262 = vsel %vm2948, %v3100, %v3261
      %3263 = vst [vmem:[#allocation2 + $0x2c] sm:$0x1] %v3262
      %v3264 = vld [vmem:[#allocation2 + $0x30] sm:$0xf]
      %v3265 = vsel %vm3234, %v3107, %v3264
      %3266 = vst [vmem:[#allocation2 + $0x30] sm:$0xf] %v3265
      %3267 = vst.msk [vmem:[#allocation2 + $0x34] sm:$0xf] %vm3238, %v3116
      %v3268 = vld [vmem:[#allocation2 + $0x38] sm:$0x1]
      %v3269 = vsel %vm2948, %v3117, %v3268
      %3270 = vst [vmem:[#allocation2 + $0x38] sm:$0x1] %v3269
      %v3271 = vld [vmem:[#allocation2 + $0x3c] sm:$0xf]
      %v3272 = vsel %vm3234, %v3124, %v3271
      %3273 = vst [vmem:[#allocation2 + $0x3c] sm:$0xf] %v3272
      %3274 = vst.msk [vmem:[#allocation2 + $0x40] sm:$0xf] %vm3238, %v3133
      %v3275 = vld [vmem:[#allocation2 + $0x44] sm:$0x1]
      %v3276 = vsel %vm2948, %v3134, %v3275
      %3277 = vst [vmem:[#allocation2 + $0x44] sm:$0x1] %v3276
      %v3278 = vld [vmem:[#allocation2 + $0x48] sm:$0xf]
      %v3279 = vsel %vm3234, %v3141, %v3278
      %3280 = vst [vmem:[#allocation2 + $0x48] sm:$0xf] %v3279
      %3281 = vst.msk [vmem:[#allocation2 + $0x4c] sm:$0xf] %vm3238, %v3150
      %v3282 = vld [vmem:[#allocation2 + $0x50] sm:$0x1]
      %v3283 = vsel %vm2948, %v3151, %v3282
      %3284 = vst [vmem:[#allocation2 + $0x50] sm:$0x1] %v3283
      %v3285 = vld [vmem:[#allocation2 + $0x54] sm:$0xf]
      %v3286 = vsel %vm3234, %v3158, %v3285
      %3287 = vst [vmem:[#allocation2 + $0x54] sm:$0xf] %v3286
      %3288 = vst.msk [vmem:[#allocation2 + $0x58] sm:$0xf] %vm3238, %v3167
      %v3289 = vld [vmem:[#allocation2 + $0x5c] sm:$0x1]
      %v3290 = vsel %vm2948, %v3168, %v3289
      %3291 = vst [vmem:[#allocation2 + $0x5c] sm:$0x1] %v3290
      %v3292 = vld [vmem:[#allocation2 + $0x60] sm:$0xf]
      %v3293 = vsel %vm3234, %v3175, %v3292
      %3294 = vst [vmem:[#allocation2 + $0x60] sm:$0xf] %v3293
      %3295 = vst.msk [vmem:[#allocation2 + $0x64] sm:$0xf] %vm3238, %v3184
      %v3296 = vld [vmem:[#allocation2 + $0x68] sm:$0x1]
      %v3297 = vsel %vm2948, %v3185, %v3296
      %3298 = vst [vmem:[#allocation2 + $0x68] sm:$0x1] %v3297
      %v3299 = vld [vmem:[#allocation2 + $0x6c] sm:$0xf]
      %v3300 = vsel %vm3234, %v3192, %v3299
      %3301 = vst [vmem:[#allocation2 + $0x6c] sm:$0xf] %v3300
      %3302 = vst.msk [vmem:[#allocation2 + $0x70] sm:$0xf] %vm3238, %v3201
      %v3303 = vld [vmem:[#allocation2 + $0x74] sm:$0x1]
      %v3304 = vsel %vm2948, %v3202, %v3303
      %3305 = vst [vmem:[#allocation2 + $0x74] sm:$0x1] %v3304
      %p3306 = scmp.eq.s32.totalorder %s24, 0
      // Predicated region
      $region53: #{tpu_custom_call.1} parent=51 // pred_check
        %p3307 = pneg %p3306
      $region54: #{tpu_custom_call.1} parent=51 // pred_check_branch
        %3309 = sbr.rel (%p3307) target = $region56
      $region55: #{tpu_custom_call.1} parent=51 // pred_region
        %3310 = vst.msk [vmem:[#allocation2] sm:$0xf] %vm3238, 0
        %3311 = vst.msk [vmem:[#allocation2 + $0x4] sm:$0xf] %vm3238, 0
        %vm3312 = vcmask 24576
        %3313 = vst.msk [vmem:[#allocation2 + $0x8] sm:$0x1] %vm3312, 0
      $region56: #{tpu_custom_call.1} parent=51 // pred_fallthru
        _
      %p3314 = scmp.eq.s32.totalorder %s24, 1
      // Predicated region
      $region57: #{tpu_custom_call.1} parent=51 // pred_check
        %p3315 = pneg %p3314
      $region58: #{tpu_custom_call.1} parent=51 // pred_check_branch
        %3317 = sbr.rel (%p3315) target = $region60
      $region59: #{tpu_custom_call.1} parent=51 // pred_region
        %s3318 = scalar_lea.vmem [#allocation2], 108
        %3319 = vst.msk [vmem:[%s3318] sm:$0xf] %vm3238, 0
        %3320 = vst.msk [vmem:[%s3318 + $0x4] sm:$0xf] %vm3238, 0
        %vm3321 = vcmask 24576
        %3322 = vst.msk [vmem:[%s3318 + $0x8] sm:$0x1] %vm3321, 0
      $region60: #{tpu_custom_call.1} parent=51 // pred_fallthru
        _
      %v3323 = vld [vmem:[#allocation2] sm:$0xf]
      %v3324 = vld [vmem:[#allocation2 + $0x4] sm:$0xf]
      %v3325 = vld [vmem:[#allocation2 + $0xc] sm:$0xf]
      %v3326 = vld [vmem:[#allocation2 + $0x10] sm:$0xf]
      %v3327 = vld [vmem:[#allocation2 + $0x18] sm:$0xf]
      %v3328 = vld [vmem:[#allocation2 + $0x1c] sm:$0xf]
      %v3329 = vld [vmem:[#allocation2 + $0x24] sm:$0xf]
      %v3330 = vld [vmem:[#allocation2 + $0x28] sm:$0xf]
      %v3331 = vld [vmem:[#allocation2 + $0x30] sm:$0xf]
      %v3332 = vld [vmem:[#allocation2 + $0x34] sm:$0xf]
      %v3333 = vld [vmem:[#allocation2 + $0x3c] sm:$0xf]
      %v3334 = vld [vmem:[#allocation2 + $0x40] sm:$0xf]
      %v3335 = vld [vmem:[#allocation2 + $0x48] sm:$0xf]
      %v3336 = vld [vmem:[#allocation2 + $0x4c] sm:$0xf]
      %v3337 = vld [vmem:[#allocation2 + $0x54] sm:$0xf]
      %v3338 = vld [vmem:[#allocation2 + $0x58] sm:$0xf]
      %v3339 = vld [vmem:[%s3] sm:$0x3]
      %v3340 = vld [vmem:[#allocation2 + $0x8] sm:$0x1]
      %v3341 = vld [vmem:[#allocation2 + $0x14] sm:$0x1]
      %v3342 = vld [vmem:[#allocation2 + $0x20] sm:$0x1]
      %v3343 = vld [vmem:[#allocation2 + $0x2c] sm:$0x1]
      %v3344 = vld [vmem:[#allocation2 + $0x38] sm:$0x1]
      %v3345 = vld [vmem:[#allocation2 + $0x44] sm:$0x1]
      %v3346 = vld [vmem:[#allocation2 + $0x50] sm:$0x1]
      %v3347 = vld [vmem:[#allocation2 + $0x5c] sm:$0x1]
      %v3349 = vshrl.u32 %v3323, 16
      %v3351 = vrot.slane %v3349, 4
      %v3352 = vshll.u32 %v3323, 16
      %v3354 = vrot.slane %v3352, 5
      %v3355 = vor.u32 %v3351, %v3354
      %v3356 = vrot.slane %v3355, 4
      %v3358 = vshll.u32 %v3324, 16
      %v3360 = vrot.slane %v3358, 5
      %v3361 = vsel %vm416, %v3356, %v3360
      %v3362 = vshrl.u32 %v3324, 16
      %v3364 = vrot.slane %v3362, 4
      %v3365 = vor.u32 %v3364, %v3360
      %v3366 = vrot.slane %v3365, 4
      %v3368 = vshll.u32 %v3340, 16
      %v3370 = vrot.slane %v3368, 5
      %v3371 = vsel %vm416, %v3366, %v3370
      %v3373 = vshrl.u32 %v3325, 16
      %v3375 = vrot.slane %v3373, 4
      %v3376 = vshll.u32 %v3325, 16
      %v3378 = vrot.slane %v3376, 5
      %v3379 = vor.u32 %v3375, %v3378
      %v3380 = vrot.slane %v3379, 4
      %v3382 = vshll.u32 %v3326, 16
      %v3384 = vrot.slane %v3382, 5
      %v3385 = vsel %vm416, %v3380, %v3384
      %v3386 = vshrl.u32 %v3326, 16
      %v3388 = vrot.slane %v3386, 4
      %v3389 = vor.u32 %v3388, %v3384
      %v3390 = vrot.slane %v3389, 4
      %v3392 = vshll.u32 %v3341, 16
      %v3394 = vrot.slane %v3392, 5
      %v3395 = vsel %vm416, %v3390, %v3394
      %v3397 = vshrl.u32 %v3327, 16
      %v3399 = vrot.slane %v3397, 4
      %v3400 = vshll.u32 %v3327, 16
      %v3402 = vrot.slane %v3400, 5
      %v3403 = vor.u32 %v3399, %v3402
      %v3404 = vrot.slane %v3403, 4
      %v3406 = vshll.u32 %v3328, 16
      %v3408 = vrot.slane %v3406, 5
      %v3409 = vsel %vm416, %v3404, %v3408
      %v3410 = vshrl.u32 %v3328, 16
      %v3412 = vrot.slane %v3410, 4
      %v3413 = vor.u32 %v3412, %v3408
      %v3414 = vrot.slane %v3413, 4
      %v3416 = vshll.u32 %v3342, 16
      %v3418 = vrot.slane %v3416, 5
      %v3419 = vsel %vm416, %v3414, %v3418
      %v3421 = vshrl.u32 %v3329, 16
      %v3423 = vrot.slane %v3421, 4
      %v3424 = vshll.u32 %v3329, 16
      %v3426 = vrot.slane %v3424, 5
      %v3427 = vor.u32 %v3423, %v3426
      %v3428 = vrot.slane %v3427, 4
      %v3430 = vshll.u32 %v3330, 16
      %v3432 = vrot.slane %v3430, 5
      %v3433 = vsel %vm416, %v3428, %v3432
      %v3434 = vshrl.u32 %v3330, 16
      %v3436 = vrot.slane %v3434, 4
      %v3437 = vor.u32 %v3436, %v3432
      %v3438 = vrot.slane %v3437, 4
      %v3440 = vshll.u32 %v3343, 16
      %v3442 = vrot.slane %v3440, 5
      %v3443 = vsel %vm416, %v3438, %v3442
      %v3445 = vshrl.u32 %v3331, 16
      %v3447 = vrot.slane %v3445, 4
      %v3448 = vshll.u32 %v3331, 16
      %v3450 = vrot.slane %v3448, 5
      %v3451 = vor.u32 %v3447, %v3450
      %v3452 = vrot.slane %v3451, 4
      %v3454 = vshll.u32 %v3332, 16
      %v3456 = vrot.slane %v3454, 5
      %v3457 = vsel %vm416, %v3452, %v3456
      %v3458 = vshrl.u32 %v3332, 16
      %v3460 = vrot.slane %v3458, 4
      %v3461 = vor.u32 %v3460, %v3456
      %v3462 = vrot.slane %v3461, 4
      %v3464 = vshll.u32 %v3344, 16
      %v3466 = vrot.slane %v3464, 5
      %v3467 = vsel %vm416, %v3462, %v3466
      %v3469 = vshrl.u32 %v3333, 16
      %v3471 = vrot.slane %v3469, 4
      %v3472 = vshll.u32 %v3333, 16
      %v3474 = vrot.slane %v3472, 5
      %v3475 = vor.u32 %v3471, %v3474
      %v3476 = vrot.slane %v3475, 4
      %v3478 = vshll.u32 %v3334, 16
      %v3480 = vrot.slane %v3478, 5
      %v3481 = vsel %vm416, %v3476, %v3480
      %v3482 = vshrl.u32 %v3334, 16
      %v3484 = vrot.slane %v3482, 4
      %v3485 = vor.u32 %v3484, %v3480
      %v3486 = vrot.slane %v3485, 4
      %v3488 = vshll.u32 %v3345, 16
      %v3490 = vrot.slane %v3488, 5
      %v3491 = vsel %vm416, %v3486, %v3490
      %v3493 = vshrl.u32 %v3335, 16
      %v3495 = vrot.slane %v3493, 4
      %v3496 = vshll.u32 %v3335, 16
      %v3498 = vrot.slane %v3496, 5
      %v3499 = vor.u32 %v3495, %v3498
      %v3500 = vrot.slane %v3499, 4
      %v3502 = vshll.u32 %v3336, 16
      %v3504 = vrot.slane %v3502, 5
      %v3505 = vsel %vm416, %v3500, %v3504
      %v3506 = vshrl.u32 %v3336, 16
      %v3508 = vrot.slane %v3506, 4
      %v3509 = vor.u32 %v3508, %v3504
      %v3510 = vrot.slane %v3509, 4
      %v3512 = vshll.u32 %v3346, 16
      %v3514 = vrot.slane %v3512, 5
      %v3515 = vsel %vm416, %v3510, %v3514
      %v3517 = vshrl.u32 %v3337, 16
      %v3519 = vrot.slane %v3517, 4
      %v3520 = vshll.u32 %v3337, 16
      %v3522 = vrot.slane %v3520, 5
      %v3523 = vor.u32 %v3519, %v3522
      %v3524 = vrot.slane %v3523, 4
      %v3526 = vshll.u32 %v3338, 16
      %v3528 = vrot.slane %v3526, 5
      %v3529 = vsel %vm416, %v3524, %v3528
      %v3530 = vshrl.u32 %v3338, 16
      %v3532 = vrot.slane %v3530, 4
      %v3533 = vor.u32 %v3532, %v3528
      %v3534 = vrot.slane %v3533, 4
      %v3536 = vshll.u32 %v3347, 16
      %v3538 = vrot.slane %v3536, 5
      %v3539 = vsel %vm416, %v3534, %v3538
      %s3540 = scalar_lea.vmem %s3, 2
      %v3541 = vld [vmem:[%s3540] sm:$0x3]
      %v3542 = vunpack.c.l.b16 %v3361
      %v3543 = vunpack.c.l.b16 %v3371
      %v3544 = vunpack.c.l.b16 %v3385
      %v3545 = vunpack.c.l.b16 %v3395
      %v3546 = vunpack.c.l.b16 %v3409
      %v3547 = vunpack.c.l.b16 %v3419
      %v3548 = vunpack.c.l.b16 %v3433
      %v3549 = vunpack.c.l.b16 %v3443
      %v3550 = vunpack.c.l.b16 %v3457
      %v3551 = vunpack.c.l.b16 %v3467
      %v3552 = vunpack.c.l.b16 %v3481
      %v3553 = vunpack.c.l.b16 %v3491
      %v3554 = vunpack.c.l.b16 %v3505
      %v3555 = vunpack.c.l.b16 %v3515
      %v3556 = vunpack.c.l.b16 %v3529
      %v3557 = vunpack.c.l.b16 %v3539
      %v3558 = vpack.c.b16 %v3543, %v3542
      %v3559 = vpack.c.b16 %v3545, %v3544
      %v3560 = vpack.c.b16 %v3547, %v3546
      %v3561 = vpack.c.b16 %v3549, %v3548
      %v3562 = vpack.c.b16 %v3551, %v3550
      %v3563 = vpack.c.b16 %v3553, %v3552
      %v3564 = vpack.c.b16 %v3555, %v3554
      %v3565 = vpack.c.b16 %v3557, %v3556
      %v3567 = vsel %vm689, %v3558, 0
      %v3570 = vsel %vm689, %v3559, 0
      %v3573 = vsel %vm689, %v3560, 0
      %v3576 = vsel %vm689, %v3561, 0
      %v3579 = vsel %vm689, %v3562, 0
      %v3582 = vsel %vm689, %v3563, 0
      %v3585 = vsel %vm689, %v3564, 0
      %v3588 = vsel %vm689, %v3565, 0
      %v3591 = vsel %vm720, %v3541, 0
      %3593 = vmatpush.bf16.msra.mxu0 0
      %3594 = vmatpush.bf16.msra.mxu0 0
      %3595 = vmatpush.bf16.msra.mxu0 0
      %3596 = vmatpush.bf16.msra.mxu0 0
      %3597 = vmatpush.bf16.msra.mxu0 0
      %3598 = vmatpush.bf16.msra.mxu0 0
      %3599 = vmatpush.bf16.msra.mxu0 0
      %3600 = vmatpush.bf16.msra.mxu0 %v3591
      %3601 = vmatmul.bf16.gmra.mxu0 %v3567
      %v3602 = vpop.f32.mrf.mxu0
      %v3603 = vadd.f32 0.0, %v3602
      %v3604 = vpop.f32.mrf.mxu0
      %v3605 = vadd.f32 0.0, %v3604
      %3606 = vmatmul.bf16.gmra.mxu0 %v3570
      %v3607 = vpop.f32.mrf.mxu0
      %v3608 = vadd.f32 0.0, %v3607
      %v3609 = vpop.f32.mrf.mxu0
      %v3610 = vadd.f32 0.0, %v3609
      %3611 = vmatmul.bf16.gmra.mxu0 %v3573
      %v3612 = vpop.f32.mrf.mxu0
      %v3613 = vadd.f32 0.0, %v3612
      %v3614 = vpop.f32.mrf.mxu0
      %v3615 = vadd.f32 0.0, %v3614
      %3616 = vmatmul.bf16.gmra.mxu0 %v3576
      %v3617 = vpop.f32.mrf.mxu0
      %v3618 = vadd.f32 0.0, %v3617
      %v3619 = vpop.f32.mrf.mxu0
      %v3620 = vadd.f32 0.0, %v3619
      %3621 = vmatmul.bf16.gmra.mxu0 %v3579
      %v3622 = vpop.f32.mrf.mxu0
      %v3623 = vadd.f32 0.0, %v3622
      %v3624 = vpop.f32.mrf.mxu0
      %v3625 = vadd.f32 0.0, %v3624
      %3626 = vmatmul.bf16.gmra.mxu0 %v3582
      %v3627 = vpop.f32.mrf.mxu0
      %v3628 = vadd.f32 0.0, %v3627
      %v3629 = vpop.f32.mrf.mxu0
      %v3630 = vadd.f32 0.0, %v3629
      %3631 = vmatmul.bf16.gmra.mxu0 %v3585
      %v3632 = vpop.f32.mrf.mxu0
      %v3633 = vadd.f32 0.0, %v3632
      %v3634 = vpop.f32.mrf.mxu0
      %v3635 = vadd.f32 0.0, %v3634
      %3636 = vmatmul.bf16.gmra.mxu0 %v3588
      %v3637 = vpop.f32.mrf.mxu0
      %v3638 = vadd.f32 0.0, %v3637
      %v3639 = vpop.f32.mrf.mxu0
      %v3640 = vadd.f32 0.0, %v3639
      %3641 = vdwg.mxu0
      %v3658 = vunpack.c.l.b16 %v3323
      %v3659 = vunpack.c.l.b16 %v3324
      %v3660 = vunpack.c.l.b16 %v3325
      %v3661 = vunpack.c.l.b16 %v3326
      %v3662 = vunpack.c.l.b16 %v3327
      %v3663 = vunpack.c.l.b16 %v3328
      %v3664 = vunpack.c.l.b16 %v3329
      %v3665 = vunpack.c.l.b16 %v3330
      %v3666 = vunpack.c.l.b16 %v3331
      %v3667 = vunpack.c.l.b16 %v3332
      %v3668 = vunpack.c.l.b16 %v3333
      %v3669 = vunpack.c.l.b16 %v3334
      %v3670 = vunpack.c.l.b16 %v3335
      %v3671 = vunpack.c.l.b16 %v3336
      %v3672 = vunpack.c.l.b16 %v3337
      %v3673 = vunpack.c.l.b16 %v3338
      %v3674 = vpack.c.b16 %v3659, %v3658
      %v3675 = vpack.c.b16 %v3661, %v3660
      %v3676 = vpack.c.b16 %v3663, %v3662
      %v3677 = vpack.c.b16 %v3665, %v3664
      %v3678 = vpack.c.b16 %v3667, %v3666
      %v3679 = vpack.c.b16 %v3669, %v3668
      %v3680 = vpack.c.b16 %v3671, %v3670
      %v3681 = vpack.c.b16 %v3673, %v3672
      %v3683 = vsel %vm689, %v3674, 0
      %v3686 = vsel %vm689, %v3675, 0
      %v3689 = vsel %vm689, %v3676, 0
      %v3692 = vsel %vm689, %v3677, 0
      %v3695 = vsel %vm689, %v3678, 0
      %v3698 = vsel %vm689, %v3679, 0
      %v3701 = vsel %vm689, %v3680, 0
      %v3704 = vsel %vm689, %v3681, 0
      %v3707 = vsel %vm720, %v3339, 0
      %3709 = vmatpush.bf16.msra.mxu0 0
      %3710 = vmatpush.bf16.msra.mxu0 0
      %3711 = vmatpush.bf16.msra.mxu0 0
      %3712 = vmatpush.bf16.msra.mxu0 0
      %3713 = vmatpush.bf16.msra.mxu0 0
      %3714 = vmatpush.bf16.msra.mxu0 0
      %3715 = vmatpush.bf16.msra.mxu0 0
      %3716 = vmatpush.bf16.msra.mxu0 %v3707
      %3717 = vmatmul.bf16.gmra.mxu0 %v3683
      %v3718 = vpop.f32.mrf.mxu0
      %v3719 = vadd.f32 %v3603, %v3718
      %v3720 = vpop.f32.mrf.mxu0
      %v3721 = vadd.f32 %v3605, %v3720
      %3722 = vmatmul.bf16.gmra.mxu0 %v3686
      %v3723 = vpop.f32.mrf.mxu0
      %v3724 = vadd.f32 %v3608, %v3723
      %v3725 = vpop.f32.mrf.mxu0
      %v3726 = vadd.f32 %v3610, %v3725
      %3727 = vmatmul.bf16.gmra.mxu0 %v3689
      %v3728 = vpop.f32.mrf.mxu0
      %v3729 = vadd.f32 %v3613, %v3728
      %v3730 = vpop.f32.mrf.mxu0
      %v3731 = vadd.f32 %v3615, %v3730
      %3732 = vmatmul.bf16.gmra.mxu0 %v3692
      %v3733 = vpop.f32.mrf.mxu0
      %v3734 = vadd.f32 %v3618, %v3733
      %v3735 = vpop.f32.mrf.mxu0
      %v3736 = vadd.f32 %v3620, %v3735
      %3737 = vmatmul.bf16.gmra.mxu0 %v3695
      %v3738 = vpop.f32.mrf.mxu0
      %v3739 = vadd.f32 %v3623, %v3738
      %v3740 = vpop.f32.mrf.mxu0
      %v3741 = vadd.f32 %v3625, %v3740
      %3742 = vmatmul.bf16.gmra.mxu0 %v3698
      %v3743 = vpop.f32.mrf.mxu0
      %v3744 = vadd.f32 %v3628, %v3743
      %v3745 = vpop.f32.mrf.mxu0
      %v3746 = vadd.f32 %v3630, %v3745
      %3747 = vmatmul.bf16.gmra.mxu0 %v3701
      %v3748 = vpop.f32.mrf.mxu0
      %v3749 = vadd.f32 %v3633, %v3748
      %v3750 = vpop.f32.mrf.mxu0
      %v3751 = vadd.f32 %v3635, %v3750
      %3752 = vmatmul.bf16.gmra.mxu0 %v3704
      %v3753 = vpop.f32.mrf.mxu0
      %v3754 = vadd.f32 %v3638, %v3753
      %v3755 = vpop.f32.mrf.mxu0
      %v3756 = vadd.f32 %v3640, %v3755
      %3757 = vdwg.mxu0
      %v3758 = vld [vmem:[#allocation2] sm:$0xe]
      %v3759 = vld [vmem:[#allocation2 + $0xc] sm:$0xe]
      %v3760 = vld [vmem:[#allocation2 + $0x18] sm:$0xe]
      %v3761 = vld [vmem:[#allocation2 + $0x24] sm:$0xe]
      %v3762 = vld [vmem:[#allocation2 + $0x30] sm:$0xe]
      %v3763 = vld [vmem:[#allocation2 + $0x3c] sm:$0xe]
      %v3764 = vld [vmem:[#allocation2 + $0x48] sm:$0xe]
      %v3765 = vld [vmem:[#allocation2 + $0x54] sm:$0xe]
      %v3782 = vrot.slane %v3758, 5
      %v3783 = vrot.slane %v3782, 4
      %v3784 = vrot.slane %v3324, 5
      %v3785 = vsel %vm957, %v3783, %v3784
      %v3786 = vrot.slane %v3784, 4
      %v3787 = vrot.slane %v3340, 5
      %v3788 = vsel %vm957, %v3786, %v3787
      %v3789 = vrot.slane %v3759, 5
      %v3790 = vrot.slane %v3789, 4
      %v3791 = vrot.slane %v3326, 5
      %v3792 = vsel %vm957, %v3790, %v3791
      %v3793 = vrot.slane %v3791, 4
      %v3794 = vrot.slane %v3341, 5
      %v3795 = vsel %vm957, %v3793, %v3794
      %v3796 = vrot.slane %v3760, 5
      %v3797 = vrot.slane %v3796, 4
      %v3798 = vrot.slane %v3328, 5
      %v3799 = vsel %vm957, %v3797, %v3798
      %v3800 = vrot.slane %v3798, 4
      %v3801 = vrot.slane %v3342, 5
      %v3802 = vsel %vm957, %v3800, %v3801
      %v3803 = vrot.slane %v3761, 5
      %v3804 = vrot.slane %v3803, 4
      %v3805 = vrot.slane %v3330, 5
      %v3806 = vsel %vm957, %v3804, %v3805
      %v3807 = vrot.slane %v3805, 4
      %v3808 = vrot.slane %v3343, 5
      %v3809 = vsel %vm957, %v3807, %v3808
      %v3810 = vrot.slane %v3762, 5
      %v3811 = vrot.slane %v3810, 4
      %v3812 = vrot.slane %v3332, 5
      %v3813 = vsel %vm957, %v3811, %v3812
      %v3814 = vrot.slane %v3812, 4
      %v3815 = vrot.slane %v3344, 5
      %v3816 = vsel %vm957, %v3814, %v3815
      %v3817 = vrot.slane %v3763, 5
      %v3818 = vrot.slane %v3817, 4
      %v3819 = vrot.slane %v3334, 5
      %v3820 = vsel %vm957, %v3818, %v3819
      %v3821 = vrot.slane %v3819, 4
      %v3822 = vrot.slane %v3345, 5
      %v3823 = vsel %vm957, %v3821, %v3822
      %v3824 = vrot.slane %v3764, 5
      %v3825 = vrot.slane %v3824, 4
      %v3826 = vrot.slane %v3336, 5
      %v3827 = vsel %vm957, %v3825, %v3826
      %v3828 = vrot.slane %v3826, 4
      %v3829 = vrot.slane %v3346, 5
      %v3830 = vsel %vm957, %v3828, %v3829
      %v3831 = vrot.slane %v3765, 5
      %v3832 = vrot.slane %v3831, 4
      %v3833 = vrot.slane %v3338, 5
      %v3834 = vsel %vm957, %v3832, %v3833
      %v3835 = vrot.slane %v3833, 4
      %v3836 = vrot.slane %v3347, 5
      %v3837 = vsel %vm957, %v3835, %v3836
      %s3838 = scalar_lea.vmem %s3, 4
      %v3839 = vld [vmem:[%s3838] sm:$0x3]
      %v3840 = vunpack.c.l.b16 %v3785
      %v3841 = vunpack.c.l.b16 %v3788
      %v3842 = vunpack.c.l.b16 %v3792
      %v3843 = vunpack.c.l.b16 %v3795
      %v3844 = vunpack.c.l.b16 %v3799
      %v3845 = vunpack.c.l.b16 %v3802
      %v3846 = vunpack.c.l.b16 %v3806
      %v3847 = vunpack.c.l.b16 %v3809
      %v3848 = vunpack.c.l.b16 %v3813
      %v3849 = vunpack.c.l.b16 %v3816
      %v3850 = vunpack.c.l.b16 %v3820
      %v3851 = vunpack.c.l.b16 %v3823
      %v3852 = vunpack.c.l.b16 %v3827
      %v3853 = vunpack.c.l.b16 %v3830
      %v3854 = vunpack.c.l.b16 %v3834
      %v3855 = vunpack.c.l.b16 %v3837
      %v3856 = vpack.c.b16 %v3841, %v3840
      %v3857 = vpack.c.b16 %v3843, %v3842
      %v3858 = vpack.c.b16 %v3845, %v3844
      %v3859 = vpack.c.b16 %v3847, %v3846
      %v3860 = vpack.c.b16 %v3849, %v3848
      %v3861 = vpack.c.b16 %v3851, %v3850
      %v3862 = vpack.c.b16 %v3853, %v3852
      %v3863 = vpack.c.b16 %v3855, %v3854
      %v3865 = vsel %vm689, %v3856, 0
      %v3868 = vsel %vm689, %v3857, 0
      %v3871 = vsel %vm689, %v3858, 0
      %v3874 = vsel %vm689, %v3859, 0
      %v3877 = vsel %vm689, %v3860, 0
      %v3880 = vsel %vm689, %v3861, 0
      %v3883 = vsel %vm689, %v3862, 0
      %v3886 = vsel %vm689, %v3863, 0
      %v3889 = vsel %vm720, %v3839, 0
      %3891 = vmatpush.bf16.msra.mxu0 0
      %3892 = vmatpush.bf16.msra.mxu0 0
      %3893 = vmatpush.bf16.msra.mxu0 0
      %3894 = vmatpush.bf16.msra.mxu0 0
      %3895 = vmatpush.bf16.msra.mxu0 0
      %3896 = vmatpush.bf16.msra.mxu0 0
      %3897 = vmatpush.bf16.msra.mxu0 0
      %3898 = vmatpush.bf16.msra.mxu0 %v3889
      %3899 = vmatmul.bf16.gmra.mxu0 %v3865
      %v3900 = vpop.f32.mrf.mxu0
      %v3901 = vadd.f32 0.0, %v3900
      %v3902 = vpop.f32.mrf.mxu0
      %v3903 = vadd.f32 0.0, %v3902
      %3904 = vmatmul.bf16.gmra.mxu0 %v3868
      %v3905 = vpop.f32.mrf.mxu0
      %v3906 = vadd.f32 0.0, %v3905
      %v3907 = vpop.f32.mrf.mxu0
      %v3908 = vadd.f32 0.0, %v3907
      %3909 = vmatmul.bf16.gmra.mxu0 %v3871
      %v3910 = vpop.f32.mrf.mxu0
      %v3911 = vadd.f32 0.0, %v3910
      %v3912 = vpop.f32.mrf.mxu0
      %v3913 = vadd.f32 0.0, %v3912
      %3914 = vmatmul.bf16.gmra.mxu0 %v3874
      %v3915 = vpop.f32.mrf.mxu0
      %v3916 = vadd.f32 0.0, %v3915
      %v3917 = vpop.f32.mrf.mxu0
      %v3918 = vadd.f32 0.0, %v3917
      %3919 = vmatmul.bf16.gmra.mxu0 %v3877
      %v3920 = vpop.f32.mrf.mxu0
      %v3921 = vadd.f32 0.0, %v3920
      %v3922 = vpop.f32.mrf.mxu0
      %v3923 = vadd.f32 0.0, %v3922
      %3924 = vmatmul.bf16.gmra.mxu0 %v3880
      %v3925 = vpop.f32.mrf.mxu0
      %v3926 = vadd.f32 0.0, %v3925
      %v3927 = vpop.f32.mrf.mxu0
      %v3928 = vadd.f32 0.0, %v3927
      %3929 = vmatmul.bf16.gmra.mxu0 %v3883
      %v3930 = vpop.f32.mrf.mxu0
      %v3931 = vadd.f32 0.0, %v3930
      %v3932 = vpop.f32.mrf.mxu0
      %v3933 = vadd.f32 0.0, %v3932
      %3934 = vmatmul.bf16.gmra.mxu0 %v3886
      %v3935 = vpop.f32.mrf.mxu0
      %v3936 = vadd.f32 0.0, %v3935
      %v3937 = vpop.f32.mrf.mxu0
      %v3938 = vadd.f32 0.0, %v3937
      %3939 = vdwg.mxu0
      %v3940 = vadd.f32 %v3719, %v3901
      %v3941 = vadd.f32 %v3721, %v3903
      %v3942 = vadd.f32 %v3724, %v3906
      %v3943 = vadd.f32 %v3726, %v3908
      %v3944 = vadd.f32 %v3729, %v3911
      %v3945 = vadd.f32 %v3731, %v3913
      %v3946 = vadd.f32 %v3734, %v3916
      %v3947 = vadd.f32 %v3736, %v3918
      %v3948 = vadd.f32 %v3739, %v3921
      %v3949 = vadd.f32 %v3741, %v3923
      %v3950 = vadd.f32 %v3744, %v3926
      %v3951 = vadd.f32 %v3746, %v3928
      %v3952 = vadd.f32 %v3749, %v3931
      %v3953 = vadd.f32 %v3751, %v3933
      %v3954 = vadd.f32 %v3754, %v3936
      %v3955 = vadd.f32 %v3756, %v3938
      %s3956 = scalar_lea.vmem [#allocation2], 12
      %v3957 = vld [vmem:[%s3956] sm:$0xf]
      %v3958 = vld [vmem:[%s3956 + $0x4] sm:$0xf]
      %v3959 = vld [vmem:[%s3956 + $0xc] sm:$0xf]
      %v3960 = vld [vmem:[%s3956 + $0x10] sm:$0xf]
      %v3961 = vld [vmem:[%s3956 + $0x18] sm:$0xf]
      %v3962 = vld [vmem:[%s3956 + $0x1c] sm:$0xf]
      %v3963 = vld [vmem:[%s3956 + $0x24] sm:$0xf]
      %v3964 = vld [vmem:[%s3956 + $0x28] sm:$0xf]
      %v3965 = vld [vmem:[%s3956 + $0x30] sm:$0xf]
      %v3966 = vld [vmem:[%s3956 + $0x34] sm:$0xf]
      %v3967 = vld [vmem:[%s3956 + $0x3c] sm:$0xf]
      %v3968 = vld [vmem:[%s3956 + $0x40] sm:$0xf]
      %v3969 = vld [vmem:[%s3956 + $0x48] sm:$0xf]
      %v3970 = vld [vmem:[%s3956 + $0x4c] sm:$0xf]
      %v3971 = vld [vmem:[%s3956 + $0x54] sm:$0xf]
      %v3972 = vld [vmem:[%s3956 + $0x58] sm:$0xf]
      %s3973 = scalar_lea.vmem %s3, 6
      %v3974 = vld [vmem:[%s3973] sm:$0x3]
      %v3991 = vunpack.c.l.b16 %v3957
      %v3992 = vunpack.c.l.b16 %v3958
      %v3993 = vunpack.c.l.b16 %v3959
      %v3994 = vunpack.c.l.b16 %v3960
      %v3995 = vunpack.c.l.b16 %v3961
      %v3996 = vunpack.c.l.b16 %v3962
      %v3997 = vunpack.c.l.b16 %v3963
      %v3998 = vunpack.c.l.b16 %v3964
      %v3999 = vunpack.c.l.b16 %v3965
      %v4000 = vunpack.c.l.b16 %v3966
      %v4001 = vunpack.c.l.b16 %v3967
      %v4002 = vunpack.c.l.b16 %v3968
      %v4003 = vunpack.c.l.b16 %v3969
      %v4004 = vunpack.c.l.b16 %v3970
      %v4005 = vunpack.c.l.b16 %v3971
      %v4006 = vunpack.c.l.b16 %v3972
      %v4007 = vpack.c.b16 %v3992, %v3991
      %v4008 = vpack.c.b16 %v3994, %v3993
      %v4009 = vpack.c.b16 %v3996, %v3995
      %v4010 = vpack.c.b16 %v3998, %v3997
      %v4011 = vpack.c.b16 %v4000, %v3999
      %v4012 = vpack.c.b16 %v4002, %v4001
      %v4013 = vpack.c.b16 %v4004, %v4003
      %v4014 = vpack.c.b16 %v4006, %v4005
      %v4016 = vsel %vm689, %v4007, 0
      %v4019 = vsel %vm689, %v4008, 0
      %v4022 = vsel %vm689, %v4009, 0
      %v4025 = vsel %vm689, %v4010, 0
      %v4028 = vsel %vm689, %v4011, 0
      %v4031 = vsel %vm689, %v4012, 0
      %v4034 = vsel %vm689, %v4013, 0
      %v4037 = vsel %vm689, %v4014, 0
      %v4040 = vsel %vm720, %v3974, 0
      %4042 = vmatpush.bf16.msra.mxu0 0
      %4043 = vmatpush.bf16.msra.mxu0 0
      %4044 = vmatpush.bf16.msra.mxu0 0
      %4045 = vmatpush.bf16.msra.mxu0 0
      %4046 = vmatpush.bf16.msra.mxu0 0
      %4047 = vmatpush.bf16.msra.mxu0 0
      %4048 = vmatpush.bf16.msra.mxu0 0
      %4049 = vmatpush.bf16.msra.mxu0 %v4040
      %4050 = vmatmul.bf16.gmra.mxu0 %v4016
      %v4051 = vpop.f32.mrf.mxu0
      %v4052 = vadd.f32 0.0, %v4051
      %v4053 = vpop.f32.mrf.mxu0
      %v4054 = vadd.f32 0.0, %v4053
      %4055 = vmatmul.bf16.gmra.mxu0 %v4019
      %v4056 = vpop.f32.mrf.mxu0
      %v4057 = vadd.f32 0.0, %v4056
      %v4058 = vpop.f32.mrf.mxu0
      %v4059 = vadd.f32 0.0, %v4058
      %4060 = vmatmul.bf16.gmra.mxu0 %v4022
      %v4061 = vpop.f32.mrf.mxu0
      %v4062 = vadd.f32 0.0, %v4061
      %v4063 = vpop.f32.mrf.mxu0
      %v4064 = vadd.f32 0.0, %v4063
      %4065 = vmatmul.bf16.gmra.mxu0 %v4025
      %v4066 = vpop.f32.mrf.mxu0
      %v4067 = vadd.f32 0.0, %v4066
      %v4068 = vpop.f32.mrf.mxu0
      %v4069 = vadd.f32 0.0, %v4068
      %4070 = vmatmul.bf16.gmra.mxu0 %v4028
      %v4071 = vpop.f32.mrf.mxu0
      %v4072 = vadd.f32 0.0, %v4071
      %v4073 = vpop.f32.mrf.mxu0
      %v4074 = vadd.f32 0.0, %v4073
      %4075 = vmatmul.bf16.gmra.mxu0 %v4031
      %v4076 = vpop.f32.mrf.mxu0
      %v4077 = vadd.f32 0.0, %v4076
      %v4078 = vpop.f32.mrf.mxu0
      %v4079 = vadd.f32 0.0, %v4078
      %4080 = vmatmul.bf16.gmra.mxu0 %v4034
      %v4081 = vpop.f32.mrf.mxu0
      %v4082 = vadd.f32 0.0, %v4081
      %v4083 = vpop.f32.mrf.mxu0
      %v4084 = vadd.f32 0.0, %v4083
      %4085 = vmatmul.bf16.gmra.mxu0 %v4037
      %v4086 = vpop.f32.mrf.mxu0
      %v4087 = vadd.f32 0.0, %v4086
      %v4088 = vpop.f32.mrf.mxu0
      %v4089 = vadd.f32 0.0, %v4088
      %4090 = vdwg.mxu0
      %v4091 = vadd.f32 %v3940, %v4052
      %v4092 = vadd.f32 %v3941, %v4054
      %v4093 = vadd.f32 %v3942, %v4057
      %v4094 = vadd.f32 %v3943, %v4059
      %v4095 = vadd.f32 %v3944, %v4062
      %v4096 = vadd.f32 %v3945, %v4064
      %v4097 = vadd.f32 %v3946, %v4067
      %v4098 = vadd.f32 %v3947, %v4069
      %v4099 = vadd.f32 %v3948, %v4072
      %v4100 = vadd.f32 %v3949, %v4074
      %v4101 = vadd.f32 %v3950, %v4077
      %v4102 = vadd.f32 %v3951, %v4079
      %v4103 = vadd.f32 %v3952, %v4082
      %v4104 = vadd.f32 %v3953, %v4084
      %v4105 = vadd.f32 %v3954, %v4087
      %v4106 = vadd.f32 %v3955, %v4089
      %v4107 = vld [vmem:[%s3956] sm:$0xf]
      %v4108 = vld [vmem:[%s3956 + $0x4] sm:$0xf]
      %v4109 = vld [vmem:[%s3956 + $0x8] sm:$0x1]
      %v4110 = vld [vmem:[%s3956 + $0xc] sm:$0xf]
      %v4111 = vld [vmem:[%s3956 + $0x10] sm:$0xf]
      %v4112 = vld [vmem:[%s3956 + $0x14] sm:$0x1]
      %v4113 = vld [vmem:[%s3956 + $0x18] sm:$0xf]
      %v4114 = vld [vmem:[%s3956 + $0x1c] sm:$0xf]
      %v4115 = vld [vmem:[%s3956 + $0x20] sm:$0x1]
      %v4116 = vld [vmem:[%s3956 + $0x24] sm:$0xf]
      %v4117 = vld [vmem:[%s3956 + $0x28] sm:$0xf]
      %v4118 = vld [vmem:[%s3956 + $0x2c] sm:$0x1]
      %v4119 = vld [vmem:[%s3956 + $0x30] sm:$0xf]
      %v4120 = vld [vmem:[%s3956 + $0x34] sm:$0xf]
      %v4121 = vld [vmem:[%s3956 + $0x38] sm:$0x1]
      %v4122 = vld [vmem:[%s3956 + $0x3c] sm:$0xf]
      %v4123 = vld [vmem:[%s3956 + $0x40] sm:$0xf]
      %v4124 = vld [vmem:[%s3956 + $0x44] sm:$0x1]
      %v4125 = vld [vmem:[%s3956 + $0x48] sm:$0xf]
      %v4126 = vld [vmem:[%s3956 + $0x4c] sm:$0xf]
      %v4127 = vld [vmem:[%s3956 + $0x50] sm:$0x1]
      %v4128 = vld [vmem:[%s3956 + $0x54] sm:$0xf]
      %v4129 = vld [vmem:[%s3956 + $0x58] sm:$0xf]
      %v4130 = vld [vmem:[%s3956 + $0x5c] sm:$0x1]
      %v4132 = vshrl.u32 %v4107, 16
      %v4134 = vrot.slane %v4132, 4
      %v4135 = vshll.u32 %v4107, 16
      %v4137 = vrot.slane %v4135, 5
      %v4138 = vor.u32 %v4134, %v4137
      %v4139 = vrot.slane %v4138, 4
      %v4141 = vshll.u32 %v4108, 16
      %v4143 = vrot.slane %v4141, 5
      %v4144 = vsel %vm416, %v4139, %v4143
      %v4145 = vshrl.u32 %v4108, 16
      %v4147 = vrot.slane %v4145, 4
      %v4148 = vor.u32 %v4147, %v4143
      %v4149 = vrot.slane %v4148, 4
      %v4151 = vshll.u32 %v4109, 16
      %v4153 = vrot.slane %v4151, 5
      %v4154 = vsel %vm416, %v4149, %v4153
      %v4156 = vshrl.u32 %v4110, 16
      %v4158 = vrot.slane %v4156, 4
      %v4159 = vshll.u32 %v4110, 16
      %v4161 = vrot.slane %v4159, 5
      %v4162 = vor.u32 %v4158, %v4161
      %v4163 = vrot.slane %v4162, 4
      %v4165 = vshll.u32 %v4111, 16
      %v4167 = vrot.slane %v4165, 5
      %v4168 = vsel %vm416, %v4163, %v4167
      %v4169 = vshrl.u32 %v4111, 16
      %v4171 = vrot.slane %v4169, 4
      %v4172 = vor.u32 %v4171, %v4167
      %v4173 = vrot.slane %v4172, 4
      %v4175 = vshll.u32 %v4112, 16
      %v4177 = vrot.slane %v4175, 5
      %v4178 = vsel %vm416, %v4173, %v4177
      %v4180 = vshrl.u32 %v4113, 16
      %v4182 = vrot.slane %v4180, 4
      %v4183 = vshll.u32 %v4113, 16
      %v4185 = vrot.slane %v4183, 5
      %v4186 = vor.u32 %v4182, %v4185
      %v4187 = vrot.slane %v4186, 4
      %v4189 = vshll.u32 %v4114, 16
      %v4191 = vrot.slane %v4189, 5
      %v4192 = vsel %vm416, %v4187, %v4191
      %v4193 = vshrl.u32 %v4114, 16
      %v4195 = vrot.slane %v4193, 4
      %v4196 = vor.u32 %v4195, %v4191
      %v4197 = vrot.slane %v4196, 4
      %v4199 = vshll.u32 %v4115, 16
      %v4201 = vrot.slane %v4199, 5
      %v4202 = vsel %vm416, %v4197, %v4201
      %v4204 = vshrl.u32 %v4116, 16
      %v4206 = vrot.slane %v4204, 4
      %v4207 = vshll.u32 %v4116, 16
      %v4209 = vrot.slane %v4207, 5
      %v4210 = vor.u32 %v4206, %v4209
      %v4211 = vrot.slane %v4210, 4
      %v4213 = vshll.u32 %v4117, 16
      %v4215 = vrot.slane %v4213, 5
      %v4216 = vsel %vm416, %v4211, %v4215
      %v4217 = vshrl.u32 %v4117, 16
      %v4219 = vrot.slane %v4217, 4
      %v4220 = vor.u32 %v4219, %v4215
      %v4221 = vrot.slane %v4220, 4
      %v4223 = vshll.u32 %v4118, 16
      %v4225 = vrot.slane %v4223, 5
      %v4226 = vsel %vm416, %v4221, %v4225
      %v4228 = vshrl.u32 %v4119, 16
      %v4230 = vrot.slane %v4228, 4
      %v4231 = vshll.u32 %v4119, 16
      %v4233 = vrot.slane %v4231, 5
      %v4234 = vor.u32 %v4230, %v4233
      %v4235 = vrot.slane %v4234, 4
      %v4237 = vshll.u32 %v4120, 16
      %v4239 = vrot.slane %v4237, 5
      %v4240 = vsel %vm416, %v4235, %v4239
      %v4241 = vshrl.u32 %v4120, 16
      %v4243 = vrot.slane %v4241, 4
      %v4244 = vor.u32 %v4243, %v4239
      %v4245 = vrot.slane %v4244, 4
      %v4247 = vshll.u32 %v4121, 16
      %v4249 = vrot.slane %v4247, 5
      %v4250 = vsel %vm416, %v4245, %v4249
      %v4252 = vshrl.u32 %v4122, 16
      %v4254 = vrot.slane %v4252, 4
      %v4255 = vshll.u32 %v4122, 16
      %v4257 = vrot.slane %v4255, 5
      %v4258 = vor.u32 %v4254, %v4257
      %v4259 = vrot.slane %v4258, 4
      %v4261 = vshll.u32 %v4123, 16
      %v4263 = vrot.slane %v4261, 5
      %v4264 = vsel %vm416, %v4259, %v4263
      %v4265 = vshrl.u32 %v4123, 16
      %v4267 = vrot.slane %v4265, 4
      %v4268 = vor.u32 %v4267, %v4263
      %v4269 = vrot.slane %v4268, 4
      %v4271 = vshll.u32 %v4124, 16
      %v4273 = vrot.slane %v4271, 5
      %v4274 = vsel %vm416, %v4269, %v4273
      %v4276 = vshrl.u32 %v4125, 16
      %v4278 = vrot.slane %v4276, 4
      %v4279 = vshll.u32 %v4125, 16
      %v4281 = vrot.slane %v4279, 5
      %v4282 = vor.u32 %v4278, %v4281
      %v4283 = vrot.slane %v4282, 4
      %v4285 = vshll.u32 %v4126, 16
      %v4287 = vrot.slane %v4285, 5
      %v4288 = vsel %vm416, %v4283, %v4287
      %v4289 = vshrl.u32 %v4126, 16
      %v4291 = vrot.slane %v4289, 4
      %v4292 = vor.u32 %v4291, %v4287
      %v4293 = vrot.slane %v4292, 4
      %v4295 = vshll.u32 %v4127, 16
      %v4297 = vrot.slane %v4295, 5
      %v4298 = vsel %vm416, %v4293, %v4297
      %v4300 = vshrl.u32 %v4128, 16
      %v4302 = vrot.slane %v4300, 4
      %v4303 = vshll.u32 %v4128, 16
      %v4305 = vrot.slane %v4303, 5
      %v4306 = vor.u32 %v4302, %v4305
      %v4307 = vrot.slane %v4306, 4
      %v4309 = vshll.u32 %v4129, 16
      %v4311 = vrot.slane %v4309, 5
      %v4312 = vsel %vm416, %v4307, %v4311
      %v4313 = vshrl.u32 %v4129, 16
      %v4315 = vrot.slane %v4313, 4
      %v4316 = vor.u32 %v4315, %v4311
      %v4317 = vrot.slane %v4316, 4
      %v4319 = vshll.u32 %v4130, 16
      %v4321 = vrot.slane %v4319, 5
      %v4322 = vsel %vm416, %v4317, %v4321
      %s4323 = scalar_lea.vmem %s3, 8
      %v4324 = vld [vmem:[%s4323] sm:$0x3]
      %v4325 = vunpack.c.l.b16 %v4144
      %v4326 = vunpack.c.l.b16 %v4154
      %v4327 = vunpack.c.l.b16 %v4168
      %v4328 = vunpack.c.l.b16 %v4178
      %v4329 = vunpack.c.l.b16 %v4192
      %v4330 = vunpack.c.l.b16 %v4202
      %v4331 = vunpack.c.l.b16 %v4216
      %v4332 = vunpack.c.l.b16 %v4226
      %v4333 = vunpack.c.l.b16 %v4240
      %v4334 = vunpack.c.l.b16 %v4250
      %v4335 = vunpack.c.l.b16 %v4264
      %v4336 = vunpack.c.l.b16 %v4274
      %v4337 = vunpack.c.l.b16 %v4288
      %v4338 = vunpack.c.l.b16 %v4298
      %v4339 = vunpack.c.l.b16 %v4312
      %v4340 = vunpack.c.l.b16 %v4322
      %v4341 = vpack.c.b16 %v4326, %v4325
      %v4342 = vpack.c.b16 %v4328, %v4327
      %v4343 = vpack.c.b16 %v4330, %v4329
      %v4344 = vpack.c.b16 %v4332, %v4331
      %v4345 = vpack.c.b16 %v4334, %v4333
      %v4346 = vpack.c.b16 %v4336, %v4335
      %v4347 = vpack.c.b16 %v4338, %v4337
      %v4348 = vpack.c.b16 %v4340, %v4339
      %v4350 = vsel %vm689, %v4341, 0
      %v4353 = vsel %vm689, %v4342, 0
      %v4356 = vsel %vm689, %v4343, 0
      %v4359 = vsel %vm689, %v4344, 0
      %v4362 = vsel %vm689, %v4345, 0
      %v4365 = vsel %vm689, %v4346, 0
      %v4368 = vsel %vm689, %v4347, 0
      %v4371 = vsel %vm689, %v4348, 0
      %v4374 = vsel %vm720, %v4324, 0
      %4376 = vmatpush.bf16.msra.mxu0 0
      %4377 = vmatpush.bf16.msra.mxu0 0
      %4378 = vmatpush.bf16.msra.mxu0 0
      %4379 = vmatpush.bf16.msra.mxu0 0
      %4380 = vmatpush.bf16.msra.mxu0 0
      %4381 = vmatpush.bf16.msra.mxu0 0
      %4382 = vmatpush.bf16.msra.mxu0 0
      %4383 = vmatpush.bf16.msra.mxu0 %v4374
      %4384 = vmatmul.bf16.gmra.mxu0 %v4350
      %v4385 = vpop.f32.mrf.mxu0
      %v4386 = vadd.f32 0.0, %v4385
      %v4387 = vpop.f32.mrf.mxu0
      %v4388 = vadd.f32 0.0, %v4387
      %4389 = vmatmul.bf16.gmra.mxu0 %v4353
      %v4390 = vpop.f32.mrf.mxu0
      %v4391 = vadd.f32 0.0, %v4390
      %v4392 = vpop.f32.mrf.mxu0
      %v4393 = vadd.f32 0.0, %v4392
      %4394 = vmatmul.bf16.gmra.mxu0 %v4356
      %v4395 = vpop.f32.mrf.mxu0
      %v4396 = vadd.f32 0.0, %v4395
      %v4397 = vpop.f32.mrf.mxu0
      %v4398 = vadd.f32 0.0, %v4397
      %4399 = vmatmul.bf16.gmra.mxu0 %v4359
      %v4400 = vpop.f32.mrf.mxu0
      %v4401 = vadd.f32 0.0, %v4400
      %v4402 = vpop.f32.mrf.mxu0
      %v4403 = vadd.f32 0.0, %v4402
      %4404 = vmatmul.bf16.gmra.mxu0 %v4362
      %v4405 = vpop.f32.mrf.mxu0
      %v4406 = vadd.f32 0.0, %v4405
      %v4407 = vpop.f32.mrf.mxu0
      %v4408 = vadd.f32 0.0, %v4407
      %4409 = vmatmul.bf16.gmra.mxu0 %v4365
      %v4410 = vpop.f32.mrf.mxu0
      %v4411 = vadd.f32 0.0, %v4410
      %v4412 = vpop.f32.mrf.mxu0
      %v4413 = vadd.f32 0.0, %v4412
      %4414 = vmatmul.bf16.gmra.mxu0 %v4368
      %v4415 = vpop.f32.mrf.mxu0
      %v4416 = vadd.f32 0.0, %v4415
      %v4417 = vpop.f32.mrf.mxu0
      %v4418 = vadd.f32 0.0, %v4417
      %4419 = vmatmul.bf16.gmra.mxu0 %v4371
      %v4420 = vpop.f32.mrf.mxu0
      %v4421 = vadd.f32 0.0, %v4420
      %v4422 = vpop.f32.mrf.mxu0
      %v4423 = vadd.f32 0.0, %v4422
      %4424 = vdwg.mxu0
      %v4425 = vadd.f32 %v4091, %v4386
      %v4426 = vadd.f32 %v4092, %v4388
      %v4427 = vadd.f32 %v4093, %v4391
      %v4428 = vadd.f32 %v4094, %v4393
      %v4429 = vadd.f32 %v4095, %v4396
      %v4430 = vadd.f32 %v4096, %v4398
      %v4431 = vadd.f32 %v4097, %v4401
      %v4432 = vadd.f32 %v4098, %v4403
      %v4433 = vadd.f32 %v4099, %v4406
      %v4434 = vadd.f32 %v4100, %v4408
      %v4435 = vadd.f32 %v4101, %v4411
      %v4436 = vadd.f32 %v4102, %v4413
      %v4437 = vadd.f32 %v4103, %v4416
      %v4438 = vadd.f32 %v4104, %v4418
      %v4439 = vadd.f32 %v4105, %v4421
      %v4440 = vadd.f32 %v4106, %v4423
      %v4441 = vld [vmem:[%s3956] sm:$0xe]
      %v4442 = vld [vmem:[%s3956 + $0xc] sm:$0xe]
      %v4443 = vld [vmem:[%s3956 + $0x18] sm:$0xe]
      %v4444 = vld [vmem:[%s3956 + $0x24] sm:$0xe]
      %v4445 = vld [vmem:[%s3956 + $0x30] sm:$0xe]
      %v4446 = vld [vmem:[%s3956 + $0x3c] sm:$0xe]
      %v4447 = vld [vmem:[%s3956 + $0x48] sm:$0xe]
      %v4448 = vld [vmem:[%s3956 + $0x54] sm:$0xe]
      %v4473 = vrot.slane %v4441, 5
      %v4474 = vrot.slane %v4473, 4
      %v4475 = vrot.slane %v4108, 5
      %v4476 = vsel %vm957, %v4474, %v4475
      %v4477 = vrot.slane %v4475, 4
      %v4478 = vrot.slane %v4109, 5
      %v4479 = vsel %vm957, %v4477, %v4478
      %v4480 = vrot.slane %v4442, 5
      %v4481 = vrot.slane %v4480, 4
      %v4482 = vrot.slane %v4111, 5
      %v4483 = vsel %vm957, %v4481, %v4482
      %v4484 = vrot.slane %v4482, 4
      %v4485 = vrot.slane %v4112, 5
      %v4486 = vsel %vm957, %v4484, %v4485
      %v4487 = vrot.slane %v4443, 5
      %v4488 = vrot.slane %v4487, 4
      %v4489 = vrot.slane %v4114, 5
      %v4490 = vsel %vm957, %v4488, %v4489
      %v4491 = vrot.slane %v4489, 4
      %v4492 = vrot.slane %v4115, 5
      %v4493 = vsel %vm957, %v4491, %v4492
      %v4494 = vrot.slane %v4444, 5
      %v4495 = vrot.slane %v4494, 4
      %v4496 = vrot.slane %v4117, 5
      %v4497 = vsel %vm957, %v4495, %v4496
      %v4498 = vrot.slane %v4496, 4
      %v4499 = vrot.slane %v4118, 5
      %v4500 = vsel %vm957, %v4498, %v4499
      %v4501 = vrot.slane %v4445, 5
      %v4502 = vrot.slane %v4501, 4
      %v4503 = vrot.slane %v4120, 5
      %v4504 = vsel %vm957, %v4502, %v4503
      %v4505 = vrot.slane %v4503, 4
      %v4506 = vrot.slane %v4121, 5
      %v4507 = vsel %vm957, %v4505, %v4506
      %v4508 = vrot.slane %v4446, 5
      %v4509 = vrot.slane %v4508, 4
      %v4510 = vrot.slane %v4123, 5
      %v4511 = vsel %vm957, %v4509, %v4510
      %v4512 = vrot.slane %v4510, 4
      %v4513 = vrot.slane %v4124, 5
      %v4514 = vsel %vm957, %v4512, %v4513
      %v4515 = vrot.slane %v4447, 5
      %v4516 = vrot.slane %v4515, 4
      %v4517 = vrot.slane %v4126, 5
      %v4518 = vsel %vm957, %v4516, %v4517
      %v4519 = vrot.slane %v4517, 4
      %v4520 = vrot.slane %v4127, 5
      %v4521 = vsel %vm957, %v4519, %v4520
      %v4522 = vrot.slane %v4448, 5
      %v4523 = vrot.slane %v4522, 4
      %v4524 = vrot.slane %v4129, 5
      %v4525 = vsel %vm957, %v4523, %v4524
      %v4526 = vrot.slane %v4524, 4
      %v4527 = vrot.slane %v4130, 5
      %v4528 = vsel %vm957, %v4526, %v4527
      %s4529 = scalar_lea.vmem %s3, 10
      %v4530 = vld [vmem:[%s4529] sm:$0x3]
      %v4531 = vunpack.c.l.b16 %v4476
      %v4532 = vunpack.c.l.b16 %v4479
      %v4533 = vunpack.c.l.b16 %v4483
      %v4534 = vunpack.c.l.b16 %v4486
      %v4535 = vunpack.c.l.b16 %v4490
      %v4536 = vunpack.c.l.b16 %v4493
      %v4537 = vunpack.c.l.b16 %v4497
      %v4538 = vunpack.c.l.b16 %v4500
      %v4539 = vunpack.c.l.b16 %v4504
      %v4540 = vunpack.c.l.b16 %v4507
      %v4541 = vunpack.c.l.b16 %v4511
      %v4542 = vunpack.c.l.b16 %v4514
      %v4543 = vunpack.c.l.b16 %v4518
      %v4544 = vunpack.c.l.b16 %v4521
      %v4545 = vunpack.c.l.b16 %v4525
      %v4546 = vunpack.c.l.b16 %v4528
      %v4547 = vpack.c.b16 %v4532, %v4531
      %v4548 = vpack.c.b16 %v4534, %v4533
      %v4549 = vpack.c.b16 %v4536, %v4535
      %v4550 = vpack.c.b16 %v4538, %v4537
      %v4551 = vpack.c.b16 %v4540, %v4539
      %v4552 = vpack.c.b16 %v4542, %v4541
      %v4553 = vpack.c.b16 %v4544, %v4543
      %v4554 = vpack.c.b16 %v4546, %v4545
      %v4556 = vsel %vm689, %v4547, 0
      %v4559 = vsel %vm689, %v4548, 0
      %v4562 = vsel %vm689, %v4549, 0
      %v4565 = vsel %vm689, %v4550, 0
      %v4568 = vsel %vm689, %v4551, 0
      %v4571 = vsel %vm689, %v4552, 0
      %v4574 = vsel %vm689, %v4553, 0
      %v4577 = vsel %vm689, %v4554, 0
      %v4580 = vsel %vm720, %v4530, 0
      %4582 = vmatpush.bf16.msra.mxu0 0
      %4583 = vmatpush.bf16.msra.mxu0 0
      %4584 = vmatpush.bf16.msra.mxu0 0
      %4585 = vmatpush.bf16.msra.mxu0 0
      %4586 = vmatpush.bf16.msra.mxu0 0
      %4587 = vmatpush.bf16.msra.mxu0 0
      %4588 = vmatpush.bf16.msra.mxu0 0
      %4589 = vmatpush.bf16.msra.mxu0 %v4580
      %4590 = vmatmul.bf16.gmra.mxu0 %v4556
      %v4591 = vpop.f32.mrf.mxu0
      %v4592 = vadd.f32 0.0, %v4591
      %v4593 = vpop.f32.mrf.mxu0
      %v4594 = vadd.f32 0.0, %v4593
      %4595 = vmatmul.bf16.gmra.mxu0 %v4559
      %v4596 = vpop.f32.mrf.mxu0
      %v4597 = vadd.f32 0.0, %v4596
      %v4598 = vpop.f32.mrf.mxu0
      %v4599 = vadd.f32 0.0, %v4598
      %4600 = vmatmul.bf16.gmra.mxu0 %v4562
      %v4601 = vpop.f32.mrf.mxu0
      %v4602 = vadd.f32 0.0, %v4601
      %v4603 = vpop.f32.mrf.mxu0
      %v4604 = vadd.f32 0.0, %v4603
      %4605 = vmatmul.bf16.gmra.mxu0 %v4565
      %v4606 = vpop.f32.mrf.mxu0
      %v4607 = vadd.f32 0.0, %v4606
      %v4608 = vpop.f32.mrf.mxu0
      %v4609 = vadd.f32 0.0, %v4608
      %4610 = vmatmul.bf16.gmra.mxu0 %v4568
      %v4611 = vpop.f32.mrf.mxu0
      %v4612 = vadd.f32 0.0, %v4611
      %v4613 = vpop.f32.mrf.mxu0
      %v4614 = vadd.f32 0.0, %v4613
      %4615 = vmatmul.bf16.gmra.mxu0 %v4571
      %v4616 = vpop.f32.mrf.mxu0
      %v4617 = vadd.f32 0.0, %v4616
      %v4618 = vpop.f32.mrf.mxu0
      %v4619 = vadd.f32 0.0, %v4618
      %4620 = vmatmul.bf16.gmra.mxu0 %v4574
      %v4621 = vpop.f32.mrf.mxu0
      %v4622 = vadd.f32 0.0, %v4621
      %v4623 = vpop.f32.mrf.mxu0
      %v4624 = vadd.f32 0.0, %v4623
      %4625 = vmatmul.bf16.gmra.mxu0 %v4577
      %v4626 = vpop.f32.mrf.mxu0
      %v4627 = vadd.f32 0.0, %v4626
      %v4628 = vpop.f32.mrf.mxu0
      %v4629 = vadd.f32 0.0, %v4628
      %4630 = vdwg.mxu0
      %v4631 = vadd.f32 %v4425, %v4592
      %v4632 = vadd.f32 %v4426, %v4594
      %v4633 = vadd.f32 %v4427, %v4597
      %v4634 = vadd.f32 %v4428, %v4599
      %v4635 = vadd.f32 %v4429, %v4602
      %v4636 = vadd.f32 %v4430, %v4604
      %v4637 = vadd.f32 %v4431, %v4607
      %v4638 = vadd.f32 %v4432, %v4609
      %v4639 = vadd.f32 %v4433, %v4612
      %v4640 = vadd.f32 %v4434, %v4614
      %v4641 = vadd.f32 %v4435, %v4617
      %v4642 = vadd.f32 %v4436, %v4619
      %v4643 = vadd.f32 %v4437, %v4622
      %v4644 = vadd.f32 %v4438, %v4624
      %v4645 = vadd.f32 %v4439, %v4627
      %v4646 = vadd.f32 %v4440, %v4629
      %s4647 = scalar_lea.vmem [#allocation2], 24
      %v4648 = vld [vmem:[%s4647] sm:$0xf]
      %v4649 = vld [vmem:[%s4647 + $0x4] sm:$0xf]
      %v4650 = vld [vmem:[%s4647 + $0xc] sm:$0xf]
      %v4651 = vld [vmem:[%s4647 + $0x10] sm:$0xf]
      %v4652 = vld [vmem:[%s4647 + $0x18] sm:$0xf]
      %v4653 = vld [vmem:[%s4647 + $0x1c] sm:$0xf]
      %v4654 = vld [vmem:[%s4647 + $0x24] sm:$0xf]
      %v4655 = vld [vmem:[%s4647 + $0x28] sm:$0xf]
      %v4656 = vld [vmem:[%s4647 + $0x30] sm:$0xf]
      %v4657 = vld [vmem:[%s4647 + $0x34] sm:$0xf]
      %v4658 = vld [vmem:[%s4647 + $0x3c] sm:$0xf]
      %v4659 = vld [vmem:[%s4647 + $0x40] sm:$0xf]
      %v4660 = vld [vmem:[%s4647 + $0x48] sm:$0xf]
      %v4661 = vld [vmem:[%s4647 + $0x4c] sm:$0xf]
      %v4662 = vld [vmem:[%s4647 + $0x54] sm:$0xf]
      %v4663 = vld [vmem:[%s4647 + $0x58] sm:$0xf]
      %s4664 = scalar_lea.vmem %s3, 12
      %v4665 = vld [vmem:[%s4664] sm:$0x3]
      %v4682 = vunpack.c.l.b16 %v4648
      %v4683 = vunpack.c.l.b16 %v4649
      %v4684 = vunpack.c.l.b16 %v4650
      %v4685 = vunpack.c.l.b16 %v4651
      %v4686 = vunpack.c.l.b16 %v4652
      %v4687 = vunpack.c.l.b16 %v4653
      %v4688 = vunpack.c.l.b16 %v4654
      %v4689 = vunpack.c.l.b16 %v4655
      %v4690 = vunpack.c.l.b16 %v4656
      %v4691 = vunpack.c.l.b16 %v4657
      %v4692 = vunpack.c.l.b16 %v4658
      %v4693 = vunpack.c.l.b16 %v4659
      %v4694 = vunpack.c.l.b16 %v4660
      %v4695 = vunpack.c.l.b16 %v4661
      %v4696 = vunpack.c.l.b16 %v4662
      %v4697 = vunpack.c.l.b16 %v4663
      %v4698 = vpack.c.b16 %v4683, %v4682
      %v4699 = vpack.c.b16 %v4685, %v4684
      %v4700 = vpack.c.b16 %v4687, %v4686
      %v4701 = vpack.c.b16 %v4689, %v4688
      %v4702 = vpack.c.b16 %v4691, %v4690
      %v4703 = vpack.c.b16 %v4693, %v4692
      %v4704 = vpack.c.b16 %v4695, %v4694
      %v4705 = vpack.c.b16 %v4697, %v4696
      %v4707 = vsel %vm689, %v4698, 0
      %v4710 = vsel %vm689, %v4699, 0
      %v4713 = vsel %vm689, %v4700, 0
      %v4716 = vsel %vm689, %v4701, 0
      %v4719 = vsel %vm689, %v4702, 0
      %v4722 = vsel %vm689, %v4703, 0
      %v4725 = vsel %vm689, %v4704, 0
      %v4728 = vsel %vm689, %v4705, 0
      %v4731 = vsel %vm720, %v4665, 0
      %4733 = vmatpush.bf16.msra.mxu0 0
      %4734 = vmatpush.bf16.msra.mxu0 0
      %4735 = vmatpush.bf16.msra.mxu0 0
      %4736 = vmatpush.bf16.msra.mxu0 0
      %4737 = vmatpush.bf16.msra.mxu0 0
      %4738 = vmatpush.bf16.msra.mxu0 0
      %4739 = vmatpush.bf16.msra.mxu0 0
      %4740 = vmatpush.bf16.msra.mxu0 %v4731
      %4741 = vmatmul.bf16.gmra.mxu0 %v4707
      %v4742 = vpop.f32.mrf.mxu0
      %v4743 = vadd.f32 0.0, %v4742
      %v4744 = vpop.f32.mrf.mxu0
      %v4745 = vadd.f32 0.0, %v4744
      %4746 = vmatmul.bf16.gmra.mxu0 %v4710
      %v4747 = vpop.f32.mrf.mxu0
      %v4748 = vadd.f32 0.0, %v4747
      %v4749 = vpop.f32.mrf.mxu0
      %v4750 = vadd.f32 0.0, %v4749
      %4751 = vmatmul.bf16.gmra.mxu0 %v4713
      %v4752 = vpop.f32.mrf.mxu0
      %v4753 = vadd.f32 0.0, %v4752
      %v4754 = vpop.f32.mrf.mxu0
      %v4755 = vadd.f32 0.0, %v4754
      %4756 = vmatmul.bf16.gmra.mxu0 %v4716
      %v4757 = vpop.f32.mrf.mxu0
      %v4758 = vadd.f32 0.0, %v4757
      %v4759 = vpop.f32.mrf.mxu0
      %v4760 = vadd.f32 0.0, %v4759
      %4761 = vmatmul.bf16.gmra.mxu0 %v4719
      %v4762 = vpop.f32.mrf.mxu0
      %v4763 = vadd.f32 0.0, %v4762
      %v4764 = vpop.f32.mrf.mxu0
      %v4765 = vadd.f32 0.0, %v4764
      %4766 = vmatmul.bf16.gmra.mxu0 %v4722
      %v4767 = vpop.f32.mrf.mxu0
      %v4768 = vadd.f32 0.0, %v4767
      %v4769 = vpop.f32.mrf.mxu0
      %v4770 = vadd.f32 0.0, %v4769
      %4771 = vmatmul.bf16.gmra.mxu0 %v4725
      %v4772 = vpop.f32.mrf.mxu0
      %v4773 = vadd.f32 0.0, %v4772
      %v4774 = vpop.f32.mrf.mxu0
      %v4775 = vadd.f32 0.0, %v4774
      %4776 = vmatmul.bf16.gmra.mxu0 %v4728
      %v4777 = vpop.f32.mrf.mxu0
      %v4778 = vadd.f32 0.0, %v4777
      %v4779 = vpop.f32.mrf.mxu0
      %v4780 = vadd.f32 0.0, %v4779
      %4781 = vdwg.mxu0
      %v4782 = vadd.f32 %v4631, %v4743
      %v4783 = vadd.f32 %v4632, %v4745
      %v4784 = vadd.f32 %v4633, %v4748
      %v4785 = vadd.f32 %v4634, %v4750
      %v4786 = vadd.f32 %v4635, %v4753
      %v4787 = vadd.f32 %v4636, %v4755
      %v4788 = vadd.f32 %v4637, %v4758
      %v4789 = vadd.f32 %v4638, %v4760
      %v4790 = vadd.f32 %v4639, %v4763
      %v4791 = vadd.f32 %v4640, %v4765
      %v4792 = vadd.f32 %v4641, %v4768
      %v4793 = vadd.f32 %v4642, %v4770
      %v4794 = vadd.f32 %v4643, %v4773
      %v4795 = vadd.f32 %v4644, %v4775
      %v4796 = vadd.f32 %v4645, %v4778
      %v4797 = vadd.f32 %v4646, %v4780
      %v4798 = vld [vmem:[%s4647] sm:$0xf]
      %v4799 = vld [vmem:[%s4647 + $0x4] sm:$0xf]
      %v4800 = vld [vmem:[%s4647 + $0x8] sm:$0x1]
      %v4801 = vld [vmem:[%s4647 + $0xc] sm:$0xf]
      %v4802 = vld [vmem:[%s4647 + $0x10] sm:$0xf]
      %v4803 = vld [vmem:[%s4647 + $0x14] sm:$0x1]
      %v4804 = vld [vmem:[%s4647 + $0x18] sm:$0xf]
      %v4805 = vld [vmem:[%s4647 + $0x1c] sm:$0xf]
      %v4806 = vld [vmem:[%s4647 + $0x20] sm:$0x1]
      %v4807 = vld [vmem:[%s4647 + $0x24] sm:$0xf]
      %v4808 = vld [vmem:[%s4647 + $0x28] sm:$0xf]
      %v4809 = vld [vmem:[%s4647 + $0x2c] sm:$0x1]
      %v4810 = vld [vmem:[%s4647 + $0x30] sm:$0xf]
      %v4811 = vld [vmem:[%s4647 + $0x34] sm:$0xf]
      %v4812 = vld [vmem:[%s4647 + $0x38] sm:$0x1]
      %v4813 = vld [vmem:[%s4647 + $0x3c] sm:$0xf]
      %v4814 = vld [vmem:[%s4647 + $0x40] sm:$0xf]
      %v4815 = vld [vmem:[%s4647 + $0x44] sm:$0x1]
      %v4816 = vld [vmem:[%s4647 + $0x48] sm:$0xf]
      %v4817 = vld [vmem:[%s4647 + $0x4c] sm:$0xf]
      %v4818 = vld [vmem:[%s4647 + $0x50] sm:$0x1]
      %v4819 = vld [vmem:[%s4647 + $0x54] sm:$0xf]
      %v4820 = vld [vmem:[%s4647 + $0x58] sm:$0xf]
      %v4821 = vld [vmem:[%s4647 + $0x5c] sm:$0x1]
      %v4823 = vshrl.u32 %v4798, 16
      %v4825 = vrot.slane %v4823, 4
      %v4826 = vshll.u32 %v4798, 16
      %v4828 = vrot.slane %v4826, 5
      %v4829 = vor.u32 %v4825, %v4828
      %v4830 = vrot.slane %v4829, 4
      %v4832 = vshll.u32 %v4799, 16
      %v4834 = vrot.slane %v4832, 5
      %v4835 = vsel %vm416, %v4830, %v4834
      %v4836 = vshrl.u32 %v4799, 16
      %v4838 = vrot.slane %v4836, 4
      %v4839 = vor.u32 %v4838, %v4834
      %v4840 = vrot.slane %v4839, 4
      %v4842 = vshll.u32 %v4800, 16
      %v4844 = vrot.slane %v4842, 5
      %v4845 = vsel %vm416, %v4840, %v4844
      %v4847 = vshrl.u32 %v4801, 16
      %v4849 = vrot.slane %v4847, 4
      %v4850 = vshll.u32 %v4801, 16
      %v4852 = vrot.slane %v4850, 5
      %v4853 = vor.u32 %v4849, %v4852
      %v4854 = vrot.slane %v4853, 4
      %v4856 = vshll.u32 %v4802, 16
      %v4858 = vrot.slane %v4856, 5
      %v4859 = vsel %vm416, %v4854, %v4858
      %v4860 = vshrl.u32 %v4802, 16
      %v4862 = vrot.slane %v4860, 4
      %v4863 = vor.u32 %v4862, %v4858
      %v4864 = vrot.slane %v4863, 4
      %v4866 = vshll.u32 %v4803, 16
      %v4868 = vrot.slane %v4866, 5
      %v4869 = vsel %vm416, %v4864, %v4868
      %v4871 = vshrl.u32 %v4804, 16
      %v4873 = vrot.slane %v4871, 4
      %v4874 = vshll.u32 %v4804, 16
      %v4876 = vrot.slane %v4874, 5
      %v4877 = vor.u32 %v4873, %v4876
      %v4878 = vrot.slane %v4877, 4
      %v4880 = vshll.u32 %v4805, 16
      %v4882 = vrot.slane %v4880, 5
      %v4883 = vsel %vm416, %v4878, %v4882
      %v4884 = vshrl.u32 %v4805, 16
      %v4886 = vrot.slane %v4884, 4
      %v4887 = vor.u32 %v4886, %v4882
      %v4888 = vrot.slane %v4887, 4
      %v4890 = vshll.u32 %v4806, 16
      %v4892 = vrot.slane %v4890, 5
      %v4893 = vsel %vm416, %v4888, %v4892
      %v4895 = vshrl.u32 %v4807, 16
      %v4897 = vrot.slane %v4895, 4
      %v4898 = vshll.u32 %v4807, 16
      %v4900 = vrot.slane %v4898, 5
      %v4901 = vor.u32 %v4897, %v4900
      %v4902 = vrot.slane %v4901, 4
      %v4904 = vshll.u32 %v4808, 16
      %v4906 = vrot.slane %v4904, 5
      %v4907 = vsel %vm416, %v4902, %v4906
      %v4908 = vshrl.u32 %v4808, 16
      %v4910 = vrot.slane %v4908, 4
      %v4911 = vor.u32 %v4910, %v4906
      %v4912 = vrot.slane %v4911, 4
      %v4914 = vshll.u32 %v4809, 16
      %v4916 = vrot.slane %v4914, 5
      %v4917 = vsel %vm416, %v4912, %v4916
      %v4919 = vshrl.u32 %v4810, 16
      %v4921 = vrot.slane %v4919, 4
      %v4922 = vshll.u32 %v4810, 16
      %v4924 = vrot.slane %v4922, 5
      %v4925 = vor.u32 %v4921, %v4924
      %v4926 = vrot.slane %v4925, 4
      %v4928 = vshll.u32 %v4811, 16
      %v4930 = vrot.slane %v4928, 5
      %v4931 = vsel %vm416, %v4926, %v4930
      %v4932 = vshrl.u32 %v4811, 16
      %v4934 = vrot.slane %v4932, 4
      %v4935 = vor.u32 %v4934, %v4930
      %v4936 = vrot.slane %v4935, 4
      %v4938 = vshll.u32 %v4812, 16
      %v4940 = vrot.slane %v4938, 5
      %v4941 = vsel %vm416, %v4936, %v4940
      %v4943 = vshrl.u32 %v4813, 16
      %v4945 = vrot.slane %v4943, 4
      %v4946 = vshll.u32 %v4813, 16
      %v4948 = vrot.slane %v4946, 5
      %v4949 = vor.u32 %v4945, %v4948
      %v4950 = vrot.slane %v4949, 4
      %v4952 = vshll.u32 %v4814, 16
      %v4954 = vrot.slane %v4952, 5
      %v4955 = vsel %vm416, %v4950, %v4954
      %v4956 = vshrl.u32 %v4814, 16
      %v4958 = vrot.slane %v4956, 4
      %v4959 = vor.u32 %v4958, %v4954
      %v4960 = vrot.slane %v4959, 4
      %v4962 = vshll.u32 %v4815, 16
      %v4964 = vrot.slane %v4962, 5
      %v4965 = vsel %vm416, %v4960, %v4964
      %v4967 = vshrl.u32 %v4816, 16
      %v4969 = vrot.slane %v4967, 4
      %v4970 = vshll.u32 %v4816, 16
      %v4972 = vrot.slane %v4970, 5
      %v4973 = vor.u32 %v4969, %v4972
      %v4974 = vrot.slane %v4973, 4
      %v4976 = vshll.u32 %v4817, 16
      %v4978 = vrot.slane %v4976, 5
      %v4979 = vsel %vm416, %v4974, %v4978
      %v4980 = vshrl.u32 %v4817, 16
      %v4982 = vrot.slane %v4980, 4
      %v4983 = vor.u32 %v4982, %v4978
      %v4984 = vrot.slane %v4983, 4
      %v4986 = vshll.u32 %v4818, 16
      %v4988 = vrot.slane %v4986, 5
      %v4989 = vsel %vm416, %v4984, %v4988
      %v4991 = vshrl.u32 %v4819, 16
      %v4993 = vrot.slane %v4991, 4
      %v4994 = vshll.u32 %v4819, 16
      %v4996 = vrot.slane %v4994, 5
      %v4997 = vor.u32 %v4993, %v4996
      %v4998 = vrot.slane %v4997, 4
      %v5000 = vshll.u32 %v4820, 16
      %v5002 = vrot.slane %v5000, 5
      %v5003 = vsel %vm416, %v4998, %v5002
      %v5004 = vshrl.u32 %v4820, 16
      %v5006 = vrot.slane %v5004, 4
      %v5007 = vor.u32 %v5006, %v5002
      %v5008 = vrot.slane %v5007, 4
      %v5010 = vshll.u32 %v4821, 16
      %v5012 = vrot.slane %v5010, 5
      %v5013 = vsel %vm416, %v5008, %v5012
      %s5014 = scalar_lea.vmem %s3, 14
      %v5015 = vld [vmem:[%s5014] sm:$0x3]
      %v5016 = vunpack.c.l.b16 %v4835
      %v5017 = vunpack.c.l.b16 %v4845
      %v5018 = vunpack.c.l.b16 %v4859
      %v5019 = vunpack.c.l.b16 %v4869
      %v5020 = vunpack.c.l.b16 %v4883
      %v5021 = vunpack.c.l.b16 %v4893
      %v5022 = vunpack.c.l.b16 %v4907
      %v5023 = vunpack.c.l.b16 %v4917
      %v5024 = vunpack.c.l.b16 %v4931
      %v5025 = vunpack.c.l.b16 %v4941
      %v5026 = vunpack.c.l.b16 %v4955
      %v5027 = vunpack.c.l.b16 %v4965
      %v5028 = vunpack.c.l.b16 %v4979
      %v5029 = vunpack.c.l.b16 %v4989
      %v5030 = vunpack.c.l.b16 %v5003
      %v5031 = vunpack.c.l.b16 %v5013
      %v5032 = vpack.c.b16 %v5017, %v5016
      %v5033 = vpack.c.b16 %v5019, %v5018
      %v5034 = vpack.c.b16 %v5021, %v5020
      %v5035 = vpack.c.b16 %v5023, %v5022
      %v5036 = vpack.c.b16 %v5025, %v5024
      %v5037 = vpack.c.b16 %v5027, %v5026
      %v5038 = vpack.c.b16 %v5029, %v5028
      %v5039 = vpack.c.b16 %v5031, %v5030
      %v5041 = vsel %vm689, %v5032, 0
      %v5044 = vsel %vm689, %v5033, 0
      %v5047 = vsel %vm689, %v5034, 0
      %v5050 = vsel %vm689, %v5035, 0
      %v5053 = vsel %vm689, %v5036, 0
      %v5056 = vsel %vm689, %v5037, 0
      %v5059 = vsel %vm689, %v5038, 0
      %v5062 = vsel %vm689, %v5039, 0
      %v5065 = vsel %vm720, %v5015, 0
      %5067 = vmatpush.bf16.msra.mxu0 0
      %5068 = vmatpush.bf16.msra.mxu0 0
      %5069 = vmatpush.bf16.msra.mxu0 0
      %5070 = vmatpush.bf16.msra.mxu0 0
      %5071 = vmatpush.bf16.msra.mxu0 0
      %5072 = vmatpush.bf16.msra.mxu0 0
      %5073 = vmatpush.bf16.msra.mxu0 0
      %5074 = vmatpush.bf16.msra.mxu0 %v5065
      %5075 = vmatmul.bf16.gmra.mxu0 %v5041
      %v5076 = vpop.f32.mrf.mxu0
      %v5077 = vadd.f32 0.0, %v5076
      %v5078 = vpop.f32.mrf.mxu0
      %v5079 = vadd.f32 0.0, %v5078
      %5080 = vmatmul.bf16.gmra.mxu0 %v5044
      %v5081 = vpop.f32.mrf.mxu0
      %v5082 = vadd.f32 0.0, %v5081
      %v5083 = vpop.f32.mrf.mxu0
      %v5084 = vadd.f32 0.0, %v5083
      %5085 = vmatmul.bf16.gmra.mxu0 %v5047
      %v5086 = vpop.f32.mrf.mxu0
      %v5087 = vadd.f32 0.0, %v5086
      %v5088 = vpop.f32.mrf.mxu0
      %v5089 = vadd.f32 0.0, %v5088
      %5090 = vmatmul.bf16.gmra.mxu0 %v5050
      %v5091 = vpop.f32.mrf.mxu0
      %v5092 = vadd.f32 0.0, %v5091
      %v5093 = vpop.f32.mrf.mxu0
      %v5094 = vadd.f32 0.0, %v5093
      %5095 = vmatmul.bf16.gmra.mxu0 %v5053
      %v5096 = vpop.f32.mrf.mxu0
      %v5097 = vadd.f32 0.0, %v5096
      %v5098 = vpop.f32.mrf.mxu0
      %v5099 = vadd.f32 0.0, %v5098
      %5100 = vmatmul.bf16.gmra.mxu0 %v5056
      %v5101 = vpop.f32.mrf.mxu0
      %v5102 = vadd.f32 0.0, %v5101
      %v5103 = vpop.f32.mrf.mxu0
      %v5104 = vadd.f32 0.0, %v5103
      %5105 = vmatmul.bf16.gmra.mxu0 %v5059
      %v5106 = vpop.f32.mrf.mxu0
      %v5107 = vadd.f32 0.0, %v5106
      %v5108 = vpop.f32.mrf.mxu0
      %v5109 = vadd.f32 0.0, %v5108
      %5110 = vmatmul.bf16.gmra.mxu0 %v5062
      %v5111 = vpop.f32.mrf.mxu0
      %v5112 = vadd.f32 0.0, %v5111
      %v5113 = vpop.f32.mrf.mxu0
      %v5114 = vadd.f32 0.0, %v5113
      %5115 = vdwg.mxu0
      %v5116 = vadd.f32 %v4782, %v5077
      %v5117 = vadd.f32 %v4783, %v5079
      %v5118 = vadd.f32 %v4784, %v5082
      %v5119 = vadd.f32 %v4785, %v5084
      %v5120 = vadd.f32 %v4786, %v5087
      %v5121 = vadd.f32 %v4787, %v5089
      %v5122 = vadd.f32 %v4788, %v5092
      %v5123 = vadd.f32 %v4789, %v5094
      %v5124 = vadd.f32 %v4790, %v5097
      %v5125 = vadd.f32 %v4791, %v5099
      %v5126 = vadd.f32 %v4792, %v5102
      %v5127 = vadd.f32 %v4793, %v5104
      %v5128 = vadd.f32 %v4794, %v5107
      %v5129 = vadd.f32 %v4795, %v5109
      %v5130 = vadd.f32 %v4796, %v5112
      %v5131 = vadd.f32 %v4797, %v5114
      %v5132 = vld [vmem:[%s4647] sm:$0xe]
      %v5133 = vld [vmem:[%s4647 + $0xc] sm:$0xe]
      %v5134 = vld [vmem:[%s4647 + $0x18] sm:$0xe]
      %v5135 = vld [vmem:[%s4647 + $0x24] sm:$0xe]
      %v5136 = vld [vmem:[%s4647 + $0x30] sm:$0xe]
      %v5137 = vld [vmem:[%s4647 + $0x3c] sm:$0xe]
      %v5138 = vld [vmem:[%s4647 + $0x48] sm:$0xe]
      %v5139 = vld [vmem:[%s4647 + $0x54] sm:$0xe]
      %v5164 = vrot.slane %v5132, 5
      %v5165 = vrot.slane %v5164, 4
      %v5166 = vrot.slane %v4799, 5
      %v5167 = vsel %vm957, %v5165, %v5166
      %v5168 = vrot.slane %v5166, 4
      %v5169 = vrot.slane %v4800, 5
      %v5170 = vsel %vm957, %v5168, %v5169
      %v5171 = vrot.slane %v5133, 5
      %v5172 = vrot.slane %v5171, 4
      %v5173 = vrot.slane %v4802, 5
      %v5174 = vsel %vm957, %v5172, %v5173
      %v5175 = vrot.slane %v5173, 4
      %v5176 = vrot.slane %v4803, 5
      %v5177 = vsel %vm957, %v5175, %v5176
      %v5178 = vrot.slane %v5134, 5
      %v5179 = vrot.slane %v5178, 4
      %v5180 = vrot.slane %v4805, 5
      %v5181 = vsel %vm957, %v5179, %v5180
      %v5182 = vrot.slane %v5180, 4
      %v5183 = vrot.slane %v4806, 5
      %v5184 = vsel %vm957, %v5182, %v5183
      %v5185 = vrot.slane %v5135, 5
      %v5186 = vrot.slane %v5185, 4
      %v5187 = vrot.slane %v4808, 5
      %v5188 = vsel %vm957, %v5186, %v5187
      %v5189 = vrot.slane %v5187, 4
      %v5190 = vrot.slane %v4809, 5
      %v5191 = vsel %vm957, %v5189, %v5190
      %v5192 = vrot.slane %v5136, 5
      %v5193 = vrot.slane %v5192, 4
      %v5194 = vrot.slane %v4811, 5
      %v5195 = vsel %vm957, %v5193, %v5194
      %v5196 = vrot.slane %v5194, 4
      %v5197 = vrot.slane %v4812, 5
      %v5198 = vsel %vm957, %v5196, %v5197
      %v5199 = vrot.slane %v5137, 5
      %v5200 = vrot.slane %v5199, 4
      %v5201 = vrot.slane %v4814, 5
      %v5202 = vsel %vm957, %v5200, %v5201
      %v5203 = vrot.slane %v5201, 4
      %v5204 = vrot.slane %v4815, 5
      %v5205 = vsel %vm957, %v5203, %v5204
      %v5206 = vrot.slane %v5138, 5
      %v5207 = vrot.slane %v5206, 4
      %v5208 = vrot.slane %v4817, 5
      %v5209 = vsel %vm957, %v5207, %v5208
      %v5210 = vrot.slane %v5208, 4
      %v5211 = vrot.slane %v4818, 5
      %v5212 = vsel %vm957, %v5210, %v5211
      %v5213 = vrot.slane %v5139, 5
      %v5214 = vrot.slane %v5213, 4
      %v5215 = vrot.slane %v4820, 5
      %v5216 = vsel %vm957, %v5214, %v5215
      %v5217 = vrot.slane %v5215, 4
      %v5218 = vrot.slane %v4821, 5
      %v5219 = vsel %vm957, %v5217, %v5218
      %s5220 = scalar_lea.vmem %s3, 16
      %v5221 = vld [vmem:[%s5220] sm:$0x3]
      %v5222 = vunpack.c.l.b16 %v5167
      %v5223 = vunpack.c.l.b16 %v5170
      %v5224 = vunpack.c.l.b16 %v5174
      %v5225 = vunpack.c.l.b16 %v5177
      %v5226 = vunpack.c.l.b16 %v5181
      %v5227 = vunpack.c.l.b16 %v5184
      %v5228 = vunpack.c.l.b16 %v5188
      %v5229 = vunpack.c.l.b16 %v5191
      %v5230 = vunpack.c.l.b16 %v5195
      %v5231 = vunpack.c.l.b16 %v5198
      %v5232 = vunpack.c.l.b16 %v5202
      %v5233 = vunpack.c.l.b16 %v5205
      %v5234 = vunpack.c.l.b16 %v5209
      %v5235 = vunpack.c.l.b16 %v5212
      %v5236 = vunpack.c.l.b16 %v5216
      %v5237 = vunpack.c.l.b16 %v5219
      %v5238 = vpack.c.b16 %v5223, %v5222
      %v5239 = vpack.c.b16 %v5225, %v5224
      %v5240 = vpack.c.b16 %v5227, %v5226
      %v5241 = vpack.c.b16 %v5229, %v5228
      %v5242 = vpack.c.b16 %v5231, %v5230
      %v5243 = vpack.c.b16 %v5233, %v5232
      %v5244 = vpack.c.b16 %v5235, %v5234
      %v5245 = vpack.c.b16 %v5237, %v5236
      %v5247 = vsel %vm689, %v5238, 0
      %v5250 = vsel %vm689, %v5239, 0
      %v5253 = vsel %vm689, %v5240, 0
      %v5256 = vsel %vm689, %v5241, 0
      %v5259 = vsel %vm689, %v5242, 0
      %v5262 = vsel %vm689, %v5243, 0
      %v5265 = vsel %vm689, %v5244, 0
      %v5268 = vsel %vm689, %v5245, 0
      %v5271 = vsel %vm720, %v5221, 0
      %5273 = vmatpush.bf16.msra.mxu0 0
      %5274 = vmatpush.bf16.msra.mxu0 0
      %5275 = vmatpush.bf16.msra.mxu0 0
      %5276 = vmatpush.bf16.msra.mxu0 0
      %5277 = vmatpush.bf16.msra.mxu0 0
      %5278 = vmatpush.bf16.msra.mxu0 0
      %5279 = vmatpush.bf16.msra.mxu0 0
      %5280 = vmatpush.bf16.msra.mxu0 %v5271
      %5281 = vmatmul.bf16.gmra.mxu0 %v5247
      %v5282 = vpop.f32.mrf.mxu0
      %v5283 = vadd.f32 0.0, %v5282
      %v5284 = vpop.f32.mrf.mxu0
      %v5285 = vadd.f32 0.0, %v5284
      %5286 = vmatmul.bf16.gmra.mxu0 %v5250
      %v5287 = vpop.f32.mrf.mxu0
      %v5288 = vadd.f32 0.0, %v5287
      %v5289 = vpop.f32.mrf.mxu0
      %v5290 = vadd.f32 0.0, %v5289
      %5291 = vmatmul.bf16.gmra.mxu0 %v5253
      %v5292 = vpop.f32.mrf.mxu0
      %v5293 = vadd.f32 0.0, %v5292
      %v5294 = vpop.f32.mrf.mxu0
      %v5295 = vadd.f32 0.0, %v5294
      %5296 = vmatmul.bf16.gmra.mxu0 %v5256
      %v5297 = vpop.f32.mrf.mxu0
      %v5298 = vadd.f32 0.0, %v5297
      %v5299 = vpop.f32.mrf.mxu0
      %v5300 = vadd.f32 0.0, %v5299
      %5301 = vmatmul.bf16.gmra.mxu0 %v5259
      %v5302 = vpop.f32.mrf.mxu0
      %v5303 = vadd.f32 0.0, %v5302
      %v5304 = vpop.f32.mrf.mxu0
      %v5305 = vadd.f32 0.0, %v5304
      %5306 = vmatmul.bf16.gmra.mxu0 %v5262
      %v5307 = vpop.f32.mrf.mxu0
      %v5308 = vadd.f32 0.0, %v5307
      %v5309 = vpop.f32.mrf.mxu0
      %v5310 = vadd.f32 0.0, %v5309
      %5311 = vmatmul.bf16.gmra.mxu0 %v5265
      %v5312 = vpop.f32.mrf.mxu0
      %v5313 = vadd.f32 0.0, %v5312
      %v5314 = vpop.f32.mrf.mxu0
      %v5315 = vadd.f32 0.0, %v5314
      %5316 = vmatmul.bf16.gmra.mxu0 %v5268
      %v5317 = vpop.f32.mrf.mxu0
      %v5318 = vadd.f32 0.0, %v5317
      %v5319 = vpop.f32.mrf.mxu0
      %v5320 = vadd.f32 0.0, %v5319
      %5321 = vdwg.mxu0
      %v5322 = vadd.f32 %v5116, %v5283
      %v5323 = vadd.f32 %v5117, %v5285
      %v5324 = vadd.f32 %v5118, %v5288
      %v5325 = vadd.f32 %v5119, %v5290
      %v5326 = vadd.f32 %v5120, %v5293
      %v5327 = vadd.f32 %v5121, %v5295
      %v5328 = vadd.f32 %v5122, %v5298
      %v5329 = vadd.f32 %v5123, %v5300
      %v5330 = vadd.f32 %v5124, %v5303
      %v5331 = vadd.f32 %v5125, %v5305
      %v5332 = vadd.f32 %v5126, %v5308
      %v5333 = vadd.f32 %v5127, %v5310
      %v5334 = vadd.f32 %v5128, %v5313
      %v5335 = vadd.f32 %v5129, %v5315
      %v5336 = vadd.f32 %v5130, %v5318
      %v5337 = vadd.f32 %v5131, %v5320
      %v5338 = vld [vmem:[%s370] sm:$0xff]
      %v5339 = vld [vmem:[%s370 + $0x8] sm:$0xff]
      %v5340 = vld [vmem:[%s370 + $0x10] sm:$0xff]
      %v5341 = vld [vmem:[%s370 + $0x18] sm:$0xff]
      %v5342 = vld [vmem:[%s370 + $0x20] sm:$0xff]
      %v5343 = vld [vmem:[%s370 + $0x28] sm:$0xff]
      %v5344 = vld [vmem:[%s370 + $0x30] sm:$0xff]
      %v5345 = vld [vmem:[%s370 + $0x38] sm:$0xff]
      %v5346 = vld [vmem:[%s370 + $0x40] sm:$0xff]
      %v5347 = vld [vmem:[%s370 + $0x48] sm:$0xff]
      %v5348 = vld [vmem:[%s370 + $0x50] sm:$0xff]
      %v5349 = vld [vmem:[%s370 + $0x58] sm:$0xff]
      %v5350 = vld [vmem:[%s370 + $0x60] sm:$0xff]
      %v5351 = vld [vmem:[%s370 + $0x68] sm:$0xff]
      %v5352 = vld [vmem:[%s370 + $0x70] sm:$0xff]
      %v5353 = vld [vmem:[%s370 + $0x78] sm:$0xff]
      %v5354 = vld [vmem:[%s6] sm:$0x1]
      %v5356 = vperm.slane %v5354, 0
      %v5358 = vmul.f32 %v5322, %v5356
      %v5359 = vmul.f32 %v5323, %v5356
      %v5360 = vmul.f32 %v5324, %v5356
      %v5361 = vmul.f32 %v5325, %v5356
      %v5362 = vmul.f32 %v5326, %v5356
      %v5363 = vmul.f32 %v5327, %v5356
      %v5364 = vmul.f32 %v5328, %v5356
      %v5365 = vmul.f32 %v5329, %v5356
      %v5366 = vmul.f32 %v5330, %v5356
      %v5367 = vmul.f32 %v5331, %v5356
      %v5368 = vmul.f32 %v5332, %v5356
      %v5369 = vmul.f32 %v5333, %v5356
      %v5370 = vmul.f32 %v5334, %v5356
      %v5371 = vmul.f32 %v5335, %v5356
      %v5372 = vmul.f32 %v5336, %v5356
      %v5373 = vmul.f32 %v5337, %v5356
      %v5374 = vld [vmem:[%s7] sm:$0x1]
      %v5376 = vperm.slane %v5374, 0
      %v5378 = vadd.f32 %v5358, %v5376
      %v5379 = vadd.f32 %v5359, %v5376
      %v5380 = vadd.f32 %v5360, %v5376
      %v5381 = vadd.f32 %v5361, %v5376
      %v5382 = vadd.f32 %v5362, %v5376
      %v5383 = vadd.f32 %v5363, %v5376
      %v5384 = vadd.f32 %v5364, %v5376
      %v5385 = vadd.f32 %v5365, %v5376
      %v5386 = vadd.f32 %v5366, %v5376
      %v5387 = vadd.f32 %v5367, %v5376
      %v5388 = vadd.f32 %v5368, %v5376
      %v5389 = vadd.f32 %v5369, %v5376
      %v5390 = vadd.f32 %v5370, %v5376
      %v5391 = vadd.f32 %v5371, %v5376
      %v5392 = vadd.f32 %v5372, %v5376
      %v5393 = vadd.f32 %v5373, %v5376
      %v5394 = vadd.f32 %v5378, %v5338
      %v5395 = vadd.f32 %v5379, %v5339
      %v5396 = vadd.f32 %v5380, %v5340
      %v5397 = vadd.f32 %v5381, %v5341
      %v5398 = vadd.f32 %v5382, %v5342
      %v5399 = vadd.f32 %v5383, %v5343
      %v5400 = vadd.f32 %v5384, %v5344
      %v5401 = vadd.f32 %v5385, %v5345
      %v5402 = vadd.f32 %v5386, %v5346
      %v5403 = vadd.f32 %v5387, %v5347
      %v5404 = vadd.f32 %v5388, %v5348
      %v5405 = vadd.f32 %v5389, %v5349
      %v5406 = vadd.f32 %v5390, %v5350
      %v5407 = vadd.f32 %v5391, %v5351
      %v5408 = vadd.f32 %v5392, %v5352
      %v5409 = vadd.f32 %v5393, %v5353
      %v5410 = vmax.f32 %v5394, 0.0
      %v5411 = vmax.f32 %v5395, 0.0
      %v5412 = vmax.f32 %v5396, 0.0
      %v5413 = vmax.f32 %v5397, 0.0
      %v5414 = vmax.f32 %v5398, 0.0
      %v5415 = vmax.f32 %v5399, 0.0
      %v5416 = vmax.f32 %v5400, 0.0
      %v5417 = vmax.f32 %v5401, 0.0
      %v5418 = vmax.f32 %v5402, 0.0
      %v5419 = vmax.f32 %v5403, 0.0
      %v5420 = vmax.f32 %v5404, 0.0
      %v5421 = vmax.f32 %v5405, 0.0
      %v5422 = vmax.f32 %v5406, 0.0
      %v5423 = vmax.f32 %v5407, 0.0
      %v5424 = vmax.f32 %v5408, 0.0
      %v5425 = vmax.f32 %v5409, 0.0
      %5426 = vst.msk [vmem:[%s380] sm:$0xff] %vm689, %v5410
      %5427 = vst.msk [vmem:[%s380 + $0x8] sm:$0xff] %vm689, %v5411
      %5428 = vst.msk [vmem:[%s380 + $0x10] sm:$0xff] %vm689, %v5412
      %5429 = vst.msk [vmem:[%s380 + $0x18] sm:$0xff] %vm689, %v5413
      %5430 = vst.msk [vmem:[%s380 + $0x20] sm:$0xff] %vm689, %v5414
      %5431 = vst.msk [vmem:[%s380 + $0x28] sm:$0xff] %vm689, %v5415
      %5432 = vst.msk [vmem:[%s380 + $0x30] sm:$0xff] %vm689, %v5416
      %5433 = vst.msk [vmem:[%s380 + $0x38] sm:$0xff] %vm689, %v5417
      %5434 = vst.msk [vmem:[%s380 + $0x40] sm:$0xff] %vm689, %v5418
      %5435 = vst.msk [vmem:[%s380 + $0x48] sm:$0xff] %vm689, %v5419
      %5436 = vst.msk [vmem:[%s380 + $0x50] sm:$0xff] %vm689, %v5420
      %5437 = vst.msk [vmem:[%s380 + $0x58] sm:$0xff] %vm689, %v5421
      %5438 = vst.msk [vmem:[%s380 + $0x60] sm:$0xff] %vm689, %v5422
      %5439 = vst.msk [vmem:[%s380 + $0x68] sm:$0xff] %vm689, %v5423
      %5440 = vst.msk [vmem:[%s380 + $0x70] sm:$0xff] %vm689, %v5424
      %5441 = vst.msk [vmem:[%s380 + $0x78] sm:$0xff] %vm689, %v5425
      %s5442 = smul.u32 16, %s24
      %p5443 = scmp.lt.s32.totalorder %s23, 1
      %s5444 = scalar_select %p5443, %s23, 1
      %p5445 = scmp.lt.s32.totalorder %s5442, 31
      %s5446 = scalar_select %p5445, %s5442, 31
      %s5447 = smul.addr %s5444, 32
      %s5448 = sadd.s32 %s5446, %s5447
      %s5449 = smul.addr %s5448, 8
      %s5450 = scalar_lea.vmem %s8, %s5449
      // Predicated region
      $region61: #{tpu_custom_call.1} parent=51 // pred_check
        %p5451 = pneg %p235
      $region62: #{tpu_custom_call.1} parent=51 // pred_check_branch
        %5453 = sbr.rel (%p5451) target = $region64
      $region63: #{tpu_custom_call.1} parent=51 // pred_region
        %s5454 = smul.u32 16, %s24
      $region64: #{tpu_custom_call.1} parent=51 // pred_fallthru
        _
    $region52: #{tpu_custom_call.1} parent=5 // pred_fallthru
      _
    %p5455 = scmp.le.s32.totalorder 2, %s14
    // Predicated region
    $region65: #{tpu_custom_call.1} parent=5 // pred_check
      %p5456 = pneg %p5455
    $region66: #{tpu_custom_call.1} parent=5 // pred_check_branch
      %5458 = sbr.rel (%p5456) target = $region68
    $region67: #{tpu_custom_call.1} parent=5 // pred_region
      %s5459 = ssub.s32 %s14, 2
      // Predicated region
      $region69: #{tpu_custom_call.1} parent=67 // pred_check
        %p5460 = pneg %p241
      $region70: #{tpu_custom_call.1} parent=67 // pred_check_branch
        %5462 = sbr.rel (%p5460) target = $region72
      $region71: #{tpu_custom_call.1} parent=67 // pred_region
        %s5463 = smul.u32 16, %s26
        %p5464 = scmp.lt.s32.totalorder %s25, 1
        %s5465 = scalar_select %p5464, %s25, 1
        %p5466 = scmp.lt.s32.totalorder %s5463, 31
        %s5467 = scalar_select %p5466, %s5463, 31
        %s5468 = smul.addr %s5465, 32
        %s5469 = sadd.s32 %s5467, %s5468
        %s5470 = smul.addr %s5469, 8
        %s5471 = scalar_lea.vmem %s8, %s5470
      $region72: #{tpu_custom_call.1} parent=67 // pred_fallthru
        _
    $region68: #{tpu_custom_call.1} parent=5 // pred_fallthru
      _
  $region6: #{tpu_custom_call.1} parent=0 // loop_footer
    %s18 = sadd.s32 1, %s14
  $region7: #{tpu_custom_call.1} parent=0 // loop_footer_branch
    %13 = sbr.rel target = $region3
  $region8: #{tpu_custom_call.1} parent=0 // loop_exit
    _

</llo_original>
